<compile_context>
chip_gen: v7x
topology: tpu7x:2x2x1
jax: 0.10.0
libtpu: 0.0.40
codegen_flags: <defaults>
</compile_context>

<pallas_src>
import jax
import jax.numpy as jnp
from jax import lax
from jax.experimental import pallas as pl
from jax.experimental.pallas import tpu as pltpu

WORD_VEC_DIM = 25
LSTM_DIM = 128
GRU_DIM = 256
CLASSES = 2


def _sigmoid_via_tanh(x):
    # sigmoid(x) == 0.5 * (1 + tanh(x/2)); guarantees EUP tanh, no divide.
    return 0.5 * (jnp.tanh(0.5 * x) + 1.0)


# ------------------------- fused LSTM+GRU+FC kernel --------------------------
def _lstm_gru_fused_kernel(is_end_ref, slot_ref,           # SMEM (T,) int32 each
                           x_ref,                          # (T, D_in) bf16
                           lwih_ref, lwhh_ref, lb_ref,     # LSTM weights
                           gwih_ref, gwhh_ref, gbih_ref, gbhh_ref,  # GRU weights
                           wfc_ref, bfc_ref,               # FC weights
                           out_ref,                        # (1, CLASSES) f32
                           gi_l_scr, tree_scr, gi_g_scr):
    T = x_ref.shape[0]
    S = tree_scr.shape[0]
    HL = LSTM_DIM
    HG = GRU_DIM

    lstm_unroll = True if T <= 128 else 8
    gru_unroll = True if S <= 128 else 8

    # ---- LSTM: input projection hoisted out of the recurrence (bf16 MXU) ----
    gi_l_scr[...] = (jnp.dot(x_ref[...], lwih_ref[...],
                             preferred_element_type=jnp.float32)
                     + lb_ref[...])                         # (T, 4*HL) f32

    tree_scr[...] = jnp.zeros_like(tree_scr)

    def lstm_step(t, carry):
        h, c = carry                                        # (1,HL) f32 vregs
        gates = gi_l_scr[pl.ds(t, 1), :] + jnp.dot(
            h.astype(jnp.bfloat16), lwhh_ref[...],
            preferred_element_type=jnp.float32)             # (1, 4*HL)
        # Gate layout: i | f | o | g  -> one contiguous sigmoid slab.
        sfo = _sigmoid_via_tanh(gates[:, 0:3 * HL])         # (1, 3*HL)
        i = sfo[:, 0 * HL:1 * HL]
        f = sfo[:, 1 * HL:2 * HL]
        o = sfo[:, 2 * HL:3 * HL]
        g = jnp.tanh(gates[:, 3 * HL:4 * HL])
        c_new = f * c + i * g
        h_new = o * jnp.tanh(c_new)

        # Store h only at sentence ends (precomputed flags/slots in SMEM).
        @pl.when(is_end_ref[t] == 1)
        def _():
            tree_scr[pl.ds(slot_ref[t], 1), :] = h_new

        return (h_new, c_new)

    h0 = jnp.zeros((1, HL), jnp.float32)
    c0 = jnp.zeros((1, HL), jnp.float32)
    lax.fori_loop(0, T, lstm_step, (h0, c0), unroll=lstm_unroll)

    # ---- GRU over sentence representations (input projection hoisted) ------
    gi_g_scr[...] = (jnp.dot(tree_scr[...].astype(jnp.bfloat16), gwih_ref[...],
                             preferred_element_type=jnp.float32)
                     + gbih_ref[...])                       # (S, 3*HG) f32

    def gru_step(s, hg):
        gi = gi_g_scr[pl.ds(s, 1), :]                       # (1, 3*HG)
        gh = jnp.dot(hg.astype(jnp.bfloat16), gwhh_ref[...],
                     preferred_element_type=jnp.float32) + gbhh_ref[...]
        # Gate layout: r | z | n  -> r,z in one contiguous sigmoid slab.
        rz = _sigmoid_via_tanh(gi[:, 0:2 * HG] + gh[:, 0:2 * HG])
        r = rz[:, 0 * HG:1 * HG]
        z = rz[:, 1 * HG:2 * HG]
        n = jnp.tanh(gi[:, 2 * HG:3 * HG] + r * gh[:, 2 * HG:3 * HG])
        return (1.0 - z) * n + z * hg

    hg0 = jnp.zeros((1, HG), jnp.float32)
    hg = lax.fori_loop(0, S, gru_step, hg0, unroll=gru_unroll)

    # ---- FC + softmax -------------------------------------------------------
    logits = jnp.dot(hg, wfc_ref[...],
                     preferred_element_type=jnp.float32) + bfc_ref[...]  # (1,C)
    m = jnp.max(logits, axis=-1, keepdims=True)
    e = jnp.exp(logits - m)
    out_ref[...] = e / jnp.sum(e, axis=-1, keepdims=True)


def _vmem_limit_bytes(T, S):
    need = (T * 4 * LSTM_DIM * 4                     # gi_l scratch (f32)
            + S * LSTM_DIM * 4                       # tree scratch
            + S * 3 * GRU_DIM * 4                    # gi_g scratch
            + T * WORD_VEC_DIM * 2                   # x (bf16)
            + (WORD_VEC_DIM * 4 * LSTM_DIM + LSTM_DIM * 4 * LSTM_DIM
               + LSTM_DIM * 3 * GRU_DIM + GRU_DIM * 3 * GRU_DIM) * 2  # bf16 W
            + (4 * LSTM_DIM + 2 * 3 * GRU_DIM
               + GRU_DIM * CLASSES + CLASSES) * 4)   # biases + FC (f32)
    # Headroom x2, floor at 32 MiB, cap below v7x's 64 MiB physical VMEM.
    return int(min(max(2 * need, 32 * 1024 * 1024), 60 * 1024 * 1024))


def lstm_gru_forward(params, x_concat, sentence_ends):
    """x_concat: (T_total, WORD_VEC_DIM) f32; sentence_ends: (S,) int32 indices
    (sorted, strictly increasing, in [0, T)) of each sentence's last timestep.
    Returns (CLASSES,) softmax probabilities."""
    T = x_concat.shape[0]
    S = sentence_ends.shape[0]
    sentence_ends = sentence_ends.astype(jnp.int32)

    # Precomputed per-timestep sentence-end flag and target slot (SMEM scalars).
    is_end = jnp.zeros((T,), jnp.int32).at[sentence_ends].set(1)
    slot = jnp.zeros((T,), jnp.int32).at[sentence_ends].set(
        jnp.arange(S, dtype=jnp.int32))

    probs = pl.pallas_call(
        _lstm_gru_fused_kernel,
        out_shape=jax.ShapeDtypeStruct((1, CLASSES), jnp.float32),
        in_specs=([pl.BlockSpec(memory_space=pltpu.MemorySpace.SMEM)] * 2
                  + [pl.BlockSpec(memory_space=pltpu.MemorySpace.VMEM)] * 10),
        out_specs=pl.BlockSpec(memory_space=pltpu.MemorySpace.VMEM),
        scratch_shapes=[
            pltpu.VMEM((T, 4 * LSTM_DIM), jnp.float32),   # hoisted LSTM gi
            pltpu.VMEM((S, LSTM_DIM), jnp.float32),       # sentence-end hiddens
            pltpu.VMEM((S, 3 * GRU_DIM), jnp.float32),    # hoisted GRU gi
        ],
        compiler_params=pltpu.CompilerParams(
            vmem_limit_bytes=_vmem_limit_bytes(T, S)),
    )(is_end, slot, x_concat.astype(jnp.bfloat16),
      params["lstm_w_ih"], params["lstm_w_hh"], params["lstm_b"],
      params["gru_w_ih"], params["gru_w_hh"],
      params["gru_b_ih"], params["gru_b_hh"],
      params["fc_w"], params["fc_b"])
    return probs[0]                                        # == res.squeeze(0)


# ------------------------------ parameters -----------------------------------
def init_params(key):
    def u(k, shape, bound):
        return jax.random.uniform(k, shape, jnp.float32, -bound, bound)

    ks = jax.random.split(key, 12)
    bl = 1.0 / float(jnp.sqrt(jnp.float32(LSTM_DIM)))
    bg = 1.0 / float(jnp.sqrt(jnp.float32(GRU_DIM)))

    p = {}
    # LSTM (shapes transposed for right-multiply; gate columns i,f,o,g).
    # Projection + recurrent weights in bf16 (MXU native); biases/FC in f32.
    p["lstm_w_ih"] = u(ks[0], (WORD_VEC_DIM, 4 * LSTM_DIM), bl).astype(jnp.bfloat16)
    p["lstm_w_hh"] = u(ks[1], (LSTM_DIM, 4 * LSTM_DIM), bl).astype(jnp.bfloat16)
    p["lstm_b"] = (u(ks[2], (1, 4 * LSTM_DIM), bl)
                   + u(ks[3], (1, 4 * LSTM_DIM), bl))   # b_ih + b_hh (fusable)
    # GRU (gate columns r,z,n; b_ih / b_hh stay separate: r gates (W_hn h + b_hn)).
    p["gru_w_ih"] = u(ks[4], (LSTM_DIM, 3 * GRU_DIM), bg).astype(jnp.bfloat16)
    p["gru_w_hh"] = u(ks[5], (GRU_DIM, 3 * GRU_DIM), bg).astype(jnp.bfloat16)
    p["gru_b_ih"] = u(ks[6], (1, 3 * GRU_DIM), bg)
    p["gru_b_hh"] = u(ks[7], (1, 3 * GRU_DIM), bg)
    # FC
    p["fc_w"] = u(ks[8], (GRU_DIM, CLASSES), bg)
    p["fc_b"] = u(ks[9], (1, CLASSES), bg)
    return p


# ---------------------------- pure-JAX reference -----------------------------
def _ref_forward(params, x_concat, sentence_ends):
    HL = LSTM_DIM
    gi_all = (jnp.dot(x_concat.astype(jnp.bfloat16), params["lstm_w_ih"],
                      preferred_element_type=jnp.float32)
              + params["lstm_b"][0])                                # (T, 4*HL)

    def lstm_step(carry, gi_t):
        h, c = carry
        g = gi_t + jnp.dot(h.astype(jnp.bfloat16), params["lstm_w_hh"],
                           preferred_element_type=jnp.float32)
        i = _sigmoid_via_tanh(g[0 * HL:1 * HL])
        f = _sigmoid_via_tanh(g[1 * HL:2 * HL])
        o = _sigmoid_via_tanh(g[2 * HL:3 * HL])
        gg = jnp.tanh(g[3 * HL:4 * HL])
        c = f * c + i * gg
        h = o * jnp.tanh(c)
        return (h, c), h

    (_, _), hs = lax.scan(lstm_step, (jnp.zeros(HL), jnp.zeros(HL)), gi_all)
    tree = hs[sentence_ends]                                        # (S, HL)

    HG = GRU_DIM
    gi_gru = (jnp.dot(tree.astype(jnp.bfloat16), params["gru_w_ih"],
                      preferred_element_type=jnp.float32)
              + params["gru_b_ih"][0])                              # (S, 3*HG)

    def gru_step(h, gi_t):
        gh = jnp.dot(h.astype(jnp.bfloat16), params["gru_w_hh"],
                     preferred_element_type=jnp.float32) + params["gru_b_hh"][0]
        r = _sigmoid_via_tanh(gi_t[0 * HG:1 * HG] + gh[0 * HG:1 * HG])
        z = _sigmoid_via_tanh(gi_t[1 * HG:2 * HG] + gh[1 * HG:2 * HG])
        n = jnp.tanh(gi_t[2 * HG:3 * HG] + r * gh[2 * HG:3 * HG])
        return (1.0 - z) * n + z * h, None

    h_last, _ = lax.scan(gru_step, jnp.zeros(HG), gi_gru)
    logits = h_last @ params["fc_w"] + params["fc_b"][0]
    return jax.nn.softmax(logits, axis=-1)


# --------------------------------- main ---------------------------------------
if __name__ == "__main__":
    key = jax.random.PRNGKey(0)
    k_param, k_data = jax.random.split(key)
    params = init_params(k_param)

    # input_tree: 3 sentences with lengths [4, 5, 3], each token a 25-dim vector.
    sentence_lengths = jnp.array([4, 5, 3], dtype=jnp.int32)
    T_total = int(jnp.sum(sentence_lengths))
    x_concat = jax.random.normal(k_data, (T_total, WORD_VEC_DIM), jnp.float32)
    sentence_ends = (jnp.cumsum(sentence_lengths) - 1).astype(jnp.int32)

    res = jax.block_until_ready(lstm_gru_forward(params, x_concat, sentence_ends))
    ref = jax.block_until_ready(_ref_forward(params, x_concat, sentence_ends))

    assert res.shape == (CLASSES,)
    assert jnp.allclose(res, ref, atol=2e-3, rtol=2e-3), (res, ref)

    print("KERNEL_OK")
</pallas_src>

<mosaic_0001>
module attributes {stable_mosaic.version = 11 : i64} {
  func.func @_lstm_gru_fused_kernel(%arg0: memref<12xi32, #tpu.memory_space<smem>>, %arg1: memref<12xi32, #tpu.memory_space<smem>>, %arg2: memref<12x25xbf16, #tpu.memory_space<vmem>>, %arg3: memref<25x512xbf16, #tpu.memory_space<vmem>>, %arg4: memref<128x512xbf16, #tpu.memory_space<vmem>>, %arg5: memref<1x512xf32, #tpu.memory_space<vmem>>, %arg6: memref<128x768xbf16, #tpu.memory_space<vmem>>, %arg7: memref<256x768xbf16, #tpu.memory_space<vmem>>, %arg8: memref<1x768xf32, #tpu.memory_space<vmem>>, %arg9: memref<1x768xf32, #tpu.memory_space<vmem>>, %arg10: memref<256x2xf32, #tpu.memory_space<vmem>>, %arg11: memref<1x2xf32, #tpu.memory_space<vmem>>, %arg12: memref<1x2xf32, #tpu.memory_space<vmem>>, %arg13: memref<12x512xf32, #tpu.memory_space<vmem>>, %arg14: memref<3x128xf32, #tpu.memory_space<vmem>>, %arg15: memref<3x768xf32, #tpu.memory_space<vmem>>) attributes {dimension_semantics = [], scalar_prefetch = 0 : i64, scratch_operands = 3 : i64, tpu.core_type = #tpu.core_type<tc>} {
    %c0 = arith.constant 0 : index
    %c0_0 = arith.constant 0 : index
    %0 = vector.load %arg2[%c0, %c0_0] : memref<12x25xbf16, #tpu.memory_space<vmem>>, vector<12x25xbf16>
    %c0_1 = arith.constant 0 : index
    %c0_2 = arith.constant 0 : index
    %1 = vector.load %arg3[%c0_1, %c0_2] : memref<25x512xbf16, #tpu.memory_space<vmem>>, vector<25x512xbf16>
    %cst = arith.constant dense<0.000000e+00> : vector<12x512xf32>
    %2 = tpu.matmul %0, %1, %cst {dimension_numbers = #tpu.dot_dimension_numbers<[1], [0], [0], [1], [0, 0, 1, 1], [], []>} : vector<12x25xbf16>, vector<25x512xbf16>, vector<12x512xf32> -> vector<12x512xf32>
    %c0_3 = arith.constant 0 : index
    %c0_4 = arith.constant 0 : index
    %3 = vector.load %arg5[%c0_3, %c0_4] : memref<1x512xf32, #tpu.memory_space<vmem>>, vector<1x512xf32>
    %4 = vector.broadcast %3 : vector<1x512xf32> to vector<12x512xf32>
    %5 = arith.addf %2, %4 : vector<12x512xf32>
    %c0_5 = arith.constant 0 : index
    %c0_6 = arith.constant 0 : index
    %6 = vector.load %arg13[%c0_5, %c0_6] : memref<12x512xf32, #tpu.memory_space<vmem>>, vector<12x512xf32>
    tpu.vector_store %arg13[%c0_5, %c0_6], %5 {strides = array<i32>} : memref<12x512xf32, #tpu.memory_space<vmem>>, vector<12x512xf32>,
    %cst_7 = arith.constant 0.000000e+00 : f32
    %7 = vector.broadcast %cst_7 : f32 to vector<3x128xf32>
    %c0_8 = arith.constant 0 : index
    %c0_9 = arith.constant 0 : index
    %8 = vector.load %arg14[%c0_8, %c0_9] : memref<3x128xf32, #tpu.memory_space<vmem>>, vector<3x128xf32>
    tpu.vector_store %arg14[%c0_8, %c0_9], %7 {strides = array<i32>} : memref<3x128xf32, #tpu.memory_space<vmem>>, vector<3x128xf32>,
    %cst_10 = arith.constant 0.000000e+00 : f32
    %9 = vector.broadcast %cst_10 : f32 to vector<1x128xf32>
    %cst_11 = arith.constant 0.000000e+00 : f32
    %10 = vector.broadcast %cst_11 : f32 to vector<1x128xf32>
    %c0_i32 = arith.constant 0 : i32
    %11 = arith.index_cast %c0_i32 : i32 to index
    %c0_12 = arith.constant 0 : index
    %12 = vector.load %arg13[%11, %c0_12] : memref<12x512xf32, #tpu.memory_space<vmem>>, vector<1x512xf32>
    %13 = arith.truncf %9 : vector<1x128xf32> to vector<1x128xbf16>
    %c0_13 = arith.constant 0 : index
    %c0_14 = arith.constant 0 : index
    %14 = vector.load %arg4[%c0_13, %c0_14] : memref<128x512xbf16, #tpu.memory_space<vmem>>, vector<128x512xbf16>
    %cst_15 = arith.constant dense<0.000000e+00> : vector<1x512xf32>
    %15 = tpu.matmul %13, %14, %cst_15 {dimension_numbers = #tpu.dot_dimension_numbers<[1], [0], [0], [1], [0, 0, 1, 1], [], []>} : vector<1x128xbf16>, vector<128x512xbf16>, vector<1x512xf32> -> vector<1x512xf32>
    %16 = arith.addf %12, %15 : vector<1x512xf32>
    %17 = vector.extract_strided_slice %16 {offsets = [0, 0], sizes = [1, 384], strides = [1, 1]} : vector<1x512xf32> to vector<1x384xf32>
    %cst_16 = arith.constant 5.000000e-01 : f32
    %18 = vector.broadcast %cst_16 : f32 to vector<1x384xf32>
    %19 = arith.mulf %18, %17 : vector<1x384xf32>
    %20 = math.tanh %19 : vector<1x384xf32>
    %cst_17 = arith.constant 1.000000e+00 : f32
    %21 = vector.broadcast %cst_17 : f32 to vector<1x384xf32>
    %22 = arith.addf %20, %21 : vector<1x384xf32>
    %cst_18 = arith.constant 5.000000e-01 : f32
    %23 = vector.broadcast %cst_18 : f32 to vector<1x384xf32>
    %24 = arith.mulf %23, %22 : vector<1x384xf32>
    %25 = vector.extract_strided_slice %24 {offsets = [0, 0], sizes = [1, 128], strides = [1, 1]} : vector<1x384xf32> to vector<1x128xf32>
    %26 = vector.extract_strided_slice %24 {offsets = [0, 128], sizes = [1, 128], strides = [1, 1]} : vector<1x384xf32> to vector<1x128xf32>
    %27 = vector.extract_strided_slice %24 {offsets = [0, 256], sizes = [1, 128], strides = [1, 1]} : vector<1x384xf32> to vector<1x128xf32>
    %28 = vector.extract_strided_slice %16 {offsets = [0, 384], sizes = [1, 128], strides = [1, 1]} : vector<1x512xf32> to vector<1x128xf32>
    %29 = math.tanh %28 : vector<1x128xf32>
    %30 = arith.mulf %26, %10 : vector<1x128xf32>
    %31 = arith.mulf %25, %29 : vector<1x128xf32>
    %32 = arith.addf %30, %31 : vector<1x128xf32>
    %33 = math.tanh %32 : vector<1x128xf32>
    %34 = arith.mulf %27, %33 : vector<1x128xf32>
    %35 = arith.index_cast %c0_i32 : i32 to index
    %36 = memref.load %arg0[%35] : memref<12xi32, #tpu.memory_space<smem>>
    %c1_i32 = arith.constant 1 : i32
    %37 = arith.cmpi eq, %36, %c1_i32 : i32
    %38 = arith.extui %37 : i1 to i32
    %c0_i32_19 = arith.constant 0 : i32
    %39 = arith.cmpi ne, %38, %c0_i32_19 : i32
    scf.if %39 {
      %469 = arith.index_cast %c0_i32 : i32 to index
      %470 = memref.load %arg1[%469] : memref<12xi32, #tpu.memory_space<smem>>
      %471 = arith.index_cast %470 : i32 to index
      %c0_173 = arith.constant 0 : index
      %472 = vector.load %arg14[%471, %c0_173] : memref<3x128xf32, #tpu.memory_space<vmem>>, vector<1x128xf32>
      tpu.vector_store %arg14[%471, %c0_173], %34 {strides = array<i32>} : memref<3x128xf32, #tpu.memory_space<vmem>>, vector<1x128xf32>,
    } else {
    }
    %c1_i32_20 = arith.constant 1 : i32
    %40 = arith.index_cast %c1_i32_20 : i32 to index
    %c0_21 = arith.constant 0 : index
    %41 = vector.load %arg13[%40, %c0_21] : memref<12x512xf32, #tpu.memory_space<vmem>>, vector<1x512xf32>
    %42 = arith.truncf %34 : vector<1x128xf32> to vector<1x128xbf16>
    %c0_22 = arith.constant 0 : index
    %c0_23 = arith.constant 0 : index
    %43 = vector.load %arg4[%c0_22, %c0_23] : memref<128x512xbf16, #tpu.memory_space<vmem>>, vector<128x512xbf16>
    %cst_24 = arith.constant dense<0.000000e+00> : vector<1x512xf32>
    %44 = tpu.matmul %42, %43, %cst_24 {dimension_numbers = #tpu.dot_dimension_numbers<[1], [0], [0], [1], [0, 0, 1, 1], [], []>} : vector<1x128xbf16>, vector<128x512xbf16>, vector<1x512xf32> -> vector<1x512xf32>
    %45 = arith.addf %41, %44 : vector<1x512xf32>
    %46 = vector.extract_strided_slice %45 {offsets = [0, 0], sizes = [1, 384], strides = [1, 1]} : vector<1x512xf32> to vector<1x384xf32>
    %cst_25 = arith.constant 5.000000e-01 : f32
    %47 = vector.broadcast %cst_25 : f32 to vector<1x384xf32>
    %48 = arith.mulf %47, %46 : vector<1x384xf32>
    %49 = math.tanh %48 : vector<1x384xf32>
    %cst_26 = arith.constant 1.000000e+00 : f32
    %50 = vector.broadcast %cst_26 : f32 to vector<1x384xf32>
    %51 = arith.addf %49, %50 : vector<1x384xf32>
    %cst_27 = arith.constant 5.000000e-01 : f32
    %52 = vector.broadcast %cst_27 : f32 to vector<1x384xf32>
    %53 = arith.mulf %52, %51 : vector<1x384xf32>
    %54 = vector.extract_strided_slice %53 {offsets = [0, 0], sizes = [1, 128], strides = [1, 1]} : vector<1x384xf32> to vector<1x128xf32>
    %55 = vector.extract_strided_slice %53 {offsets = [0, 128], sizes = [1, 128], strides = [1, 1]} : vector<1x384xf32> to vector<1x128xf32>
    %56 = vector.extract_strided_slice %53 {offsets = [0, 256], sizes = [1, 128], strides = [1, 1]} : vector<1x384xf32> to vector<1x128xf32>
    %57 = vector.extract_strided_slice %45 {offsets = [0, 384], sizes = [1, 128], strides = [1, 1]} : vector<1x512xf32> to vector<1x128xf32>
    %58 = math.tanh %57 : vector<1x128xf32>
    %59 = arith.mulf %55, %32 : vector<1x128xf32>
    %60 = arith.mulf %54, %58 : vector<1x128xf32>
    %61 = arith.addf %59, %60 : vector<1x128xf32>
    %62 = math.tanh %61 : vector<1x128xf32>
    %63 = arith.mulf %56, %62 : vector<1x128xf32>
    %64 = arith.index_cast %c1_i32_20 : i32 to index
    %65 = memref.load %arg0[%64] : memref<12xi32, #tpu.memory_space<smem>>
    %c1_i32_28 = arith.constant 1 : i32
    %66 = arith.cmpi eq, %65, %c1_i32_28 : i32
    %67 = arith.extui %66 : i1 to i32
    %c0_i32_29 = arith.constant 0 : i32
    %68 = arith.cmpi ne, %67, %c0_i32_29 : i32
    scf.if %68 {
      %469 = arith.index_cast %c1_i32_20 : i32 to index
      %470 = memref.load %arg1[%469] : memref<12xi32, #tpu.memory_space<smem>>
      %471 = arith.index_cast %470 : i32 to index
      %c0_173 = arith.constant 0 : index
      %472 = vector.load %arg14[%471, %c0_173] : memref<3x128xf32, #tpu.memory_space<vmem>>, vector<1x128xf32>
      tpu.vector_store %arg14[%471, %c0_173], %63 {strides = array<i32>} : memref<3x128xf32, #tpu.memory_space<vmem>>, vector<1x128xf32>,
    } else {
    }
    %c2_i32 = arith.constant 2 : i32
    %69 = arith.index_cast %c2_i32 : i32 to index
    %c0_30 = arith.constant 0 : index
    %70 = vector.load %arg13[%69, %c0_30] : memref<12x512xf32, #tpu.memory_space<vmem>>, vector<1x512xf32>
    %71 = arith.truncf %63 : vector<1x128xf32> to vector<1x128xbf16>
    %c0_31 = arith.constant 0 : index
    %c0_32 = arith.constant 0 : index
    %72 = vector.load %arg4[%c0_31, %c0_32] : memref<128x512xbf16, #tpu.memory_space<vmem>>, vector<128x512xbf16>
    %cst_33 = arith.constant dense<0.000000e+00> : vector<1x512xf32>
    %73 = tpu.matmul %71, %72, %cst_33 {dimension_numbers = #tpu.dot_dimension_numbers<[1], [0], [0], [1], [0, 0, 1, 1], [], []>} : vector<1x128xbf16>, vector<128x512xbf16>, vector<1x512xf32> -> vector<1x512xf32>
    %74 = arith.addf %70, %73 : vector<1x512xf32>
    %75 = vector.extract_strided_slice %74 {offsets = [0, 0], sizes = [1, 384], strides = [1, 1]} : vector<1x512xf32> to vector<1x384xf32>
    %cst_34 = arith.constant 5.000000e-01 : f32
    %76 = vector.broadcast %cst_34 : f32 to vector<1x384xf32>
    %77 = arith.mulf %76, %75 : vector<1x384xf32>
    %78 = math.tanh %77 : vector<1x384xf32>
    %cst_35 = arith.constant 1.000000e+00 : f32
    %79 = vector.broadcast %cst_35 : f32 to vector<1x384xf32>
    %80 = arith.addf %78, %79 : vector<1x384xf32>
    %cst_36 = arith.constant 5.000000e-01 : f32
    %81 = vector.broadcast %cst_36 : f32 to vector<1x384xf32>
    %82 = arith.mulf %81, %80 : vector<1x384xf32>
    %83 = vector.extract_strided_slice %82 {offsets = [0, 0], sizes = [1, 128], strides = [1, 1]} : vector<1x384xf32> to vector<1x128xf32>
    %84 = vector.extract_strided_slice %82 {offsets = [0, 128], sizes = [1, 128], strides = [1, 1]} : vector<1x384xf32> to vector<1x128xf32>
    %85 = vector.extract_strided_slice %82 {offsets = [0, 256], sizes = [1, 128], strides = [1, 1]} : vector<1x384xf32> to vector<1x128xf32>
    %86 = vector.extract_strided_slice %74 {offsets = [0, 384], sizes = [1, 128], strides = [1, 1]} : vector<1x512xf32> to vector<1x128xf32>
    %87 = math.tanh %86 : vector<1x128xf32>
    %88 = arith.mulf %84, %61 : vector<1x128xf32>
    %89 = arith.mulf %83, %87 : vector<1x128xf32>
    %90 = arith.addf %88, %89 : vector<1x128xf32>
    %91 = math.tanh %90 : vector<1x128xf32>
    %92 = arith.mulf %85, %91 : vector<1x128xf32>
    %93 = arith.index_cast %c2_i32 : i32 to index
    %94 = memref.load %arg0[%93] : memref<12xi32, #tpu.memory_space<smem>>
    %c1_i32_37 = arith.constant 1 : i32
    %95 = arith.cmpi eq, %94, %c1_i32_37 : i32
    %96 = arith.extui %95 : i1 to i32
    %c0_i32_38 = arith.constant 0 : i32
    %97 = arith.cmpi ne, %96, %c0_i32_38 : i32
    scf.if %97 {
      %469 = arith.index_cast %c2_i32 : i32 to index
      %470 = memref.load %arg1[%469] : memref<12xi32, #tpu.memory_space<smem>>
      %471 = arith.index_cast %470 : i32 to index
      %c0_173 = arith.constant 0 : index
      %472 = vector.load %arg14[%471, %c0_173] : memref<3x128xf32, #tpu.memory_space<vmem>>, vector<1x128xf32>
      tpu.vector_store %arg14[%471, %c0_173], %92 {strides = array<i32>} : memref<3x128xf32, #tpu.memory_space<vmem>>, vector<1x128xf32>,
    } else {
    }
    %c3_i32 = arith.constant 3 : i32
    %98 = arith.index_cast %c3_i32 : i32 to index
    %c0_39 = arith.constant 0 : index
    %99 = vector.load %arg13[%98, %c0_39] : memref<12x512xf32, #tpu.memory_space<vmem>>, vector<1x512xf32>
    %100 = arith.truncf %92 : vector<1x128xf32> to vector<1x128xbf16>
    %c0_40 = arith.constant 0 : index
    %c0_41 = arith.constant 0 : index
    %101 = vector.load %arg4[%c0_40, %c0_41] : memref<128x512xbf16, #tpu.memory_space<vmem>>, vector<128x512xbf16>
    %cst_42 = arith.constant dense<0.000000e+00> : vector<1x512xf32>
    %102 = tpu.matmul %100, %101, %cst_42 {dimension_numbers = #tpu.dot_dimension_numbers<[1], [0], [0], [1], [0, 0, 1, 1], [], []>} : vector<1x128xbf16>, vector<128x512xbf16>, vector<1x512xf32> -> vector<1x512xf32>
    %103 = arith.addf %99, %102 : vector<1x512xf32>
    %104 = vector.extract_strided_slice %103 {offsets = [0, 0], sizes = [1, 384], strides = [1, 1]} : vector<1x512xf32> to vector<1x384xf32>
    %cst_43 = arith.constant 5.000000e-01 : f32
    %105 = vector.broadcast %cst_43 : f32 to vector<1x384xf32>
    %106 = arith.mulf %105, %104 : vector<1x384xf32>
    %107 = math.tanh %106 : vector<1x384xf32>
    %cst_44 = arith.constant 1.000000e+00 : f32
    %108 = vector.broadcast %cst_44 : f32 to vector<1x384xf32>
    %109 = arith.addf %107, %108 : vector<1x384xf32>
    %cst_45 = arith.constant 5.000000e-01 : f32
    %110 = vector.broadcast %cst_45 : f32 to vector<1x384xf32>
    %111 = arith.mulf %110, %109 : vector<1x384xf32>
    %112 = vector.extract_strided_slice %111 {offsets = [0, 0], sizes = [1, 128], strides = [1, 1]} : vector<1x384xf32> to vector<1x128xf32>
    %113 = vector.extract_strided_slice %111 {offsets = [0, 128], sizes = [1, 128], strides = [1, 1]} : vector<1x384xf32> to vector<1x128xf32>
    %114 = vector.extract_strided_slice %111 {offsets = [0, 256], sizes = [1, 128], strides = [1, 1]} : vector<1x384xf32> to vector<1x128xf32>
    %115 = vector.extract_strided_slice %103 {offsets = [0, 384], sizes = [1, 128], strides = [1, 1]} : vector<1x512xf32> to vector<1x128xf32>
    %116 = math.tanh %115 : vector<1x128xf32>
    %117 = arith.mulf %113, %90 : vector<1x128xf32>
    %118 = arith.mulf %112, %116 : vector<1x128xf32>
    %119 = arith.addf %117, %118 : vector<1x128xf32>
    %120 = math.tanh %119 : vector<1x128xf32>
    %121 = arith.mulf %114, %120 : vector<1x128xf32>
    %122 = arith.index_cast %c3_i32 : i32 to index
    %123 = memref.load %arg0[%122] : memref<12xi32, #tpu.memory_space<smem>>
    %c1_i32_46 = arith.constant 1 : i32
    %124 = arith.cmpi eq, %123, %c1_i32_46 : i32
    %125 = arith.extui %124 : i1 to i32
    %c0_i32_47 = arith.constant 0 : i32
    %126 = arith.cmpi ne, %125, %c0_i32_47 : i32
    scf.if %126 {
      %469 = arith.index_cast %c3_i32 : i32 to index
      %470 = memref.load %arg1[%469] : memref<12xi32, #tpu.memory_space<smem>>
      %471 = arith.index_cast %470 : i32 to index
      %c0_173 = arith.constant 0 : index
      %472 = vector.load %arg14[%471, %c0_173] : memref<3x128xf32, #tpu.memory_space<vmem>>, vector<1x128xf32>
      tpu.vector_store %arg14[%471, %c0_173], %121 {strides = array<i32>} : memref<3x128xf32, #tpu.memory_space<vmem>>, vector<1x128xf32>,
    } else {
    }
    %c4_i32 = arith.constant 4 : i32
    %127 = arith.index_cast %c4_i32 : i32 to index
    %c0_48 = arith.constant 0 : index
    %128 = vector.load %arg13[%127, %c0_48] : memref<12x512xf32, #tpu.memory_space<vmem>>, vector<1x512xf32>
    %129 = arith.truncf %121 : vector<1x128xf32> to vector<1x128xbf16>
    %c0_49 = arith.constant 0 : index
    %c0_50 = arith.constant 0 : index
    %130 = vector.load %arg4[%c0_49, %c0_50] : memref<128x512xbf16, #tpu.memory_space<vmem>>, vector<128x512xbf16>
    %cst_51 = arith.constant dense<0.000000e+00> : vector<1x512xf32>
    %131 = tpu.matmul %129, %130, %cst_51 {dimension_numbers = #tpu.dot_dimension_numbers<[1], [0], [0], [1], [0, 0, 1, 1], [], []>} : vector<1x128xbf16>, vector<128x512xbf16>, vector<1x512xf32> -> vector<1x512xf32>
    %132 = arith.addf %128, %131 : vector<1x512xf32>
    %133 = vector.extract_strided_slice %132 {offsets = [0, 0], sizes = [1, 384], strides = [1, 1]} : vector<1x512xf32> to vector<1x384xf32>
    %cst_52 = arith.constant 5.000000e-01 : f32
    %134 = vector.broadcast %cst_52 : f32 to vector<1x384xf32>
    %135 = arith.mulf %134, %133 : vector<1x384xf32>
    %136 = math.tanh %135 : vector<1x384xf32>
    %cst_53 = arith.constant 1.000000e+00 : f32
    %137 = vector.broadcast %cst_53 : f32 to vector<1x384xf32>
    %138 = arith.addf %136, %137 : vector<1x384xf32>
    %cst_54 = arith.constant 5.000000e-01 : f32
    %139 = vector.broadcast %cst_54 : f32 to vector<1x384xf32>
    %140 = arith.mulf %139, %138 : vector<1x384xf32>
    %141 = vector.extract_strided_slice %140 {offsets = [0, 0], sizes = [1, 128], strides = [1, 1]} : vector<1x384xf32> to vector<1x128xf32>
    %142 = vector.extract_strided_slice %140 {offsets = [0, 128], sizes = [1, 128], strides = [1, 1]} : vector<1x384xf32> to vector<1x128xf32>
    %143 = vector.extract_strided_slice %140 {offsets = [0, 256], sizes = [1, 128], strides = [1, 1]} : vector<1x384xf32> to vector<1x128xf32>
    %144 = vector.extract_strided_slice %132 {offsets = [0, 384], sizes = [1, 128], strides = [1, 1]} : vector<1x512xf32> to vector<1x128xf32>
    %145 = math.tanh %144 : vector<1x128xf32>
    %146 = arith.mulf %142, %119 : vector<1x128xf32>
    %147 = arith.mulf %141, %145 : vector<1x128xf32>
    %148 = arith.addf %146, %147 : vector<1x128xf32>
    %149 = math.tanh %148 : vector<1x128xf32>
    %150 = arith.mulf %143, %149 : vector<1x128xf32>
    %151 = arith.index_cast %c4_i32 : i32 to index
    %152 = memref.load %arg0[%151] : memref<12xi32, #tpu.memory_space<smem>>
    %c1_i32_55 = arith.constant 1 : i32
    %153 = arith.cmpi eq, %152, %c1_i32_55 : i32
    %154 = arith.extui %153 : i1 to i32
    %c0_i32_56 = arith.constant 0 : i32
    %155 = arith.cmpi ne, %154, %c0_i32_56 : i32
    scf.if %155 {
      %469 = arith.index_cast %c4_i32 : i32 to index
      %470 = memref.load %arg1[%469] : memref<12xi32, #tpu.memory_space<smem>>
      %471 = arith.index_cast %470 : i32 to index
      %c0_173 = arith.constant 0 : index
      %472 = vector.load %arg14[%471, %c0_173] : memref<3x128xf32, #tpu.memory_space<vmem>>, vector<1x128xf32>
      tpu.vector_store %arg14[%471, %c0_173], %150 {strides = array<i32>} : memref<3x128xf32, #tpu.memory_space<vmem>>, vector<1x128xf32>,
    } else {
    }
    %c5_i32 = arith.constant 5 : i32
    %156 = arith.index_cast %c5_i32 : i32 to index
    %c0_57 = arith.constant 0 : index
    %157 = vector.load %arg13[%156, %c0_57] : memref<12x512xf32, #tpu.memory_space<vmem>>, vector<1x512xf32>
    %158 = arith.truncf %150 : vector<1x128xf32> to vector<1x128xbf16>
    %c0_58 = arith.constant 0 : index
    %c0_59 = arith.constant 0 : index
    %159 = vector.load %arg4[%c0_58, %c0_59] : memref<128x512xbf16, #tpu.memory_space<vmem>>, vector<128x512xbf16>
    %cst_60 = arith.constant dense<0.000000e+00> : vector<1x512xf32>
    %160 = tpu.matmul %158, %159, %cst_60 {dimension_numbers = #tpu.dot_dimension_numbers<[1], [0], [0], [1], [0, 0, 1, 1], [], []>} : vector<1x128xbf16>, vector<128x512xbf16>, vector<1x512xf32> -> vector<1x512xf32>
    %161 = arith.addf %157, %160 : vector<1x512xf32>
    %162 = vector.extract_strided_slice %161 {offsets = [0, 0], sizes = [1, 384], strides = [1, 1]} : vector<1x512xf32> to vector<1x384xf32>
    %cst_61 = arith.constant 5.000000e-01 : f32
    %163 = vector.broadcast %cst_61 : f32 to vector<1x384xf32>
    %164 = arith.mulf %163, %162 : vector<1x384xf32>
    %165 = math.tanh %164 : vector<1x384xf32>
    %cst_62 = arith.constant 1.000000e+00 : f32
    %166 = vector.broadcast %cst_62 : f32 to vector<1x384xf32>
    %167 = arith.addf %165, %166 : vector<1x384xf32>
    %cst_63 = arith.constant 5.000000e-01 : f32
    %168 = vector.broadcast %cst_63 : f32 to vector<1x384xf32>
    %169 = arith.mulf %168, %167 : vector<1x384xf32>
    %170 = vector.extract_strided_slice %169 {offsets = [0, 0], sizes = [1, 128], strides = [1, 1]} : vector<1x384xf32> to vector<1x128xf32>
    %171 = vector.extract_strided_slice %169 {offsets = [0, 128], sizes = [1, 128], strides = [1, 1]} : vector<1x384xf32> to vector<1x128xf32>
    %172 = vector.extract_strided_slice %169 {offsets = [0, 256], sizes = [1, 128], strides = [1, 1]} : vector<1x384xf32> to vector<1x128xf32>
    %173 = vector.extract_strided_slice %161 {offsets = [0, 384], sizes = [1, 128], strides = [1, 1]} : vector<1x512xf32> to vector<1x128xf32>
    %174 = math.tanh %173 : vector<1x128xf32>
    %175 = arith.mulf %171, %148 : vector<1x128xf32>
    %176 = arith.mulf %170, %174 : vector<1x128xf32>
    %177 = arith.addf %175, %176 : vector<1x128xf32>
    %178 = math.tanh %177 : vector<1x128xf32>
    %179 = arith.mulf %172, %178 : vector<1x128xf32>
    %180 = arith.index_cast %c5_i32 : i32 to index
    %181 = memref.load %arg0[%180] : memref<12xi32, #tpu.memory_space<smem>>
    %c1_i32_64 = arith.constant 1 : i32
    %182 = arith.cmpi eq, %181, %c1_i32_64 : i32
    %183 = arith.extui %182 : i1 to i32
    %c0_i32_65 = arith.constant 0 : i32
    %184 = arith.cmpi ne, %183, %c0_i32_65 : i32
    scf.if %184 {
      %469 = arith.index_cast %c5_i32 : i32 to index
      %470 = memref.load %arg1[%469] : memref<12xi32, #tpu.memory_space<smem>>
      %471 = arith.index_cast %470 : i32 to index
      %c0_173 = arith.constant 0 : index
      %472 = vector.load %arg14[%471, %c0_173] : memref<3x128xf32, #tpu.memory_space<vmem>>, vector<1x128xf32>
      tpu.vector_store %arg14[%471, %c0_173], %179 {strides = array<i32>} : memref<3x128xf32, #tpu.memory_space<vmem>>, vector<1x128xf32>,
    } else {
    }
    %c6_i32 = arith.constant 6 : i32
    %185 = arith.index_cast %c6_i32 : i32 to index
    %c0_66 = arith.constant 0 : index
    %186 = vector.load %arg13[%185, %c0_66] : memref<12x512xf32, #tpu.memory_space<vmem>>, vector<1x512xf32>
    %187 = arith.truncf %179 : vector<1x128xf32> to vector<1x128xbf16>
    %c0_67 = arith.constant 0 : index
    %c0_68 = arith.constant 0 : index
    %188 = vector.load %arg4[%c0_67, %c0_68] : memref<128x512xbf16, #tpu.memory_space<vmem>>, vector<128x512xbf16>
    %cst_69 = arith.constant dense<0.000000e+00> : vector<1x512xf32>
    %189 = tpu.matmul %187, %188, %cst_69 {dimension_numbers = #tpu.dot_dimension_numbers<[1], [0], [0], [1], [0, 0, 1, 1], [], []>} : vector<1x128xbf16>, vector<128x512xbf16>, vector<1x512xf32> -> vector<1x512xf32>
    %190 = arith.addf %186, %189 : vector<1x512xf32>
    %191 = vector.extract_strided_slice %190 {offsets = [0, 0], sizes = [1, 384], strides = [1, 1]} : vector<1x512xf32> to vector<1x384xf32>
    %cst_70 = arith.constant 5.000000e-01 : f32
    %192 = vector.broadcast %cst_70 : f32 to vector<1x384xf32>
    %193 = arith.mulf %192, %191 : vector<1x384xf32>
    %194 = math.tanh %193 : vector<1x384xf32>
    %cst_71 = arith.constant 1.000000e+00 : f32
    %195 = vector.broadcast %cst_71 : f32 to vector<1x384xf32>
    %196 = arith.addf %194, %195 : vector<1x384xf32>
    %cst_72 = arith.constant 5.000000e-01 : f32
    %197 = vector.broadcast %cst_72 : f32 to vector<1x384xf32>
    %198 = arith.mulf %197, %196 : vector<1x384xf32>
    %199 = vector.extract_strided_slice %198 {offsets = [0, 0], sizes = [1, 128], strides = [1, 1]} : vector<1x384xf32> to vector<1x128xf32>
    %200 = vector.extract_strided_slice %198 {offsets = [0, 128], sizes = [1, 128], strides = [1, 1]} : vector<1x384xf32> to vector<1x128xf32>
    %201 = vector.extract_strided_slice %198 {offsets = [0, 256], sizes = [1, 128], strides = [1, 1]} : vector<1x384xf32> to vector<1x128xf32>
    %202 = vector.extract_strided_slice %190 {offsets = [0, 384], sizes = [1, 128], strides = [1, 1]} : vector<1x512xf32> to vector<1x128xf32>
    %203 = math.tanh %202 : vector<1x128xf32>
    %204 = arith.mulf %200, %177 : vector<1x128xf32>
    %205 = arith.mulf %199, %203 : vector<1x128xf32>
    %206 = arith.addf %204, %205 : vector<1x128xf32>
    %207 = math.tanh %206 : vector<1x128xf32>
    %208 = arith.mulf %201, %207 : vector<1x128xf32>
    %209 = arith.index_cast %c6_i32 : i32 to index
    %210 = memref.load %arg0[%209] : memref<12xi32, #tpu.memory_space<smem>>
    %c1_i32_73 = arith.constant 1 : i32
    %211 = arith.cmpi eq, %210, %c1_i32_73 : i32
    %212 = arith.extui %211 : i1 to i32
    %c0_i32_74 = arith.constant 0 : i32
    %213 = arith.cmpi ne, %212, %c0_i32_74 : i32
    scf.if %213 {
      %469 = arith.index_cast %c6_i32 : i32 to index
      %470 = memref.load %arg1[%469] : memref<12xi32, #tpu.memory_space<smem>>
      %471 = arith.index_cast %470 : i32 to index
      %c0_173 = arith.constant 0 : index
      %472 = vector.load %arg14[%471, %c0_173] : memref<3x128xf32, #tpu.memory_space<vmem>>, vector<1x128xf32>
      tpu.vector_store %arg14[%471, %c0_173], %208 {strides = array<i32>} : memref<3x128xf32, #tpu.memory_space<vmem>>, vector<1x128xf32>,
    } else {
    }
    %c7_i32 = arith.constant 7 : i32
    %214 = arith.index_cast %c7_i32 : i32 to index
    %c0_75 = arith.constant 0 : index
    %215 = vector.load %arg13[%214, %c0_75] : memref<12x512xf32, #tpu.memory_space<vmem>>, vector<1x512xf32>
    %216 = arith.truncf %208 : vector<1x128xf32> to vector<1x128xbf16>
    %c0_76 = arith.constant 0 : index
    %c0_77 = arith.constant 0 : index
    %217 = vector.load %arg4[%c0_76, %c0_77] : memref<128x512xbf16, #tpu.memory_space<vmem>>, vector<128x512xbf16>
    %cst_78 = arith.constant dense<0.000000e+00> : vector<1x512xf32>
    %218 = tpu.matmul %216, %217, %cst_78 {dimension_numbers = #tpu.dot_dimension_numbers<[1], [0], [0], [1], [0, 0, 1, 1], [], []>} : vector<1x128xbf16>, vector<128x512xbf16>, vector<1x512xf32> -> vector<1x512xf32>
    %219 = arith.addf %215, %218 : vector<1x512xf32>
    %220 = vector.extract_strided_slice %219 {offsets = [0, 0], sizes = [1, 384], strides = [1, 1]} : vector<1x512xf32> to vector<1x384xf32>
    %cst_79 = arith.constant 5.000000e-01 : f32
    %221 = vector.broadcast %cst_79 : f32 to vector<1x384xf32>
    %222 = arith.mulf %221, %220 : vector<1x384xf32>
    %223 = math.tanh %222 : vector<1x384xf32>
    %cst_80 = arith.constant 1.000000e+00 : f32
    %224 = vector.broadcast %cst_80 : f32 to vector<1x384xf32>
    %225 = arith.addf %223, %224 : vector<1x384xf32>
    %cst_81 = arith.constant 5.000000e-01 : f32
    %226 = vector.broadcast %cst_81 : f32 to vector<1x384xf32>
    %227 = arith.mulf %226, %225 : vector<1x384xf32>
    %228 = vector.extract_strided_slice %227 {offsets = [0, 0], sizes = [1, 128], strides = [1, 1]} : vector<1x384xf32> to vector<1x128xf32>
    %229 = vector.extract_strided_slice %227 {offsets = [0, 128], sizes = [1, 128], strides = [1, 1]} : vector<1x384xf32> to vector<1x128xf32>
    %230 = vector.extract_strided_slice %227 {offsets = [0, 256], sizes = [1, 128], strides = [1, 1]} : vector<1x384xf32> to vector<1x128xf32>
    %231 = vector.extract_strided_slice %219 {offsets = [0, 384], sizes = [1, 128], strides = [1, 1]} : vector<1x512xf32> to vector<1x128xf32>
    %232 = math.tanh %231 : vector<1x128xf32>
    %233 = arith.mulf %229, %206 : vector<1x128xf32>
    %234 = arith.mulf %228, %232 : vector<1x128xf32>
    %235 = arith.addf %233, %234 : vector<1x128xf32>
    %236 = math.tanh %235 : vector<1x128xf32>
    %237 = arith.mulf %230, %236 : vector<1x128xf32>
    %238 = arith.index_cast %c7_i32 : i32 to index
    %239 = memref.load %arg0[%238] : memref<12xi32, #tpu.memory_space<smem>>
    %c1_i32_82 = arith.constant 1 : i32
    %240 = arith.cmpi eq, %239, %c1_i32_82 : i32
    %241 = arith.extui %240 : i1 to i32
    %c0_i32_83 = arith.constant 0 : i32
    %242 = arith.cmpi ne, %241, %c0_i32_83 : i32
    scf.if %242 {
      %469 = arith.index_cast %c7_i32 : i32 to index
      %470 = memref.load %arg1[%469] : memref<12xi32, #tpu.memory_space<smem>>
      %471 = arith.index_cast %470 : i32 to index
      %c0_173 = arith.constant 0 : index
      %472 = vector.load %arg14[%471, %c0_173] : memref<3x128xf32, #tpu.memory_space<vmem>>, vector<1x128xf32>
      tpu.vector_store %arg14[%471, %c0_173], %237 {strides = array<i32>} : memref<3x128xf32, #tpu.memory_space<vmem>>, vector<1x128xf32>,
    } else {
    }
    %c8_i32 = arith.constant 8 : i32
    %243 = arith.index_cast %c8_i32 : i32 to index
    %c0_84 = arith.constant 0 : index
    %244 = vector.load %arg13[%243, %c0_84] : memref<12x512xf32, #tpu.memory_space<vmem>>, vector<1x512xf32>
    %245 = arith.truncf %237 : vector<1x128xf32> to vector<1x128xbf16>
    %c0_85 = arith.constant 0 : index
    %c0_86 = arith.constant 0 : index
    %246 = vector.load %arg4[%c0_85, %c0_86] : memref<128x512xbf16, #tpu.memory_space<vmem>>, vector<128x512xbf16>
    %cst_87 = arith.constant dense<0.000000e+00> : vector<1x512xf32>
    %247 = tpu.matmul %245, %246, %cst_87 {dimension_numbers = #tpu.dot_dimension_numbers<[1], [0], [0], [1], [0, 0, 1, 1], [], []>} : vector<1x128xbf16>, vector<128x512xbf16>, vector<1x512xf32> -> vector<1x512xf32>
    %248 = arith.addf %244, %247 : vector<1x512xf32>
    %249 = vector.extract_strided_slice %248 {offsets = [0, 0], sizes = [1, 384], strides = [1, 1]} : vector<1x512xf32> to vector<1x384xf32>
    %cst_88 = arith.constant 5.000000e-01 : f32
    %250 = vector.broadcast %cst_88 : f32 to vector<1x384xf32>
    %251 = arith.mulf %250, %249 : vector<1x384xf32>
    %252 = math.tanh %251 : vector<1x384xf32>
    %cst_89 = arith.constant 1.000000e+00 : f32
    %253 = vector.broadcast %cst_89 : f32 to vector<1x384xf32>
    %254 = arith.addf %252, %253 : vector<1x384xf32>
    %cst_90 = arith.constant 5.000000e-01 : f32
    %255 = vector.broadcast %cst_90 : f32 to vector<1x384xf32>
    %256 = arith.mulf %255, %254 : vector<1x384xf32>
    %257 = vector.extract_strided_slice %256 {offsets = [0, 0], sizes = [1, 128], strides = [1, 1]} : vector<1x384xf32> to vector<1x128xf32>
    %258 = vector.extract_strided_slice %256 {offsets = [0, 128], sizes = [1, 128], strides = [1, 1]} : vector<1x384xf32> to vector<1x128xf32>
    %259 = vector.extract_strided_slice %256 {offsets = [0, 256], sizes = [1, 128], strides = [1, 1]} : vector<1x384xf32> to vector<1x128xf32>
    %260 = vector.extract_strided_slice %248 {offsets = [0, 384], sizes = [1, 128], strides = [1, 1]} : vector<1x512xf32> to vector<1x128xf32>
    %261 = math.tanh %260 : vector<1x128xf32>
    %262 = arith.mulf %258, %235 : vector<1x128xf32>
    %263 = arith.mulf %257, %261 : vector<1x128xf32>
    %264 = arith.addf %262, %263 : vector<1x128xf32>
    %265 = math.tanh %264 : vector<1x128xf32>
    %266 = arith.mulf %259, %265 : vector<1x128xf32>
    %267 = arith.index_cast %c8_i32 : i32 to index
    %268 = memref.load %arg0[%267] : memref<12xi32, #tpu.memory_space<smem>>
    %c1_i32_91 = arith.constant 1 : i32
    %269 = arith.cmpi eq, %268, %c1_i32_91 : i32
    %270 = arith.extui %269 : i1 to i32
    %c0_i32_92 = arith.constant 0 : i32
    %271 = arith.cmpi ne, %270, %c0_i32_92 : i32
    scf.if %271 {
      %469 = arith.index_cast %c8_i32 : i32 to index
      %470 = memref.load %arg1[%469] : memref<12xi32, #tpu.memory_space<smem>>
      %471 = arith.index_cast %470 : i32 to index
      %c0_173 = arith.constant 0 : index
      %472 = vector.load %arg14[%471, %c0_173] : memref<3x128xf32, #tpu.memory_space<vmem>>, vector<1x128xf32>
      tpu.vector_store %arg14[%471, %c0_173], %266 {strides = array<i32>} : memref<3x128xf32, #tpu.memory_space<vmem>>, vector<1x128xf32>,
    } else {
    }
    %c9_i32 = arith.constant 9 : i32
    %272 = arith.index_cast %c9_i32 : i32 to index
    %c0_93 = arith.constant 0 : index
    %273 = vector.load %arg13[%272, %c0_93] : memref<12x512xf32, #tpu.memory_space<vmem>>, vector<1x512xf32>
    %274 = arith.truncf %266 : vector<1x128xf32> to vector<1x128xbf16>
    %c0_94 = arith.constant 0 : index
    %c0_95 = arith.constant 0 : index
    %275 = vector.load %arg4[%c0_94, %c0_95] : memref<128x512xbf16, #tpu.memory_space<vmem>>, vector<128x512xbf16>
    %cst_96 = arith.constant dense<0.000000e+00> : vector<1x512xf32>
    %276 = tpu.matmul %274, %275, %cst_96 {dimension_numbers = #tpu.dot_dimension_numbers<[1], [0], [0], [1], [0, 0, 1, 1], [], []>} : vector<1x128xbf16>, vector<128x512xbf16>, vector<1x512xf32> -> vector<1x512xf32>
    %277 = arith.addf %273, %276 : vector<1x512xf32>
    %278 = vector.extract_strided_slice %277 {offsets = [0, 0], sizes = [1, 384], strides = [1, 1]} : vector<1x512xf32> to vector<1x384xf32>
    %cst_97 = arith.constant 5.000000e-01 : f32
    %279 = vector.broadcast %cst_97 : f32 to vector<1x384xf32>
    %280 = arith.mulf %279, %278 : vector<1x384xf32>
    %281 = math.tanh %280 : vector<1x384xf32>
    %cst_98 = arith.constant 1.000000e+00 : f32
    %282 = vector.broadcast %cst_98 : f32 to vector<1x384xf32>
    %283 = arith.addf %281, %282 : vector<1x384xf32>
    %cst_99 = arith.constant 5.000000e-01 : f32
    %284 = vector.broadcast %cst_99 : f32 to vector<1x384xf32>
    %285 = arith.mulf %284, %283 : vector<1x384xf32>
    %286 = vector.extract_strided_slice %285 {offsets = [0, 0], sizes = [1, 128], strides = [1, 1]} : vector<1x384xf32> to vector<1x128xf32>
    %287 = vector.extract_strided_slice %285 {offsets = [0, 128], sizes = [1, 128], strides = [1, 1]} : vector<1x384xf32> to vector<1x128xf32>
    %288 = vector.extract_strided_slice %285 {offsets = [0, 256], sizes = [1, 128], strides = [1, 1]} : vector<1x384xf32> to vector<1x128xf32>
    %289 = vector.extract_strided_slice %277 {offsets = [0, 384], sizes = [1, 128], strides = [1, 1]} : vector<1x512xf32> to vector<1x128xf32>
    %290 = math.tanh %289 : vector<1x128xf32>
    %291 = arith.mulf %287, %264 : vector<1x128xf32>
    %292 = arith.mulf %286, %290 : vector<1x128xf32>
    %293 = arith.addf %291, %292 : vector<1x128xf32>
    %294 = math.tanh %293 : vector<1x128xf32>
    %295 = arith.mulf %288, %294 : vector<1x128xf32>
    %296 = arith.index_cast %c9_i32 : i32 to index
    %297 = memref.load %arg0[%296] : memref<12xi32, #tpu.memory_space<smem>>
    %c1_i32_100 = arith.constant 1 : i32
    %298 = arith.cmpi eq, %297, %c1_i32_100 : i32
    %299 = arith.extui %298 : i1 to i32
    %c0_i32_101 = arith.constant 0 : i32
    %300 = arith.cmpi ne, %299, %c0_i32_101 : i32
    scf.if %300 {
      %469 = arith.index_cast %c9_i32 : i32 to index
      %470 = memref.load %arg1[%469] : memref<12xi32, #tpu.memory_space<smem>>
      %471 = arith.index_cast %470 : i32 to index
      %c0_173 = arith.constant 0 : index
      %472 = vector.load %arg14[%471, %c0_173] : memref<3x128xf32, #tpu.memory_space<vmem>>, vector<1x128xf32>
      tpu.vector_store %arg14[%471, %c0_173], %295 {strides = array<i32>} : memref<3x128xf32, #tpu.memory_space<vmem>>, vector<1x128xf32>,
    } else {
    }
    %c10_i32 = arith.constant 10 : i32
    %301 = arith.index_cast %c10_i32 : i32 to index
    %c0_102 = arith.constant 0 : index
    %302 = vector.load %arg13[%301, %c0_102] : memref<12x512xf32, #tpu.memory_space<vmem>>, vector<1x512xf32>
    %303 = arith.truncf %295 : vector<1x128xf32> to vector<1x128xbf16>
    %c0_103 = arith.constant 0 : index
    %c0_104 = arith.constant 0 : index
    %304 = vector.load %arg4[%c0_103, %c0_104] : memref<128x512xbf16, #tpu.memory_space<vmem>>, vector<128x512xbf16>
    %cst_105 = arith.constant dense<0.000000e+00> : vector<1x512xf32>
    %305 = tpu.matmul %303, %304, %cst_105 {dimension_numbers = #tpu.dot_dimension_numbers<[1], [0], [0], [1], [0, 0, 1, 1], [], []>} : vector<1x128xbf16>, vector<128x512xbf16>, vector<1x512xf32> -> vector<1x512xf32>
    %306 = arith.addf %302, %305 : vector<1x512xf32>
    %307 = vector.extract_strided_slice %306 {offsets = [0, 0], sizes = [1, 384], strides = [1, 1]} : vector<1x512xf32> to vector<1x384xf32>
    %cst_106 = arith.constant 5.000000e-01 : f32
    %308 = vector.broadcast %cst_106 : f32 to vector<1x384xf32>
    %309 = arith.mulf %308, %307 : vector<1x384xf32>
    %310 = math.tanh %309 : vector<1x384xf32>
    %cst_107 = arith.constant 1.000000e+00 : f32
    %311 = vector.broadcast %cst_107 : f32 to vector<1x384xf32>
    %312 = arith.addf %310, %311 : vector<1x384xf32>
    %cst_108 = arith.constant 5.000000e-01 : f32
    %313 = vector.broadcast %cst_108 : f32 to vector<1x384xf32>
    %314 = arith.mulf %313, %312 : vector<1x384xf32>
    %315 = vector.extract_strided_slice %314 {offsets = [0, 0], sizes = [1, 128], strides = [1, 1]} : vector<1x384xf32> to vector<1x128xf32>
    %316 = vector.extract_strided_slice %314 {offsets = [0, 128], sizes = [1, 128], strides = [1, 1]} : vector<1x384xf32> to vector<1x128xf32>
    %317 = vector.extract_strided_slice %314 {offsets = [0, 256], sizes = [1, 128], strides = [1, 1]} : vector<1x384xf32> to vector<1x128xf32>
    %318 = vector.extract_strided_slice %306 {offsets = [0, 384], sizes = [1, 128], strides = [1, 1]} : vector<1x512xf32> to vector<1x128xf32>
    %319 = math.tanh %318 : vector<1x128xf32>
    %320 = arith.mulf %316, %293 : vector<1x128xf32>
    %321 = arith.mulf %315, %319 : vector<1x128xf32>
    %322 = arith.addf %320, %321 : vector<1x128xf32>
    %323 = math.tanh %322 : vector<1x128xf32>
    %324 = arith.mulf %317, %323 : vector<1x128xf32>
    %325 = arith.index_cast %c10_i32 : i32 to index
    %326 = memref.load %arg0[%325] : memref<12xi32, #tpu.memory_space<smem>>
    %c1_i32_109 = arith.constant 1 : i32
    %327 = arith.cmpi eq, %326, %c1_i32_109 : i32
    %328 = arith.extui %327 : i1 to i32
    %c0_i32_110 = arith.constant 0 : i32
    %329 = arith.cmpi ne, %328, %c0_i32_110 : i32
    scf.if %329 {
      %469 = arith.index_cast %c10_i32 : i32 to index
      %470 = memref.load %arg1[%469] : memref<12xi32, #tpu.memory_space<smem>>
      %471 = arith.index_cast %470 : i32 to index
      %c0_173 = arith.constant 0 : index
      %472 = vector.load %arg14[%471, %c0_173] : memref<3x128xf32, #tpu.memory_space<vmem>>, vector<1x128xf32>
      tpu.vector_store %arg14[%471, %c0_173], %324 {strides = array<i32>} : memref<3x128xf32, #tpu.memory_space<vmem>>, vector<1x128xf32>,
    } else {
    }
    %c11_i32 = arith.constant 11 : i32
    %330 = arith.index_cast %c11_i32 : i32 to index
    %c0_111 = arith.constant 0 : index
    %331 = vector.load %arg13[%330, %c0_111] : memref<12x512xf32, #tpu.memory_space<vmem>>, vector<1x512xf32>
    %332 = arith.truncf %324 : vector<1x128xf32> to vector<1x128xbf16>
    %c0_112 = arith.constant 0 : index
    %c0_113 = arith.constant 0 : index
    %333 = vector.load %arg4[%c0_112, %c0_113] : memref<128x512xbf16, #tpu.memory_space<vmem>>, vector<128x512xbf16>
    %cst_114 = arith.constant dense<0.000000e+00> : vector<1x512xf32>
    %334 = tpu.matmul %332, %333, %cst_114 {dimension_numbers = #tpu.dot_dimension_numbers<[1], [0], [0], [1], [0, 0, 1, 1], [], []>} : vector<1x128xbf16>, vector<128x512xbf16>, vector<1x512xf32> -> vector<1x512xf32>
    %335 = arith.addf %331, %334 : vector<1x512xf32>
    %336 = vector.extract_strided_slice %335 {offsets = [0, 0], sizes = [1, 384], strides = [1, 1]} : vector<1x512xf32> to vector<1x384xf32>
    %cst_115 = arith.constant 5.000000e-01 : f32
    %337 = vector.broadcast %cst_115 : f32 to vector<1x384xf32>
    %338 = arith.mulf %337, %336 : vector<1x384xf32>
    %339 = math.tanh %338 : vector<1x384xf32>
    %cst_116 = arith.constant 1.000000e+00 : f32
    %340 = vector.broadcast %cst_116 : f32 to vector<1x384xf32>
    %341 = arith.addf %339, %340 : vector<1x384xf32>
    %cst_117 = arith.constant 5.000000e-01 : f32
    %342 = vector.broadcast %cst_117 : f32 to vector<1x384xf32>
    %343 = arith.mulf %342, %341 : vector<1x384xf32>
    %344 = vector.extract_strided_slice %343 {offsets = [0, 0], sizes = [1, 128], strides = [1, 1]} : vector<1x384xf32> to vector<1x128xf32>
    %345 = vector.extract_strided_slice %343 {offsets = [0, 128], sizes = [1, 128], strides = [1, 1]} : vector<1x384xf32> to vector<1x128xf32>
    %346 = vector.extract_strided_slice %343 {offsets = [0, 256], sizes = [1, 128], strides = [1, 1]} : vector<1x384xf32> to vector<1x128xf32>
    %347 = vector.extract_strided_slice %335 {offsets = [0, 384], sizes = [1, 128], strides = [1, 1]} : vector<1x512xf32> to vector<1x128xf32>
    %348 = math.tanh %347 : vector<1x128xf32>
    %349 = arith.mulf %345, %322 : vector<1x128xf32>
    %350 = arith.mulf %344, %348 : vector<1x128xf32>
    %351 = arith.addf %349, %350 : vector<1x128xf32>
    %352 = math.tanh %351 : vector<1x128xf32>
    %353 = arith.mulf %346, %352 : vector<1x128xf32>
    %354 = arith.index_cast %c11_i32 : i32 to index
    %355 = memref.load %arg0[%354] : memref<12xi32, #tpu.memory_space<smem>>
    %c1_i32_118 = arith.constant 1 : i32
    %356 = arith.cmpi eq, %355, %c1_i32_118 : i32
    %357 = arith.extui %356 : i1 to i32
    %c0_i32_119 = arith.constant 0 : i32
    %358 = arith.cmpi ne, %357, %c0_i32_119 : i32
    scf.if %358 {
      %469 = arith.index_cast %c11_i32 : i32 to index
      %470 = memref.load %arg1[%469] : memref<12xi32, #tpu.memory_space<smem>>
      %471 = arith.index_cast %470 : i32 to index
      %c0_173 = arith.constant 0 : index
      %472 = vector.load %arg14[%471, %c0_173] : memref<3x128xf32, #tpu.memory_space<vmem>>, vector<1x128xf32>
      tpu.vector_store %arg14[%471, %c0_173], %353 {strides = array<i32>} : memref<3x128xf32, #tpu.memory_space<vmem>>, vector<1x128xf32>,
    } else {
    }
    %c12_i32 = arith.constant 12 : i32
    %c0_120 = arith.constant 0 : index
    %c0_121 = arith.constant 0 : index
    %359 = vector.load %arg14[%c0_120, %c0_121] : memref<3x128xf32, #tpu.memory_space<vmem>>, vector<3x128xf32>
    %360 = arith.truncf %359 : vector<3x128xf32> to vector<3x128xbf16>
    %c0_122 = arith.constant 0 : index
    %c0_123 = arith.constant 0 : index
    %361 = vector.load %arg6[%c0_122, %c0_123] : memref<128x768xbf16, #tpu.memory_space<vmem>>, vector<128x768xbf16>
    %cst_124 = arith.constant dense<0.000000e+00> : vector<3x768xf32>
    %362 = tpu.matmul %360, %361, %cst_124 {dimension_numbers = #tpu.dot_dimension_numbers<[1], [0], [0], [1], [0, 0, 1, 1], [], []>} : vector<3x128xbf16>, vector<128x768xbf16>, vector<3x768xf32> -> vector<3x768xf32>
    %c0_125 = arith.constant 0 : index
    %c0_126 = arith.constant 0 : index
    %363 = vector.load %arg8[%c0_125, %c0_126] : memref<1x768xf32, #tpu.memory_space<vmem>>, vector<1x768xf32>
    %364 = vector.broadcast %363 : vector<1x768xf32> to vector<3x768xf32>
    %365 = arith.addf %362, %364 : vector<3x768xf32>
    %c0_127 = arith.constant 0 : index
    %c0_128 = arith.constant 0 : index
    %366 = vector.load %arg15[%c0_127, %c0_128] : memref<3x768xf32, #tpu.memory_space<vmem>>, vector<3x768xf32>
    tpu.vector_store %arg15[%c0_127, %c0_128], %365 {strides = array<i32>} : memref<3x768xf32, #tpu.memory_space<vmem>>, vector<3x768xf32>,
    %cst_129 = arith.constant 0.000000e+00 : f32
    %367 = vector.broadcast %cst_129 : f32 to vector<1x256xf32>
    %c0_i32_130 = arith.constant 0 : i32
    %368 = arith.index_cast %c0_i32_130 : i32 to index
    %c0_131 = arith.constant 0 : index
    %369 = vector.load %arg15[%368, %c0_131] : memref<3x768xf32, #tpu.memory_space<vmem>>, vector<1x768xf32>
    %370 = arith.truncf %367 : vector<1x256xf32> to vector<1x256xbf16>
    %c0_132 = arith.constant 0 : index
    %c0_133 = arith.constant 0 : index
    %371 = vector.load %arg7[%c0_132, %c0_133] : memref<256x768xbf16, #tpu.memory_space<vmem>>, vector<256x768xbf16>
    %cst_134 = arith.constant dense<0.000000e+00> : vector<1x768xf32>
    %372 = tpu.matmul %370, %371, %cst_134 {dimension_numbers = #tpu.dot_dimension_numbers<[1], [0], [0], [1], [0, 0, 1, 1], [], []>} : vector<1x256xbf16>, vector<256x768xbf16>, vector<1x768xf32> -> vector<1x768xf32>
    %c0_135 = arith.constant 0 : index
    %c0_136 = arith.constant 0 : index
    %373 = vector.load %arg9[%c0_135, %c0_136] : memref<1x768xf32, #tpu.memory_space<vmem>>, vector<1x768xf32>
    %374 = arith.addf %372, %373 : vector<1x768xf32>
    %375 = vector.extract_strided_slice %369 {offsets = [0, 0], sizes = [1, 512], strides = [1, 1]} : vector<1x768xf32> to vector<1x512xf32>
    %376 = vector.extract_strided_slice %374 {offsets = [0, 0], sizes = [1, 512], strides = [1, 1]} : vector<1x768xf32> to vector<1x512xf32>
    %377 = arith.addf %375, %376 : vector<1x512xf32>
    %cst_137 = arith.constant 5.000000e-01 : f32
    %378 = vector.broadcast %cst_137 : f32 to vector<1x512xf32>
    %379 = arith.mulf %378, %377 : vector<1x512xf32>
    %380 = math.tanh %379 : vector<1x512xf32>
    %cst_138 = arith.constant 1.000000e+00 : f32
    %381 = vector.broadcast %cst_138 : f32 to vector<1x512xf32>
    %382 = arith.addf %380, %381 : vector<1x512xf32>
    %cst_139 = arith.constant 5.000000e-01 : f32
    %383 = vector.broadcast %cst_139 : f32 to vector<1x512xf32>
    %384 = arith.mulf %383, %382 : vector<1x512xf32>
    %385 = vector.extract_strided_slice %384 {offsets = [0, 0], sizes = [1, 256], strides = [1, 1]} : vector<1x512xf32> to vector<1x256xf32>
    %386 = vector.extract_strided_slice %384 {offsets = [0, 256], sizes = [1, 256], strides = [1, 1]} : vector<1x512xf32> to vector<1x256xf32>
    %387 = vector.extract_strided_slice %369 {offsets = [0, 512], sizes = [1, 256], strides = [1, 1]} : vector<1x768xf32> to vector<1x256xf32>
    %388 = vector.extract_strided_slice %374 {offsets = [0, 512], sizes = [1, 256], strides = [1, 1]} : vector<1x768xf32> to vector<1x256xf32>
    %389 = arith.mulf %385, %388 : vector<1x256xf32>
    %390 = arith.addf %387, %389 : vector<1x256xf32>
    %391 = math.tanh %390 : vector<1x256xf32>
    %cst_140 = arith.constant 1.000000e+00 : f32
    %392 = vector.broadcast %cst_140 : f32 to vector<1x256xf32>
    %393 = arith.subf %392, %386 : vector<1x256xf32>
    %394 = arith.mulf %393, %391 : vector<1x256xf32>
    %395 = arith.mulf %386, %367 : vector<1x256xf32>
    %396 = arith.addf %394, %395 : vector<1x256xf32>
    %c1_i32_141 = arith.constant 1 : i32
    %397 = arith.index_cast %c1_i32_141 : i32 to index
    %c0_142 = arith.constant 0 : index
    %398 = vector.load %arg15[%397, %c0_142] : memref<3x768xf32, #tpu.memory_space<vmem>>, vector<1x768xf32>
    %399 = arith.truncf %396 : vector<1x256xf32> to vector<1x256xbf16>
    %c0_143 = arith.constant 0 : index
    %c0_144 = arith.constant 0 : index
    %400 = vector.load %arg7[%c0_143, %c0_144] : memref<256x768xbf16, #tpu.memory_space<vmem>>, vector<256x768xbf16>
    %cst_145 = arith.constant dense<0.000000e+00> : vector<1x768xf32>
    %401 = tpu.matmul %399, %400, %cst_145 {dimension_numbers = #tpu.dot_dimension_numbers<[1], [0], [0], [1], [0, 0, 1, 1], [], []>} : vector<1x256xbf16>, vector<256x768xbf16>, vector<1x768xf32> -> vector<1x768xf32>
    %c0_146 = arith.constant 0 : index
    %c0_147 = arith.constant 0 : index
    %402 = vector.load %arg9[%c0_146, %c0_147] : memref<1x768xf32, #tpu.memory_space<vmem>>, vector<1x768xf32>
    %403 = arith.addf %401, %402 : vector<1x768xf32>
    %404 = vector.extract_strided_slice %398 {offsets = [0, 0], sizes = [1, 512], strides = [1, 1]} : vector<1x768xf32> to vector<1x512xf32>
    %405 = vector.extract_strided_slice %403 {offsets = [0, 0], sizes = [1, 512], strides = [1, 1]} : vector<1x768xf32> to vector<1x512xf32>
    %406 = arith.addf %404, %405 : vector<1x512xf32>
    %cst_148 = arith.constant 5.000000e-01 : f32
    %407 = vector.broadcast %cst_148 : f32 to vector<1x512xf32>
    %408 = arith.mulf %407, %406 : vector<1x512xf32>
    %409 = math.tanh %408 : vector<1x512xf32>
    %cst_149 = arith.constant 1.000000e+00 : f32
    %410 = vector.broadcast %cst_149 : f32 to vector<1x512xf32>
    %411 = arith.addf %409, %410 : vector<1x512xf32>
    %cst_150 = arith.constant 5.000000e-01 : f32
    %412 = vector.broadcast %cst_150 : f32 to vector<1x512xf32>
    %413 = arith.mulf %412, %411 : vector<1x512xf32>
    %414 = vector.extract_strided_slice %413 {offsets = [0, 0], sizes = [1, 256], strides = [1, 1]} : vector<1x512xf32> to vector<1x256xf32>
    %415 = vector.extract_strided_slice %413 {offsets = [0, 256], sizes = [1, 256], strides = [1, 1]} : vector<1x512xf32> to vector<1x256xf32>
    %416 = vector.extract_strided_slice %398 {offsets = [0, 512], sizes = [1, 256], strides = [1, 1]} : vector<1x768xf32> to vector<1x256xf32>
    %417 = vector.extract_strided_slice %403 {offsets = [0, 512], sizes = [1, 256], strides = [1, 1]} : vector<1x768xf32> to vector<1x256xf32>
    %418 = arith.mulf %414, %417 : vector<1x256xf32>
    %419 = arith.addf %416, %418 : vector<1x256xf32>
    %420 = math.tanh %419 : vector<1x256xf32>
    %cst_151 = arith.constant 1.000000e+00 : f32
    %421 = vector.broadcast %cst_151 : f32 to vector<1x256xf32>
    %422 = arith.subf %421, %415 : vector<1x256xf32>
    %423 = arith.mulf %422, %420 : vector<1x256xf32>
    %424 = arith.mulf %415, %396 : vector<1x256xf32>
    %425 = arith.addf %423, %424 : vector<1x256xf32>
    %c2_i32_152 = arith.constant 2 : i32
    %426 = arith.index_cast %c2_i32_152 : i32 to index
    %c0_153 = arith.constant 0 : index
    %427 = vector.load %arg15[%426, %c0_153] : memref<3x768xf32, #tpu.memory_space<vmem>>, vector<1x768xf32>
    %428 = arith.truncf %425 : vector<1x256xf32> to vector<1x256xbf16>
    %c0_154 = arith.constant 0 : index
    %c0_155 = arith.constant 0 : index
    %429 = vector.load %arg7[%c0_154, %c0_155] : memref<256x768xbf16, #tpu.memory_space<vmem>>, vector<256x768xbf16>
    %cst_156 = arith.constant dense<0.000000e+00> : vector<1x768xf32>
    %430 = tpu.matmul %428, %429, %cst_156 {dimension_numbers = #tpu.dot_dimension_numbers<[1], [0], [0], [1], [0, 0, 1, 1], [], []>} : vector<1x256xbf16>, vector<256x768xbf16>, vector<1x768xf32> -> vector<1x768xf32>
    %c0_157 = arith.constant 0 : index
    %c0_158 = arith.constant 0 : index
    %431 = vector.load %arg9[%c0_157, %c0_158] : memref<1x768xf32, #tpu.memory_space<vmem>>, vector<1x768xf32>
    %432 = arith.addf %430, %431 : vector<1x768xf32>
    %433 = vector.extract_strided_slice %427 {offsets = [0, 0], sizes = [1, 512], strides = [1, 1]} : vector<1x768xf32> to vector<1x512xf32>
    %434 = vector.extract_strided_slice %432 {offsets = [0, 0], sizes = [1, 512], strides = [1, 1]} : vector<1x768xf32> to vector<1x512xf32>
    %435 = arith.addf %433, %434 : vector<1x512xf32>
    %cst_159 = arith.constant 5.000000e-01 : f32
    %436 = vector.broadcast %cst_159 : f32 to vector<1x512xf32>
    %437 = arith.mulf %436, %435 : vector<1x512xf32>
    %438 = math.tanh %437 : vector<1x512xf32>
    %cst_160 = arith.constant 1.000000e+00 : f32
    %439 = vector.broadcast %cst_160 : f32 to vector<1x512xf32>
    %440 = arith.addf %438, %439 : vector<1x512xf32>
    %cst_161 = arith.constant 5.000000e-01 : f32
    %441 = vector.broadcast %cst_161 : f32 to vector<1x512xf32>
    %442 = arith.mulf %441, %440 : vector<1x512xf32>
    %443 = vector.extract_strided_slice %442 {offsets = [0, 0], sizes = [1, 256], strides = [1, 1]} : vector<1x512xf32> to vector<1x256xf32>
    %444 = vector.extract_strided_slice %442 {offsets = [0, 256], sizes = [1, 256], strides = [1, 1]} : vector<1x512xf32> to vector<1x256xf32>
    %445 = vector.extract_strided_slice %427 {offsets = [0, 512], sizes = [1, 256], strides = [1, 1]} : vector<1x768xf32> to vector<1x256xf32>
    %446 = vector.extract_strided_slice %432 {offsets = [0, 512], sizes = [1, 256], strides = [1, 1]} : vector<1x768xf32> to vector<1x256xf32>
    %447 = arith.mulf %443, %446 : vector<1x256xf32>
    %448 = arith.addf %445, %447 : vector<1x256xf32>
    %449 = math.tanh %448 : vector<1x256xf32>
    %cst_162 = arith.constant 1.000000e+00 : f32
    %450 = vector.broadcast %cst_162 : f32 to vector<1x256xf32>
    %451 = arith.subf %450, %444 : vector<1x256xf32>
    %452 = arith.mulf %451, %449 : vector<1x256xf32>
    %453 = arith.mulf %444, %425 : vector<1x256xf32>
    %454 = arith.addf %452, %453 : vector<1x256xf32>
    %c3_i32_163 = arith.constant 3 : i32
    %c0_164 = arith.constant 0 : index
    %c0_165 = arith.constant 0 : index
    %455 = vector.load %arg10[%c0_164, %c0_165] : memref<256x2xf32, #tpu.memory_space<vmem>>, vector<256x2xf32>
    %cst_166 = arith.constant dense<0.000000e+00> : vector<1x2xf32>
    %456 = tpu.matmul %454, %455, %cst_166 {dimension_numbers = #tpu.dot_dimension_numbers<[1], [0], [0], [1], [0, 0, 1, 1], [], []>} : vector<1x256xf32>, vector<256x2xf32>, vector<1x2xf32> -> vector<1x2xf32>
    %c0_167 = arith.constant 0 : index
    %c0_168 = arith.constant 0 : index
    %457 = vector.load %arg11[%c0_167, %c0_168] : memref<1x2xf32, #tpu.memory_space<vmem>>, vector<1x2xf32>
    %458 = arith.addf %456, %457 : vector<1x2xf32>
    %cst_169 = arith.constant dense<0xFF800000> : vector<1xf32>
    %459 = vector.multi_reduction <maximumf>, %458, %cst_169 [1] : vector<1x2xf32> to vector<1xf32>
    %460 = vector.shape_cast %459 : vector<1xf32> to vector<1x1xf32>
    %461 = vector.broadcast %460 : vector<1x1xf32> to vector<1x2xf32>
    %462 = arith.subf %458, %461 : vector<1x2xf32>
    %463 = math.exp %462 : vector<1x2xf32>
    %cst_170 = arith.constant dense<0.000000e+00> : vector<1xf32>
    %464 = vector.multi_reduction <add>, %463, %cst_170 [1] : vector<1x2xf32> to vector<1xf32>
    %465 = vector.shape_cast %464 : vector<1xf32> to vector<1x1xf32>
    %466 = vector.broadcast %465 : vector<1x1xf32> to vector<1x2xf32>
    %467 = arith.divf %463, %466 : vector<1x2xf32>
    %c0_171 = arith.constant 0 : index
    %c0_172 = arith.constant 0 : index
    %468 = vector.load %arg12[%c0_171, %c0_172] : memref<1x2xf32, #tpu.memory_space<vmem>>, vector<1x2xf32>
    tpu.vector_store %arg12[%c0_171, %c0_172], %467 {strides = array<i32>} : memref<1x2xf32, #tpu.memory_space<vmem>>, vector<1x2xf32>,
    return
  }
}

</mosaic_0001>

<llo_original>
// kernel: tpu_custom_call.1
$region0: #{tpu_custom_call.1}
  #allocation0 [shape = 'u32[]', space=smem, size = 0x4, offset = 0x4, fixed_abs, tag = 'smem constant byte address 0x4 - core index']
  #allocation1 [shape = 'u32[144,128]{1,0:T(1,128)}', space=vmem, size = 0x12000, scoped, tag = 'internal scratch']
  #allocation2 [shape = 'f32[12,512]{1,0:T(8,128)}', space=vmem, size = 0x8000, scoped, tag = 'scratch operand']
  #allocation3 [shape = 'f32[3,128]{1,0:T(4,128)}', space=vmem, size = 0x800, scoped, tag = 'scratch operand']
  #allocation4 [shape = 'f32[3,768]{1,0:T(4,128)}', space=vmem, size = 0x3000, scoped, tag = 'scratch operand']
  %s0 = inlined_call_operand.vmem [shape: s32[12], index: 0, kind: input, shape index: {}]
  %s1 = inlined_call_operand.vmem [shape: s32[12], index: 1, kind: input, shape index: {}]
  %s2 = inlined_call_operand.vmem [shape: bf16[12,25], index: 2, kind: input, shape index: {}]
  %s3 = inlined_call_operand.hbm [shape: bf16[25,512], index: 3, kind: input, shape index: {}]
  %s4 = inlined_call_operand.vmem [shape: bf16[128,512], index: 4, kind: input, shape index: {}]
  %s5 = inlined_call_operand.hbm [shape: f32[1,512], index: 5, kind: input, shape index: {}]
  %s6 = inlined_call_operand.hbm [shape: bf16[128,768], index: 6, kind: input, shape index: {}]
  %s7 = inlined_call_operand.hbm [shape: bf16[256,768], index: 7, kind: input, shape index: {}]
  %s8 = inlined_call_operand.vmem [shape: f32[1,768], index: 8, kind: input, shape index: {}]
  %s9 = inlined_call_operand.vmem [shape: f32[1,768], index: 9, kind: input, shape index: {}]
  %s10 = inlined_call_operand.vmem [shape: f32[256,2], index: 10, kind: input, shape index: {}]
  %s11 = inlined_call_operand.vmem [shape: f32[1,2], index: 11, kind: input, shape index: {}]
  %s12 = inlined_call_operand.hbm [shape: f32[1,2], index: 12, kind: output, shape index: {}]
  %s13 = sld [smem:[#allocation0]]
  $region130: #{tpu_custom_call.1} parent=0
    _
  %s15 = ssub.s32 1, %s13
  %s16 = scalar_select 0, %s15, %s13
  $region1: #{tpu_custom_call.1} parent=0
    #allocation5 [shape = 'u8[512]{0}', space=smem, size = 0x200, scoped, tag = 'input window, operand 0, single buffered']
    #allocation6 [shape = 's32[1]{0}', space=sflag, size = 0x4, scoped, tag = 'scoped memory for tpu_custom_call.1']
    #allocation7 [shape = 's32[1]{0}', space=sflag, size = 0x4, scoped, tag = 'scoped memory for tpu_custom_call.1']
    #allocation8 [shape = 's32[1]{0}', space=sflag, size = 0x4, scoped, tag = 'scoped memory for tpu_custom_call.1']
    #allocation9 [shape = 'u8[512]{0}', space=smem, size = 0x200, scoped, tag = 'input window, operand 1, single buffered']
    #allocation10 [shape = 's32[1]{0}', space=sflag, size = 0x4, scoped, tag = 'scoped memory for tpu_custom_call.1']
    #allocation11 [shape = 'u8[32768]{0}', space=vmem, size = 0x8000, scoped, tag = 'input window, operand 3, single buffered']
    #allocation12 [shape = 'u8[2048]{0}', space=vmem, size = 0x800, scoped, tag = 'input window, operand 5, single buffered']
    #allocation13 [shape = 's32[1]{0}', space=sflag, size = 0x4, scoped, tag = 'scoped memory for tpu_custom_call.1']
    #allocation14 [shape = 'u8[196608]{0}', space=vmem, size = 0x30000, scoped, tag = 'input window, operand 6, single buffered']
    #allocation15 [shape = 'u8[393216]{0}', space=vmem, size = 0x60000, scoped, tag = 'input window, operand 7, single buffered']
    #allocation16 [shape = 's32[1]{0}', space=sflag, size = 0x4, scoped, tag = 'scoped memory for tpu_custom_call.1']
    #allocation17 [shape = 'u8[512]{0}', space=vmem, size = 0x400, scoped, tag = 'output window, operand 0, single buffered']
    %17 = vsyncpa [#allocation8], 0
    %18 = vsyncpa [#allocation10], 0
    %19 = vsyncpa [#allocation6], 0
    %20 = vsyncpa [#allocation13], 0
    %21 = vsyncpa [#allocation16], 0
    %22 = vsyncpa [#allocation7], 0
    // Predicated region
    $region2: #{tpu_custom_call.1} parent=1 // pred_check
      _
    $region3: #{tpu_custom_call.1} parent=1 // pred_check_branch
      %24 = sbr.rel (0) target = $region5
    $region4: #{tpu_custom_call.1} parent=1 // pred_region
      %s26 = ssub.s32 16, 16
      %27 = vsyncadd [#allocation8], %s26
      %s29 = sshll.u32 %s0, 4
      %s30 = int_to_ptr.vmem [resolvable:$true] %s29
      %32 = dma.vmem_to_smem %s30, 16, [#allocation5], [#allocation8]
    $region5: #{tpu_custom_call.1} parent=1 // pred_fallthru
      _
    // Predicated region
    $region6: #{tpu_custom_call.1} parent=1 // pred_check
      _
    $region7: #{tpu_custom_call.1} parent=1 // pred_check_branch
      %34 = sbr.rel (0) target = $region9
    $region8: #{tpu_custom_call.1} parent=1 // pred_region
      %s36 = ssub.s32 16, 16
      %37 = vsyncadd [#allocation10], %s36
      %s39 = sshll.u32 %s1, 4
      %s40 = int_to_ptr.vmem [resolvable:$true] %s39
      %42 = dma.vmem_to_smem %s40, 16, [#allocation9], [#allocation10]
    $region9: #{tpu_custom_call.1} parent=1 // pred_fallthru
      _
    // Predicated region
    $region10: #{tpu_custom_call.1} parent=1 // pred_check
      _
    $region11: #{tpu_custom_call.1} parent=1 // pred_check_branch
      %44 = sbr.rel (0) target = $region13
    $region12: #{tpu_custom_call.1} parent=1 // pred_region
      _
    $region13: #{tpu_custom_call.1} parent=1 // pred_fallthru
      _
    // Predicated region
    $region14: #{tpu_custom_call.1} parent=1 // pred_check
      _
    $region15: #{tpu_custom_call.1} parent=1 // pred_check_branch
      %46 = sbr.rel (0) target = $region17
    $region16: #{tpu_custom_call.1} parent=1 // pred_region
      %s48 = ssub.s32 1024, 1024
      %49 = vsyncadd [#allocation6], %s48
      %s50 = sshll.u32 [#allocation11], 4
      %s51 = int_to_ptr.vmem [resolvable:$true] %s50
      %56 = dma.hbm_to_vmem [thread:$0]  %s3, 1024, %s51, [#allocation6], 256, 256, 16
    $region17: #{tpu_custom_call.1} parent=1 // pred_fallthru
      _
    // Predicated region
    $region18: #{tpu_custom_call.1} parent=1 // pred_check
      _
    $region19: #{tpu_custom_call.1} parent=1 // pred_check_branch
      %58 = sbr.rel (0) target = $region21
    $region20: #{tpu_custom_call.1} parent=1 // pred_region
      _
    $region21: #{tpu_custom_call.1} parent=1 // pred_fallthru
      _
    // Predicated region
    $region22: #{tpu_custom_call.1} parent=1 // pred_check
      _
    $region23: #{tpu_custom_call.1} parent=1 // pred_check_branch
      %60 = sbr.rel (0) target = $region25
    $region24: #{tpu_custom_call.1} parent=1 // pred_region
      %s62 = ssub.s32 64, 64
      %63 = vsyncadd [#allocation13], %s62
      %s65 = sshll.u32 [#allocation12], 4
      %s66 = int_to_ptr.vmem [resolvable:$true] %s65
      %68 = dma.hbm_to_vmem [thread:$0]  %s5, 64, %s66, [#allocation13]
    $region25: #{tpu_custom_call.1} parent=1 // pred_fallthru
      _
    // Predicated region
    $region26: #{tpu_custom_call.1} parent=1 // pred_check
      _
    $region27: #{tpu_custom_call.1} parent=1 // pred_check_branch
      %70 = sbr.rel (0) target = $region29
    $region28: #{tpu_custom_call.1} parent=1 // pred_region
      %s72 = ssub.s32 6144, 6144
      %73 = vsyncadd [#allocation13], %s72
      %s74 = sshll.u32 [#allocation14], 4
      %s75 = int_to_ptr.vmem [resolvable:$true] %s74
      %80 = dma.hbm_to_vmem [thread:$0]  %s6, 6144, %s75, [#allocation13], 384, 384, 24
    $region29: #{tpu_custom_call.1} parent=1 // pred_fallthru
      _
    // Predicated region
    $region30: #{tpu_custom_call.1} parent=1 // pred_check
      _
    $region31: #{tpu_custom_call.1} parent=1 // pred_check_branch
      %82 = sbr.rel (0) target = $region33
    $region32: #{tpu_custom_call.1} parent=1 // pred_region
      %s84 = ssub.s32 12288, 12288
      %85 = vsyncadd [#allocation16], %s84
      %s86 = sshll.u32 [#allocation15], 4
      %s87 = int_to_ptr.vmem [resolvable:$true] %s86
      %92 = dma.hbm_to_vmem [thread:$0]  %s7, 12288, %s87, [#allocation16], 384, 384, 24
    $region33: #{tpu_custom_call.1} parent=1 // pred_fallthru
      _
    // Predicated region
    $region34: #{tpu_custom_call.1} parent=1 // pred_check
      _
    $region35: #{tpu_custom_call.1} parent=1 // pred_check_branch
      %94 = sbr.rel (0) target = $region37
    $region36: #{tpu_custom_call.1} parent=1 // pred_region
      _
    $region37: #{tpu_custom_call.1} parent=1 // pred_fallthru
      _
    // Predicated region
    $region38: #{tpu_custom_call.1} parent=1 // pred_check
      _
    $region39: #{tpu_custom_call.1} parent=1 // pred_check_branch
      %96 = sbr.rel (0) target = $region41
    $region40: #{tpu_custom_call.1} parent=1 // pred_region
      _
    $region41: #{tpu_custom_call.1} parent=1 // pred_fallthru
      _
    // Predicated region
    $region42: #{tpu_custom_call.1} parent=1 // pred_check
      _
    $region43: #{tpu_custom_call.1} parent=1 // pred_check_branch
      %98 = sbr.rel (0) target = $region45
    $region44: #{tpu_custom_call.1} parent=1 // pred_region
      _
    $region45: #{tpu_custom_call.1} parent=1 // pred_fallthru
      _
    // Predicated region
    $region46: #{tpu_custom_call.1} parent=1 // pred_check
      _
    $region47: #{tpu_custom_call.1} parent=1 // pred_check_branch
      %100 = sbr.rel (0) target = $region49
    $region48: #{tpu_custom_call.1} parent=1 // pred_region
      _
    $region49: #{tpu_custom_call.1} parent=1 // pred_fallthru
      _
    // Predicated region
    $region50: #{tpu_custom_call.1} parent=1 // pred_check
      _
    $region51: #{tpu_custom_call.1} parent=1 // pred_check_branch
      %102 = sbr.rel (0) target = $region53
    $region52: #{tpu_custom_call.1} parent=1 // pred_region
      %103 = dma.done [#allocation8], 16
    $region53: #{tpu_custom_call.1} parent=1 // pred_fallthru
      _
    // Predicated region
    $region54: #{tpu_custom_call.1} parent=1 // pred_check
      _
    $region55: #{tpu_custom_call.1} parent=1 // pred_check_branch
      %105 = sbr.rel (0) target = $region57
    $region56: #{tpu_custom_call.1} parent=1 // pred_region
      %106 = dma.done [#allocation10], 16
    $region57: #{tpu_custom_call.1} parent=1 // pred_fallthru
      _
    // Predicated region
    $region58: #{tpu_custom_call.1} parent=1 // pred_check
      _
    $region59: #{tpu_custom_call.1} parent=1 // pred_check_branch
      %108 = sbr.rel (0) target = $region61
    $region60: #{tpu_custom_call.1} parent=1 // pred_region
      %109 = dma.done [#allocation6], 1024
    $region61: #{tpu_custom_call.1} parent=1 // pred_fallthru
      _
    // Predicated region
    $region62: #{tpu_custom_call.1} parent=1 // pred_check
      _
    $region63: #{tpu_custom_call.1} parent=1 // pred_check_branch
      %111 = sbr.rel (0) target = $region65
    $region64: #{tpu_custom_call.1} parent=1 // pred_region
      %112 = dma.done [#allocation13], 64
    $region65: #{tpu_custom_call.1} parent=1 // pred_fallthru
      _
    // Predicated region
    $region66: #{tpu_custom_call.1} parent=1 // pred_check
      _
    $region67: #{tpu_custom_call.1} parent=1 // pred_check_branch
      %114 = sbr.rel (0) target = $region69
    $region68: #{tpu_custom_call.1} parent=1 // pred_region
      %115 = dma.done [#allocation13], 6144
    $region69: #{tpu_custom_call.1} parent=1 // pred_fallthru
      _
    // Predicated region
    $region70: #{tpu_custom_call.1} parent=1 // pred_check
      _
    $region71: #{tpu_custom_call.1} parent=1 // pred_check_branch
      %117 = sbr.rel (0) target = $region73
    $region72: #{tpu_custom_call.1} parent=1 // pred_region
      %118 = dma.done [#allocation16], 12288
    $region73: #{tpu_custom_call.1} parent=1 // pred_fallthru
      _
    %119 = sfence
    %v121 = vld [vmem:[%s2] sm:$0xf]
    %v122 = vld [vmem:[%s2 + $0x4] sm:$0x3]
    %v123 = vld [vmem:[#allocation11] sm:$0xff]
    %v124 = vld [vmem:[#allocation11 + $0x8] sm:$0xff]
    %v125 = vld [vmem:[#allocation11 + $0x10] sm:$0xff]
    %v126 = vld [vmem:[#allocation11 + $0x18] sm:$0xff]
    %v127 = vld [vmem:[#allocation11 + $0x20] sm:$0xff]
    %v128 = vld [vmem:[#allocation11 + $0x28] sm:$0xff]
    %v129 = vld [vmem:[#allocation11 + $0x30] sm:$0x11]
    %v130 = vld [vmem:[#allocation11 + $0x38] sm:$0x11]
    %v131 = vld [vmem:[#allocation12] sm:$0xf]
    %v133 = vlaneseq
    %v134 = vshrl.u32 %v133, 7
    %v135 = vsub.s32 0, %v134
    %v136 = vrot.slane %v131, %v135
    %v137 = vlaneseq
    %v138 = vshrl.u32 %v137, 7
    %v139 = vsub.s32 1, %v138
    %v140 = vrot.slane %v131, %v139
    %v141 = vlaneseq
    %v142 = vshrl.u32 %v141, 7
    %v143 = vsub.s32 2, %v142
    %v144 = vrot.slane %v131, %v143
    %v145 = vlaneseq
    %v146 = vshrl.u32 %v145, 7
    %v147 = vsub.s32 3, %v146
    %v148 = vrot.slane %v131, %v147
    %v155 = vunpack.c.l.b16 %v121
    %v156 = vunpack.c.l.b16 %v122
    %v157 = vpack.c.b16 %v156, %v155
    %v166 = vunpack.c.l.b16 %v123
    %v167 = vunpack.c.h.b16 %v123
    %v168 = vunpack.c.l.b16 %v124
    %v169 = vunpack.c.h.b16 %v124
    %v170 = vunpack.c.l.b16 %v125
    %v171 = vunpack.c.h.b16 %v125
    %v172 = vunpack.c.l.b16 %v126
    %v173 = vunpack.c.h.b16 %v126
    %v174 = vunpack.c.l.b16 %v127
    %v175 = vunpack.c.h.b16 %v127
    %v176 = vunpack.c.l.b16 %v128
    %v177 = vunpack.c.h.b16 %v128
    %v178 = vunpack.c.l.b16 %v129
    %v179 = vunpack.c.h.b16 %v129
    %v180 = vunpack.c.l.b16 %v130
    %v181 = vunpack.c.h.b16 %v130
    %v182 = vpack.c.b16 %v170, %v166
    %v183 = vpack.c.b16 %v171, %v167
    %v184 = vpack.c.b16 %v172, %v168
    %v185 = vpack.c.b16 %v173, %v169
    %v186 = vpack.c.b16 %v178, %v174
    %v187 = vpack.c.b16 %v179, %v175
    %v188 = vpack.c.b16 %v180, %v176
    %v189 = vpack.c.b16 %v181, %v177
    %vm194 = vcmask 203776
    %v196 = vsel %vm194, %v157, 0
    %vm198 = vcmask 1043456
    %vm199 = vcmask 1044480
    %v200 = vsel %vm198, 4294967295, 65535
    %v201 = vsel %vm199, %v200, 0
    %v203 = vand.u32 %v186, %v201
    %v206 = vand.u32 %v187, %v201
    %v209 = vand.u32 %v188, %v201
    %v212 = vand.u32 %v189, %v201
    %214 = vmatprep.subr.bf16.mxu0 %v183
    %215 = vmatpush1.bf16.msra.mxu0 %v182
    %216 = vmatprep.subr.bf16.mxu0 %v206
    %217 = vmatpush1.bf16.msra.mxu0 %v203
    %218 = vmatprep.subr.bf16.mxu0 0
    %219 = vmatpush1.bf16.msra.mxu0 0
    %220 = vmatprep.subr.bf16.mxu0 0
    %221 = vmatpush1.bf16.msra.mxu0 0
    %222 = vmatprep.subr.bf16.mxu0 0
    %223 = vmatpush1.bf16.msra.mxu0 0
    %224 = vmatprep.subr.bf16.mxu0 0
    %225 = vmatpush1.bf16.msra.mxu0 0
    %226 = vmatprep.subr.bf16.mxu0 0
    %227 = vmatpush1.bf16.msra.mxu0 0
    %228 = vmatprep.subr.bf16.mxu0 0
    %229 = vmatpush1.bf16.msra.mxu0 0
    %230 = vmatprep.subr.bf16.mxu0 0
    %231 = vmatpush1.bf16.msra.mxu0 0
    %232 = vmatprep.subr.bf16.mxu0 0
    %233 = vmatpush1.bf16.msra.mxu0 0
    %234 = vmatprep.subr.bf16.mxu0 0
    %235 = vmatpush1.bf16.msra.mxu0 0
    %236 = vmatprep.subr.bf16.mxu0 0
    %237 = vmatpush1.bf16.msra.mxu0 0
    %238 = vmatprep.subr.bf16.mxu0 0
    %239 = vmatpush1.bf16.msra.mxu0 0
    %240 = vmatprep.subr.bf16.mxu0 0
    %241 = vmatpush1.bf16.msra.mxu0 0
    %242 = vmatprep.subr.bf16.mxu0 0
    %243 = vmatpush1.bf16.msra.mxu0 0
    %244 = vmatprep.subr.bf16.mxu0 0
    %245 = vmatpush1.bf16.msra.mxu0 0
    %246 = vmatprep.mubr.bf16.mxu0 0
    %247 = vmatmul.mubr.bf16.gmra.mrb[0].mxu0 %v196
    %v248 = vpop.f32.mrb[0].mxu0
    %v249 = vadd.f32 %v136, %v248
    %v250 = vpop.f32.mrb[0].mxu0
    %v251 = vadd.f32 %v140, %v250
    %v252 = vpop.f32.mrb[0].mxu0
    %v253 = vadd.f32 %v136, %v252
    %v254 = vpop.f32.mrb[0].mxu0
    %v255 = vadd.f32 %v140, %v254
    %256 = vdwg.mxu0
    %257 = vmatprep.subr.bf16.mxu0 %v185
    %258 = vmatpush1.bf16.msra.mxu0 %v184
    %259 = vmatprep.subr.bf16.mxu0 %v212
    %260 = vmatpush1.bf16.msra.mxu0 %v209
    %261 = vmatprep.subr.bf16.mxu0 0
    %262 = vmatpush1.bf16.msra.mxu0 0
    %263 = vmatprep.subr.bf16.mxu0 0
    %264 = vmatpush1.bf16.msra.mxu0 0
    %265 = vmatprep.subr.bf16.mxu0 0
    %266 = vmatpush1.bf16.msra.mxu0 0
    %267 = vmatprep.subr.bf16.mxu0 0
    %268 = vmatpush1.bf16.msra.mxu0 0
    %269 = vmatprep.subr.bf16.mxu0 0
    %270 = vmatpush1.bf16.msra.mxu0 0
    %271 = vmatprep.subr.bf16.mxu0 0
    %272 = vmatpush1.bf16.msra.mxu0 0
    %273 = vmatprep.subr.bf16.mxu0 0
    %274 = vmatpush1.bf16.msra.mxu0 0
    %275 = vmatprep.subr.bf16.mxu0 0
    %276 = vmatpush1.bf16.msra.mxu0 0
    %277 = vmatprep.subr.bf16.mxu0 0
    %278 = vmatpush1.bf16.msra.mxu0 0
    %279 = vmatprep.subr.bf16.mxu0 0
    %280 = vmatpush1.bf16.msra.mxu0 0
    %281 = vmatprep.subr.bf16.mxu0 0
    %282 = vmatpush1.bf16.msra.mxu0 0
    %283 = vmatprep.subr.bf16.mxu0 0
    %284 = vmatpush1.bf16.msra.mxu0 0
    %285 = vmatprep.subr.bf16.mxu0 0
    %286 = vmatpush1.bf16.msra.mxu0 0
    %287 = vmatprep.subr.bf16.mxu0 0
    %288 = vmatpush1.bf16.msra.mxu0 0
    %289 = vmatprep.mubr.bf16.mxu0 0
    %290 = vmatmul.mubr.bf16.gmra.mrb[0].mxu0 %v196
    %v291 = vpop.f32.mrb[0].mxu0
    %v292 = vadd.f32 %v144, %v291
    %v293 = vpop.f32.mrb[0].mxu0
    %v294 = vadd.f32 %v148, %v293
    %v295 = vpop.f32.mrb[0].mxu0
    %v296 = vadd.f32 %v144, %v295
    %v297 = vpop.f32.mrb[0].mxu0
    %v298 = vadd.f32 %v148, %v297
    %299 = vdwg.mxu0
    %300 = vst [vmem:[#allocation2] sm:$0xff] %v249
    %301 = vst [vmem:[#allocation2 + $0x8] sm:$0xff] %v251
    %302 = vst [vmem:[#allocation2 + $0x10] sm:$0xff] %v292
    %303 = vst [vmem:[#allocation2 + $0x18] sm:$0xff] %v294
    %304 = vst [vmem:[#allocation2 + $0x20] sm:$0xf] %v253
    %305 = vst [vmem:[#allocation2 + $0x28] sm:$0xf] %v255
    %306 = vst [vmem:[#allocation2 + $0x30] sm:$0xf] %v296
    %307 = vst [vmem:[#allocation2 + $0x38] sm:$0xf] %v298
    %308 = vst [vmem:[#allocation3] sm:$0x7] 0.0
    %v309 = vld [vmem:[#allocation2] ss:$8 sm:$0xf]
    %v310 = vld [vmem:[%s4] sm:$0xff]
    %v311 = vld [vmem:[%s4 + $0x8] sm:$0xff]
    %v312 = vld [vmem:[%s4 + $0x10] sm:$0xff]
    %v313 = vld [vmem:[%s4 + $0x18] sm:$0xff]
    %v314 = vld [vmem:[%s4 + $0x20] sm:$0xff]
    %v315 = vld [vmem:[%s4 + $0x28] sm:$0xff]
    %v316 = vld [vmem:[%s4 + $0x30] sm:$0xff]
    %v317 = vld [vmem:[%s4 + $0x38] sm:$0xff]
    %v318 = vld [vmem:[%s4 + $0x40] sm:$0xff]
    %v319 = vld [vmem:[%s4 + $0x48] sm:$0xff]
    %v320 = vld [vmem:[%s4 + $0x50] sm:$0xff]
    %v321 = vld [vmem:[%s4 + $0x58] sm:$0xff]
    %v322 = vld [vmem:[%s4 + $0x60] sm:$0xff]
    %v323 = vld [vmem:[%s4 + $0x68] sm:$0xff]
    %v324 = vld [vmem:[%s4 + $0x70] sm:$0xff]
    %v325 = vld [vmem:[%s4 + $0x78] sm:$0xff]
    %v326 = vld [vmem:[%s4 + $0x80] sm:$0xff]
    %v327 = vld [vmem:[%s4 + $0x88] sm:$0xff]
    %v328 = vld [vmem:[%s4 + $0x90] sm:$0xff]
    %v329 = vld [vmem:[%s4 + $0x98] sm:$0xff]
    %v330 = vld [vmem:[%s4 + $0xa0] sm:$0xff]
    %v331 = vld [vmem:[%s4 + $0xa8] sm:$0xff]
    %v332 = vld [vmem:[%s4 + $0xb0] sm:$0xff]
    %v333 = vld [vmem:[%s4 + $0xb8] sm:$0xff]
    %v334 = vld [vmem:[%s4 + $0xc0] sm:$0xff]
    %v335 = vld [vmem:[%s4 + $0xc8] sm:$0xff]
    %v336 = vld [vmem:[%s4 + $0xd0] sm:$0xff]
    %v337 = vld [vmem:[%s4 + $0xd8] sm:$0xff]
    %v338 = vld [vmem:[%s4 + $0xe0] sm:$0xff]
    %v339 = vld [vmem:[%s4 + $0xe8] sm:$0xff]
    %v340 = vld [vmem:[%s4 + $0xf0] sm:$0xff]
    %v341 = vld [vmem:[%s4 + $0xf8] sm:$0xff]
    %v374 = vunpack.c.l.b16 %v310
    %v375 = vunpack.c.h.b16 %v310
    %v376 = vunpack.c.l.b16 %v311
    %v377 = vunpack.c.h.b16 %v311
    %v378 = vunpack.c.l.b16 %v312
    %v379 = vunpack.c.h.b16 %v312
    %v380 = vunpack.c.l.b16 %v313
    %v381 = vunpack.c.h.b16 %v313
    %v382 = vunpack.c.l.b16 %v314
    %v383 = vunpack.c.h.b16 %v314
    %v384 = vunpack.c.l.b16 %v315
    %v385 = vunpack.c.h.b16 %v315
    %v386 = vunpack.c.l.b16 %v316
    %v387 = vunpack.c.h.b16 %v316
    %v388 = vunpack.c.l.b16 %v317
    %v389 = vunpack.c.h.b16 %v317
    %v390 = vunpack.c.l.b16 %v318
    %v391 = vunpack.c.h.b16 %v318
    %v392 = vunpack.c.l.b16 %v319
    %v393 = vunpack.c.h.b16 %v319
    %v394 = vunpack.c.l.b16 %v320
    %v395 = vunpack.c.h.b16 %v320
    %v396 = vunpack.c.l.b16 %v321
    %v397 = vunpack.c.h.b16 %v321
    %v398 = vunpack.c.l.b16 %v322
    %v399 = vunpack.c.h.b16 %v322
    %v400 = vunpack.c.l.b16 %v323
    %v401 = vunpack.c.h.b16 %v323
    %v402 = vunpack.c.l.b16 %v324
    %v403 = vunpack.c.h.b16 %v324
    %v404 = vunpack.c.l.b16 %v325
    %v405 = vunpack.c.h.b16 %v325
    %v406 = vunpack.c.l.b16 %v326
    %v407 = vunpack.c.h.b16 %v326
    %v408 = vunpack.c.l.b16 %v327
    %v409 = vunpack.c.h.b16 %v327
    %v410 = vunpack.c.l.b16 %v328
    %v411 = vunpack.c.h.b16 %v328
    %v412 = vunpack.c.l.b16 %v329
    %v413 = vunpack.c.h.b16 %v329
    %v414 = vunpack.c.l.b16 %v330
    %v415 = vunpack.c.h.b16 %v330
    %v416 = vunpack.c.l.b16 %v331
    %v417 = vunpack.c.h.b16 %v331
    %v418 = vunpack.c.l.b16 %v332
    %v419 = vunpack.c.h.b16 %v332
    %v420 = vunpack.c.l.b16 %v333
    %v421 = vunpack.c.h.b16 %v333
    %v422 = vunpack.c.l.b16 %v334
    %v423 = vunpack.c.h.b16 %v334
    %v424 = vunpack.c.l.b16 %v335
    %v425 = vunpack.c.h.b16 %v335
    %v426 = vunpack.c.l.b16 %v336
    %v427 = vunpack.c.h.b16 %v336
    %v428 = vunpack.c.l.b16 %v337
    %v429 = vunpack.c.h.b16 %v337
    %v430 = vunpack.c.l.b16 %v338
    %v431 = vunpack.c.h.b16 %v338
    %v432 = vunpack.c.l.b16 %v339
    %v433 = vunpack.c.h.b16 %v339
    %v434 = vunpack.c.l.b16 %v340
    %v435 = vunpack.c.h.b16 %v340
    %v436 = vunpack.c.l.b16 %v341
    %v437 = vunpack.c.h.b16 %v341
    %v438 = vpack.c.b16 %v378, %v374
    %v439 = vpack.c.b16 %v379, %v375
    %v440 = vpack.c.b16 %v380, %v376
    %v441 = vpack.c.b16 %v381, %v377
    %v442 = vpack.c.b16 %v386, %v382
    %v443 = vpack.c.b16 %v387, %v383
    %v444 = vpack.c.b16 %v388, %v384
    %v445 = vpack.c.b16 %v389, %v385
    %v446 = vpack.c.b16 %v394, %v390
    %v447 = vpack.c.b16 %v395, %v391
    %v448 = vpack.c.b16 %v396, %v392
    %v449 = vpack.c.b16 %v397, %v393
    %v450 = vpack.c.b16 %v402, %v398
    %v451 = vpack.c.b16 %v403, %v399
    %v452 = vpack.c.b16 %v404, %v400
    %v453 = vpack.c.b16 %v405, %v401
    %v454 = vpack.c.b16 %v410, %v406
    %v455 = vpack.c.b16 %v411, %v407
    %v456 = vpack.c.b16 %v412, %v408
    %v457 = vpack.c.b16 %v413, %v409
    %v458 = vpack.c.b16 %v418, %v414
    %v459 = vpack.c.b16 %v419, %v415
    %v460 = vpack.c.b16 %v420, %v416
    %v461 = vpack.c.b16 %v421, %v417
    %v462 = vpack.c.b16 %v426, %v422
    %v463 = vpack.c.b16 %v427, %v423
    %v464 = vpack.c.b16 %v428, %v424
    %v465 = vpack.c.b16 %v429, %v425
    %v466 = vpack.c.b16 %v434, %v430
    %v467 = vpack.c.b16 %v435, %v431
    %v468 = vpack.c.b16 %v436, %v432
    %v469 = vpack.c.b16 %v437, %v433
    %502 = vmatprep.subr.bf16.mxu0 %v439
    %503 = vmatpush1.bf16.msra.mxu0 %v438
    %504 = vmatprep.subr.bf16.mxu0 %v443
    %505 = vmatpush1.bf16.msra.mxu0 %v442
    %506 = vmatprep.subr.bf16.mxu0 %v447
    %507 = vmatpush1.bf16.msra.mxu0 %v446
    %508 = vmatprep.subr.bf16.mxu0 %v451
    %509 = vmatpush1.bf16.msra.mxu0 %v450
    %510 = vmatprep.subr.bf16.mxu0 %v455
    %511 = vmatpush1.bf16.msra.mxu0 %v454
    %512 = vmatprep.subr.bf16.mxu0 %v459
    %513 = vmatpush1.bf16.msra.mxu0 %v458
    %514 = vmatprep.subr.bf16.mxu0 %v463
    %515 = vmatpush1.bf16.msra.mxu0 %v462
    %516 = vmatprep.subr.bf16.mxu0 %v467
    %517 = vmatpush1.bf16.msra.mxu0 %v466
    %518 = vmatprep.subr.bf16.mxu0 0
    %519 = vmatpush1.bf16.msra.mxu0 0
    %520 = vmatprep.subr.bf16.mxu0 0
    %521 = vmatpush1.bf16.msra.mxu0 0
    %522 = vmatprep.subr.bf16.mxu0 0
    %523 = vmatpush1.bf16.msra.mxu0 0
    %524 = vmatprep.subr.bf16.mxu0 0
    %525 = vmatpush1.bf16.msra.mxu0 0
    %526 = vmatprep.subr.bf16.mxu0 0
    %527 = vmatpush1.bf16.msra.mxu0 0
    %528 = vmatprep.subr.bf16.mxu0 0
    %529 = vmatpush1.bf16.msra.mxu0 0
    %530 = vmatprep.subr.bf16.mxu0 0
    %531 = vmatpush1.bf16.msra.mxu0 0
    %532 = vmatprep.subr.bf16.mxu0 0
    %533 = vmatpush1.bf16.msra.mxu0 0
    %534 = vmatprep.mubr.bf16.mxu0 0
    %535 = vmatmul.mubr.bf16.gmra.mrb[0].mxu0 0
    %v536 = vpop.f32.mrb[0].mxu0
    %v537 = vadd.f32 0.0, %v536
    %v538 = vpop.f32.mrb[0].mxu0
    %v539 = vadd.f32 0.0, %v538
    %v540 = vpop.f32.mrb[0].mxu0
    %v541 = vpop.f32.mrb[0].mxu0
    %542 = vdwg.mxu0
    %543 = vmatprep.subr.bf16.mxu0 %v441
    %544 = vmatpush1.bf16.msra.mxu0 %v440
    %545 = vmatprep.subr.bf16.mxu0 %v445
    %546 = vmatpush1.bf16.msra.mxu0 %v444
    %547 = vmatprep.subr.bf16.mxu0 %v449
    %548 = vmatpush1.bf16.msra.mxu0 %v448
    %549 = vmatprep.subr.bf16.mxu0 %v453
    %550 = vmatpush1.bf16.msra.mxu0 %v452
    %551 = vmatprep.subr.bf16.mxu0 %v457
    %552 = vmatpush1.bf16.msra.mxu0 %v456
    %553 = vmatprep.subr.bf16.mxu0 %v461
    %554 = vmatpush1.bf16.msra.mxu0 %v460
    %555 = vmatprep.subr.bf16.mxu0 %v465
    %556 = vmatpush1.bf16.msra.mxu0 %v464
    %557 = vmatprep.subr.bf16.mxu0 %v469
    %558 = vmatpush1.bf16.msra.mxu0 %v468
    %559 = vmatprep.subr.bf16.mxu0 0
    %560 = vmatpush1.bf16.msra.mxu0 0
    %561 = vmatprep.subr.bf16.mxu0 0
    %562 = vmatpush1.bf16.msra.mxu0 0
    %563 = vmatprep.subr.bf16.mxu0 0
    %564 = vmatpush1.bf16.msra.mxu0 0
    %565 = vmatprep.subr.bf16.mxu0 0
    %566 = vmatpush1.bf16.msra.mxu0 0
    %567 = vmatprep.subr.bf16.mxu0 0
    %568 = vmatpush1.bf16.msra.mxu0 0
    %569 = vmatprep.subr.bf16.mxu0 0
    %570 = vmatpush1.bf16.msra.mxu0 0
    %571 = vmatprep.subr.bf16.mxu0 0
    %572 = vmatpush1.bf16.msra.mxu0 0
    %573 = vmatprep.subr.bf16.mxu0 0
    %574 = vmatpush1.bf16.msra.mxu0 0
    %575 = vmatprep.mubr.bf16.mxu0 0
    %576 = vmatmul.mubr.bf16.gmra.mrb[0].mxu0 0
    %v577 = vpop.f32.mrb[0].mxu0
    %v578 = vadd.f32 0.0, %v577
    %v579 = vpop.f32.mrb[0].mxu0
    %v580 = vadd.f32 0.0, %v579
    %v581 = vpop.f32.mrb[0].mxu0
    %v582 = vpop.f32.mrb[0].mxu0
    %583 = vdwg.mxu0
    %v588 = vcombine.low %v537, %v539
    %v589 = vcombine.low %v578, %v580
    %v591 = vunpack.c.l.s4 1966171168
    %v592 = vunpack.c.0.s8 %v591
    %v593 = vlaneseq
    %v594 = vshrl.u32 %v593, 7
    %v595 = vsub.s32 %v592, %v594
    %v596 = vrot.slane %v588, %v595
    %v598 = vunpack.c.l.s4 1966171168
    %v599 = vunpack.c.0.s8 %v598
    %v600 = vlaneseq
    %v601 = vshrl.u32 %v600, 7
    %v602 = vsub.s32 %v599, %v601
    %v603 = vrot.slane %v589, %v602
    %v604 = vcombine.low %v596, %v603
    %v606 = vunpack.c.l.s4 1966171168
    %v607 = vunpack.c.0.s8 %v606
    %v608 = vlaneseq
    %v609 = vshrl.u32 %v608, 7
    %v610 = vsub.s32 %v607, %v609
    %v611 = vrot.slane %v604, %v610
    %v613 = vadd.f32 %v309, %v611
    %v614 = vmul.f32 %v613, 0.5
    %v615 = vtanh.pop %v614
    %v616 = vadd.f32 %v615, 1.0
    %v617 = vmul.f32 %v616, 0.5
    %v619 = vrot.slane %v613, 3
    %v621 = vtanh.pop %v619
    %v623 = vrot.slane %v617, 1
    %v625 = vmul.f32 %v623, 0.0
    %v626 = vmul.f32 %v617, %v621
    %v627 = vadd.f32 %v625, %v626
    %v628 = vtanh.pop %v627
    %v629 = vrot.slane %v617, 2
    %v631 = vmul.f32 %v629, %v628
    %s632 = sld [smem:[#allocation5]]
    %p633 = scmp.eq.s32.totalorder %s632, 1
    // Predicated region
    $region74: #{tpu_custom_call.1} parent=1 // pred_check
      %p634 = pneg %p633
    $region75: #{tpu_custom_call.1} parent=1 // pred_check_branch
      %636 = sbr.rel (%p634) target = $region77
    $region76: #{tpu_custom_call.1} parent=1 // pred_region
      %s637 = sld [smem:[#allocation9]]
      %s638 = scalar_lea.vmem [#allocation3], %s637
      %639 = vst [vmem:[%s638] sm:$0x1] %v631
    $region77: #{tpu_custom_call.1} parent=1 // pred_fallthru
      _
    %s640 = scalar_lea.vmem [#allocation2], 1
    %v641 = vld [vmem:[%s640] ss:$8 sm:$0xf]
    %v642 = vpack.c.bf16 %v631, %v631
    %v643 = vld [vmem:[%s4] sm:$0xff]
    %v644 = vld [vmem:[%s4 + $0x8] sm:$0xff]
    %v645 = vld [vmem:[%s4 + $0x10] sm:$0xff]
    %v646 = vld [vmem:[%s4 + $0x18] sm:$0xff]
    %v647 = vld [vmem:[%s4 + $0x20] sm:$0xff]
    %v648 = vld [vmem:[%s4 + $0x28] sm:$0xff]
    %v649 = vld [vmem:[%s4 + $0x30] sm:$0xff]
    %v650 = vld [vmem:[%s4 + $0x38] sm:$0xff]
    %v651 = vld [vmem:[%s4 + $0x40] sm:$0xff]
    %v652 = vld [vmem:[%s4 + $0x48] sm:$0xff]
    %v653 = vld [vmem:[%s4 + $0x50] sm:$0xff]
    %v654 = vld [vmem:[%s4 + $0x58] sm:$0xff]
    %v655 = vld [vmem:[%s4 + $0x60] sm:$0xff]
    %v656 = vld [vmem:[%s4 + $0x68] sm:$0xff]
    %v657 = vld [vmem:[%s4 + $0x70] sm:$0xff]
    %v658 = vld [vmem:[%s4 + $0x78] sm:$0xff]
    %v659 = vld [vmem:[%s4 + $0x80] sm:$0xff]
    %v660 = vld [vmem:[%s4 + $0x88] sm:$0xff]
    %v661 = vld [vmem:[%s4 + $0x90] sm:$0xff]
    %v662 = vld [vmem:[%s4 + $0x98] sm:$0xff]
    %v663 = vld [vmem:[%s4 + $0xa0] sm:$0xff]
    %v664 = vld [vmem:[%s4 + $0xa8] sm:$0xff]
    %v665 = vld [vmem:[%s4 + $0xb0] sm:$0xff]
    %v666 = vld [vmem:[%s4 + $0xb8] sm:$0xff]
    %v667 = vld [vmem:[%s4 + $0xc0] sm:$0xff]
    %v668 = vld [vmem:[%s4 + $0xc8] sm:$0xff]
    %v669 = vld [vmem:[%s4 + $0xd0] sm:$0xff]
    %v670 = vld [vmem:[%s4 + $0xd8] sm:$0xff]
    %v671 = vld [vmem:[%s4 + $0xe0] sm:$0xff]
    %v672 = vld [vmem:[%s4 + $0xe8] sm:$0xff]
    %v673 = vld [vmem:[%s4 + $0xf0] sm:$0xff]
    %v674 = vld [vmem:[%s4 + $0xf8] sm:$0xff]
    %v707 = vunpack.c.l.b16 %v643
    %v708 = vunpack.c.h.b16 %v643
    %v709 = vunpack.c.l.b16 %v644
    %v710 = vunpack.c.h.b16 %v644
    %v711 = vunpack.c.l.b16 %v645
    %v712 = vunpack.c.h.b16 %v645
    %v713 = vunpack.c.l.b16 %v646
    %v714 = vunpack.c.h.b16 %v646
    %v715 = vunpack.c.l.b16 %v647
    %v716 = vunpack.c.h.b16 %v647
    %v717 = vunpack.c.l.b16 %v648
    %v718 = vunpack.c.h.b16 %v648
    %v719 = vunpack.c.l.b16 %v649
    %v720 = vunpack.c.h.b16 %v649
    %v721 = vunpack.c.l.b16 %v650
    %v722 = vunpack.c.h.b16 %v650
    %v723 = vunpack.c.l.b16 %v651
    %v724 = vunpack.c.h.b16 %v651
    %v725 = vunpack.c.l.b16 %v652
    %v726 = vunpack.c.h.b16 %v652
    %v727 = vunpack.c.l.b16 %v653
    %v728 = vunpack.c.h.b16 %v653
    %v729 = vunpack.c.l.b16 %v654
    %v730 = vunpack.c.h.b16 %v654
    %v731 = vunpack.c.l.b16 %v655
    %v732 = vunpack.c.h.b16 %v655
    %v733 = vunpack.c.l.b16 %v656
    %v734 = vunpack.c.h.b16 %v656
    %v735 = vunpack.c.l.b16 %v657
    %v736 = vunpack.c.h.b16 %v657
    %v737 = vunpack.c.l.b16 %v658
    %v738 = vunpack.c.h.b16 %v658
    %v739 = vunpack.c.l.b16 %v659
    %v740 = vunpack.c.h.b16 %v659
    %v741 = vunpack.c.l.b16 %v660
    %v742 = vunpack.c.h.b16 %v660
    %v743 = vunpack.c.l.b16 %v661
    %v744 = vunpack.c.h.b16 %v661
    %v745 = vunpack.c.l.b16 %v662
    %v746 = vunpack.c.h.b16 %v662
    %v747 = vunpack.c.l.b16 %v663
    %v748 = vunpack.c.h.b16 %v663
    %v749 = vunpack.c.l.b16 %v664
    %v750 = vunpack.c.h.b16 %v664
    %v751 = vunpack.c.l.b16 %v665
    %v752 = vunpack.c.h.b16 %v665
    %v753 = vunpack.c.l.b16 %v666
    %v754 = vunpack.c.h.b16 %v666
    %v755 = vunpack.c.l.b16 %v667
    %v756 = vunpack.c.h.b16 %v667
    %v757 = vunpack.c.l.b16 %v668
    %v758 = vunpack.c.h.b16 %v668
    %v759 = vunpack.c.l.b16 %v669
    %v760 = vunpack.c.h.b16 %v669
    %v761 = vunpack.c.l.b16 %v670
    %v762 = vunpack.c.h.b16 %v670
    %v763 = vunpack.c.l.b16 %v671
    %v764 = vunpack.c.h.b16 %v671
    %v765 = vunpack.c.l.b16 %v672
    %v766 = vunpack.c.h.b16 %v672
    %v767 = vunpack.c.l.b16 %v673
    %v768 = vunpack.c.h.b16 %v673
    %v769 = vunpack.c.l.b16 %v674
    %v770 = vunpack.c.h.b16 %v674
    %v771 = vpack.c.b16 %v711, %v707
    %v772 = vpack.c.b16 %v712, %v708
    %v773 = vpack.c.b16 %v713, %v709
    %v774 = vpack.c.b16 %v714, %v710
    %v775 = vpack.c.b16 %v719, %v715
    %v776 = vpack.c.b16 %v720, %v716
    %v777 = vpack.c.b16 %v721, %v717
    %v778 = vpack.c.b16 %v722, %v718
    %v779 = vpack.c.b16 %v727, %v723
    %v780 = vpack.c.b16 %v728, %v724
    %v781 = vpack.c.b16 %v729, %v725
    %v782 = vpack.c.b16 %v730, %v726
    %v783 = vpack.c.b16 %v735, %v731
    %v784 = vpack.c.b16 %v736, %v732
    %v785 = vpack.c.b16 %v737, %v733
    %v786 = vpack.c.b16 %v738, %v734
    %v787 = vpack.c.b16 %v743, %v739
    %v788 = vpack.c.b16 %v744, %v740
    %v789 = vpack.c.b16 %v745, %v741
    %v790 = vpack.c.b16 %v746, %v742
    %v791 = vpack.c.b16 %v751, %v747
    %v792 = vpack.c.b16 %v752, %v748
    %v793 = vpack.c.b16 %v753, %v749
    %v794 = vpack.c.b16 %v754, %v750
    %v795 = vpack.c.b16 %v759, %v755
    %v796 = vpack.c.b16 %v760, %v756
    %v797 = vpack.c.b16 %v761, %v757
    %v798 = vpack.c.b16 %v762, %v758
    %v799 = vpack.c.b16 %v767, %v763
    %v800 = vpack.c.b16 %v768, %v764
    %v801 = vpack.c.b16 %v769, %v765
    %v802 = vpack.c.b16 %v770, %v766
    %835 = vmatprep.subr.bf16.mxu0 %v772
    %836 = vmatpush1.bf16.msra.mxu0 %v771
    %837 = vmatprep.subr.bf16.mxu0 %v776
    %838 = vmatpush1.bf16.msra.mxu0 %v775
    %839 = vmatprep.subr.bf16.mxu0 %v780
    %840 = vmatpush1.bf16.msra.mxu0 %v779
    %841 = vmatprep.subr.bf16.mxu0 %v784
    %842 = vmatpush1.bf16.msra.mxu0 %v783
    %843 = vmatprep.subr.bf16.mxu0 %v788
    %844 = vmatpush1.bf16.msra.mxu0 %v787
    %845 = vmatprep.subr.bf16.mxu0 %v792
    %846 = vmatpush1.bf16.msra.mxu0 %v791
    %847 = vmatprep.subr.bf16.mxu0 %v796
    %848 = vmatpush1.bf16.msra.mxu0 %v795
    %849 = vmatprep.subr.bf16.mxu0 %v800
    %850 = vmatpush1.bf16.msra.mxu0 %v799
    %851 = vmatprep.subr.bf16.mxu0 0
    %852 = vmatpush1.bf16.msra.mxu0 0
    %853 = vmatprep.subr.bf16.mxu0 0
    %854 = vmatpush1.bf16.msra.mxu0 0
    %855 = vmatprep.subr.bf16.mxu0 0
    %856 = vmatpush1.bf16.msra.mxu0 0
    %857 = vmatprep.subr.bf16.mxu0 0
    %858 = vmatpush1.bf16.msra.mxu0 0
    %859 = vmatprep.subr.bf16.mxu0 0
    %860 = vmatpush1.bf16.msra.mxu0 0
    %861 = vmatprep.subr.bf16.mxu0 0
    %862 = vmatpush1.bf16.msra.mxu0 0
    %863 = vmatprep.subr.bf16.mxu0 0
    %864 = vmatpush1.bf16.msra.mxu0 0
    %865 = vmatprep.subr.bf16.mxu0 0
    %866 = vmatpush1.bf16.msra.mxu0 0
    %867 = vmatprep.mubr.bf16.mxu0 0
    %868 = vmatmul.mubr.bf16.gmra.mrb[0].mxu0 %v642
    %v869 = vpop.f32.mrb[0].mxu0
    %v870 = vadd.f32 0.0, %v869
    %v871 = vpop.f32.mrb[0].mxu0
    %v872 = vadd.f32 0.0, %v871
    %v873 = vpop.f32.mrb[0].mxu0
    %v874 = vpop.f32.mrb[0].mxu0
    %875 = vdwg.mxu0
    %876 = vmatprep.subr.bf16.mxu0 %v774
    %877 = vmatpush1.bf16.msra.mxu0 %v773
    %878 = vmatprep.subr.bf16.mxu0 %v778
    %879 = vmatpush1.bf16.msra.mxu0 %v777
    %880 = vmatprep.subr.bf16.mxu0 %v782
    %881 = vmatpush1.bf16.msra.mxu0 %v781
    %882 = vmatprep.subr.bf16.mxu0 %v786
    %883 = vmatpush1.bf16.msra.mxu0 %v785
    %884 = vmatprep.subr.bf16.mxu0 %v790
    %885 = vmatpush1.bf16.msra.mxu0 %v789
    %886 = vmatprep.subr.bf16.mxu0 %v794
    %887 = vmatpush1.bf16.msra.mxu0 %v793
    %888 = vmatprep.subr.bf16.mxu0 %v798
    %889 = vmatpush1.bf16.msra.mxu0 %v797
    %890 = vmatprep.subr.bf16.mxu0 %v802
    %891 = vmatpush1.bf16.msra.mxu0 %v801
    %892 = vmatprep.subr.bf16.mxu0 0
    %893 = vmatpush1.bf16.msra.mxu0 0
    %894 = vmatprep.subr.bf16.mxu0 0
    %895 = vmatpush1.bf16.msra.mxu0 0
    %896 = vmatprep.subr.bf16.mxu0 0
    %897 = vmatpush1.bf16.msra.mxu0 0
    %898 = vmatprep.subr.bf16.mxu0 0
    %899 = vmatpush1.bf16.msra.mxu0 0
    %900 = vmatprep.subr.bf16.mxu0 0
    %901 = vmatpush1.bf16.msra.mxu0 0
    %902 = vmatprep.subr.bf16.mxu0 0
    %903 = vmatpush1.bf16.msra.mxu0 0
    %904 = vmatprep.subr.bf16.mxu0 0
    %905 = vmatpush1.bf16.msra.mxu0 0
    %906 = vmatprep.subr.bf16.mxu0 0
    %907 = vmatpush1.bf16.msra.mxu0 0
    %908 = vmatprep.mubr.bf16.mxu0 0
    %909 = vmatmul.mubr.bf16.gmra.mrb[0].mxu0 %v642
    %v910 = vpop.f32.mrb[0].mxu0
    %v911 = vadd.f32 0.0, %v910
    %v912 = vpop.f32.mrb[0].mxu0
    %v913 = vadd.f32 0.0, %v912
    %v914 = vpop.f32.mrb[0].mxu0
    %v915 = vpop.f32.mrb[0].mxu0
    %916 = vdwg.mxu0
    %v921 = vcombine.low %v870, %v872
    %v922 = vcombine.low %v911, %v913
    %v924 = vunpack.c.l.s4 1966171168
    %v925 = vunpack.c.0.s8 %v924
    %v926 = vlaneseq
    %v927 = vshrl.u32 %v926, 7
    %v928 = vsub.s32 %v925, %v927
    %v929 = vrot.slane %v921, %v928
    %v931 = vunpack.c.l.s4 1966171168
    %v932 = vunpack.c.0.s8 %v931
    %v933 = vlaneseq
    %v934 = vshrl.u32 %v933, 7
    %v935 = vsub.s32 %v932, %v934
    %v936 = vrot.slane %v922, %v935
    %v937 = vcombine.low %v929, %v936
    %v939 = vunpack.c.l.s4 1966171168
    %v940 = vunpack.c.0.s8 %v939
    %v941 = vlaneseq
    %v942 = vshrl.u32 %v941, 7
    %v943 = vsub.s32 %v940, %v942
    %v944 = vrot.slane %v937, %v943
    %v946 = vadd.f32 %v641, %v944
    %v947 = vmul.f32 %v946, 0.5
    %v948 = vtanh.pop %v947
    %v949 = vadd.f32 %v948, 1.0
    %v950 = vmul.f32 %v949, 0.5
    %v952 = vrot.slane %v946, 3
    %v954 = vtanh.pop %v952
    %v956 = vrot.slane %v950, 1
    %v958 = vmul.f32 %v956, %v627
    %v959 = vmul.f32 %v950, %v954
    %v960 = vadd.f32 %v958, %v959
    %v961 = vtanh.pop %v960
    %v962 = vrot.slane %v950, 2
    %v964 = vmul.f32 %v962, %v961
    %s965 = sld [smem:[#allocation5 + $0x1]]
    %p966 = scmp.eq.s32.totalorder %s965, 1
    // Predicated region
    $region78: #{tpu_custom_call.1} parent=1 // pred_check
      %p967 = pneg %p966
    $region79: #{tpu_custom_call.1} parent=1 // pred_check_branch
      %969 = sbr.rel (%p967) target = $region81
    $region80: #{tpu_custom_call.1} parent=1 // pred_region
      %s970 = sld [smem:[#allocation9 + $0x1]]
      %s971 = scalar_lea.vmem [#allocation3], %s970
      %972 = vst [vmem:[%s971] sm:$0x1] %v964
    $region81: #{tpu_custom_call.1} parent=1 // pred_fallthru
      _
    %s973 = scalar_lea.vmem [#allocation2], 2
    %v974 = vld [vmem:[%s973] ss:$8 sm:$0xf]
    %v975 = vpack.c.bf16 %v964, %v964
    %v976 = vld [vmem:[%s4] sm:$0xff]
    %v977 = vld [vmem:[%s4 + $0x8] sm:$0xff]
    %v978 = vld [vmem:[%s4 + $0x10] sm:$0xff]
    %v979 = vld [vmem:[%s4 + $0x18] sm:$0xff]
    %v980 = vld [vmem:[%s4 + $0x20] sm:$0xff]
    %v981 = vld [vmem:[%s4 + $0x28] sm:$0xff]
    %v982 = vld [vmem:[%s4 + $0x30] sm:$0xff]
    %v983 = vld [vmem:[%s4 + $0x38] sm:$0xff]
    %v984 = vld [vmem:[%s4 + $0x40] sm:$0xff]
    %v985 = vld [vmem:[%s4 + $0x48] sm:$0xff]
    %v986 = vld [vmem:[%s4 + $0x50] sm:$0xff]
    %v987 = vld [vmem:[%s4 + $0x58] sm:$0xff]
    %v988 = vld [vmem:[%s4 + $0x60] sm:$0xff]
    %v989 = vld [vmem:[%s4 + $0x68] sm:$0xff]
    %v990 = vld [vmem:[%s4 + $0x70] sm:$0xff]
    %v991 = vld [vmem:[%s4 + $0x78] sm:$0xff]
    %v992 = vld [vmem:[%s4 + $0x80] sm:$0xff]
    %v993 = vld [vmem:[%s4 + $0x88] sm:$0xff]
    %v994 = vld [vmem:[%s4 + $0x90] sm:$0xff]
    %v995 = vld [vmem:[%s4 + $0x98] sm:$0xff]
    %v996 = vld [vmem:[%s4 + $0xa0] sm:$0xff]
    %v997 = vld [vmem:[%s4 + $0xa8] sm:$0xff]
    %v998 = vld [vmem:[%s4 + $0xb0] sm:$0xff]
    %v999 = vld [vmem:[%s4 + $0xb8] sm:$0xff]
    %v1000 = vld [vmem:[%s4 + $0xc0] sm:$0xff]
    %v1001 = vld [vmem:[%s4 + $0xc8] sm:$0xff]
    %v1002 = vld [vmem:[%s4 + $0xd0] sm:$0xff]
    %v1003 = vld [vmem:[%s4 + $0xd8] sm:$0xff]
    %v1004 = vld [vmem:[%s4 + $0xe0] sm:$0xff]
    %v1005 = vld [vmem:[%s4 + $0xe8] sm:$0xff]
    %v1006 = vld [vmem:[%s4 + $0xf0] sm:$0xff]
    %v1007 = vld [vmem:[%s4 + $0xf8] sm:$0xff]
    %v1040 = vunpack.c.l.b16 %v976
    %v1041 = vunpack.c.h.b16 %v976
    %v1042 = vunpack.c.l.b16 %v977
    %v1043 = vunpack.c.h.b16 %v977
    %v1044 = vunpack.c.l.b16 %v978
    %v1045 = vunpack.c.h.b16 %v978
    %v1046 = vunpack.c.l.b16 %v979
    %v1047 = vunpack.c.h.b16 %v979
    %v1048 = vunpack.c.l.b16 %v980
    %v1049 = vunpack.c.h.b16 %v980
    %v1050 = vunpack.c.l.b16 %v981
    %v1051 = vunpack.c.h.b16 %v981
    %v1052 = vunpack.c.l.b16 %v982
    %v1053 = vunpack.c.h.b16 %v982
    %v1054 = vunpack.c.l.b16 %v983
    %v1055 = vunpack.c.h.b16 %v983
    %v1056 = vunpack.c.l.b16 %v984
    %v1057 = vunpack.c.h.b16 %v984
    %v1058 = vunpack.c.l.b16 %v985
    %v1059 = vunpack.c.h.b16 %v985
    %v1060 = vunpack.c.l.b16 %v986
    %v1061 = vunpack.c.h.b16 %v986
    %v1062 = vunpack.c.l.b16 %v987
    %v1063 = vunpack.c.h.b16 %v987
    %v1064 = vunpack.c.l.b16 %v988
    %v1065 = vunpack.c.h.b16 %v988
    %v1066 = vunpack.c.l.b16 %v989
    %v1067 = vunpack.c.h.b16 %v989
    %v1068 = vunpack.c.l.b16 %v990
    %v1069 = vunpack.c.h.b16 %v990
    %v1070 = vunpack.c.l.b16 %v991
    %v1071 = vunpack.c.h.b16 %v991
    %v1072 = vunpack.c.l.b16 %v992
    %v1073 = vunpack.c.h.b16 %v992
    %v1074 = vunpack.c.l.b16 %v993
    %v1075 = vunpack.c.h.b16 %v993
    %v1076 = vunpack.c.l.b16 %v994
    %v1077 = vunpack.c.h.b16 %v994
    %v1078 = vunpack.c.l.b16 %v995
    %v1079 = vunpack.c.h.b16 %v995
    %v1080 = vunpack.c.l.b16 %v996
    %v1081 = vunpack.c.h.b16 %v996
    %v1082 = vunpack.c.l.b16 %v997
    %v1083 = vunpack.c.h.b16 %v997
    %v1084 = vunpack.c.l.b16 %v998
    %v1085 = vunpack.c.h.b16 %v998
    %v1086 = vunpack.c.l.b16 %v999
    %v1087 = vunpack.c.h.b16 %v999
    %v1088 = vunpack.c.l.b16 %v1000
    %v1089 = vunpack.c.h.b16 %v1000
    %v1090 = vunpack.c.l.b16 %v1001
    %v1091 = vunpack.c.h.b16 %v1001
    %v1092 = vunpack.c.l.b16 %v1002
    %v1093 = vunpack.c.h.b16 %v1002
    %v1094 = vunpack.c.l.b16 %v1003
    %v1095 = vunpack.c.h.b16 %v1003
    %v1096 = vunpack.c.l.b16 %v1004
    %v1097 = vunpack.c.h.b16 %v1004
    %v1098 = vunpack.c.l.b16 %v1005
    %v1099 = vunpack.c.h.b16 %v1005
    %v1100 = vunpack.c.l.b16 %v1006
    %v1101 = vunpack.c.h.b16 %v1006
    %v1102 = vunpack.c.l.b16 %v1007
    %v1103 = vunpack.c.h.b16 %v1007
    %v1104 = vpack.c.b16 %v1044, %v1040
    %v1105 = vpack.c.b16 %v1045, %v1041
    %v1106 = vpack.c.b16 %v1046, %v1042
    %v1107 = vpack.c.b16 %v1047, %v1043
    %v1108 = vpack.c.b16 %v1052, %v1048
    %v1109 = vpack.c.b16 %v1053, %v1049
    %v1110 = vpack.c.b16 %v1054, %v1050
    %v1111 = vpack.c.b16 %v1055, %v1051
    %v1112 = vpack.c.b16 %v1060, %v1056
    %v1113 = vpack.c.b16 %v1061, %v1057
    %v1114 = vpack.c.b16 %v1062, %v1058
    %v1115 = vpack.c.b16 %v1063, %v1059
    %v1116 = vpack.c.b16 %v1068, %v1064
    %v1117 = vpack.c.b16 %v1069, %v1065
    %v1118 = vpack.c.b16 %v1070, %v1066
    %v1119 = vpack.c.b16 %v1071, %v1067
    %v1120 = vpack.c.b16 %v1076, %v1072
    %v1121 = vpack.c.b16 %v1077, %v1073
    %v1122 = vpack.c.b16 %v1078, %v1074
    %v1123 = vpack.c.b16 %v1079, %v1075
    %v1124 = vpack.c.b16 %v1084, %v1080
    %v1125 = vpack.c.b16 %v1085, %v1081
    %v1126 = vpack.c.b16 %v1086, %v1082
    %v1127 = vpack.c.b16 %v1087, %v1083
    %v1128 = vpack.c.b16 %v1092, %v1088
    %v1129 = vpack.c.b16 %v1093, %v1089
    %v1130 = vpack.c.b16 %v1094, %v1090
    %v1131 = vpack.c.b16 %v1095, %v1091
    %v1132 = vpack.c.b16 %v1100, %v1096
    %v1133 = vpack.c.b16 %v1101, %v1097
    %v1134 = vpack.c.b16 %v1102, %v1098
    %v1135 = vpack.c.b16 %v1103, %v1099
    %1168 = vmatprep.subr.bf16.mxu0 %v1105
    %1169 = vmatpush1.bf16.msra.mxu0 %v1104
    %1170 = vmatprep.subr.bf16.mxu0 %v1109
    %1171 = vmatpush1.bf16.msra.mxu0 %v1108
    %1172 = vmatprep.subr.bf16.mxu0 %v1113
    %1173 = vmatpush1.bf16.msra.mxu0 %v1112
    %1174 = vmatprep.subr.bf16.mxu0 %v1117
    %1175 = vmatpush1.bf16.msra.mxu0 %v1116
    %1176 = vmatprep.subr.bf16.mxu0 %v1121
    %1177 = vmatpush1.bf16.msra.mxu0 %v1120
    %1178 = vmatprep.subr.bf16.mxu0 %v1125
    %1179 = vmatpush1.bf16.msra.mxu0 %v1124
    %1180 = vmatprep.subr.bf16.mxu0 %v1129
    %1181 = vmatpush1.bf16.msra.mxu0 %v1128
    %1182 = vmatprep.subr.bf16.mxu0 %v1133
    %1183 = vmatpush1.bf16.msra.mxu0 %v1132
    %1184 = vmatprep.subr.bf16.mxu0 0
    %1185 = vmatpush1.bf16.msra.mxu0 0
    %1186 = vmatprep.subr.bf16.mxu0 0
    %1187 = vmatpush1.bf16.msra.mxu0 0
    %1188 = vmatprep.subr.bf16.mxu0 0
    %1189 = vmatpush1.bf16.msra.mxu0 0
    %1190 = vmatprep.subr.bf16.mxu0 0
    %1191 = vmatpush1.bf16.msra.mxu0 0
    %1192 = vmatprep.subr.bf16.mxu0 0
    %1193 = vmatpush1.bf16.msra.mxu0 0
    %1194 = vmatprep.subr.bf16.mxu0 0
    %1195 = vmatpush1.bf16.msra.mxu0 0
    %1196 = vmatprep.subr.bf16.mxu0 0
    %1197 = vmatpush1.bf16.msra.mxu0 0
    %1198 = vmatprep.subr.bf16.mxu0 0
    %1199 = vmatpush1.bf16.msra.mxu0 0
    %1200 = vmatprep.mubr.bf16.mxu0 0
    %1201 = vmatmul.mubr.bf16.gmra.mrb[0].mxu0 %v975
    %v1202 = vpop.f32.mrb[0].mxu0
    %v1203 = vadd.f32 0.0, %v1202
    %v1204 = vpop.f32.mrb[0].mxu0
    %v1205 = vadd.f32 0.0, %v1204
    %v1206 = vpop.f32.mrb[0].mxu0
    %v1207 = vpop.f32.mrb[0].mxu0
    %1208 = vdwg.mxu0
    %1209 = vmatprep.subr.bf16.mxu0 %v1107
    %1210 = vmatpush1.bf16.msra.mxu0 %v1106
    %1211 = vmatprep.subr.bf16.mxu0 %v1111
    %1212 = vmatpush1.bf16.msra.mxu0 %v1110
    %1213 = vmatprep.subr.bf16.mxu0 %v1115
    %1214 = vmatpush1.bf16.msra.mxu0 %v1114
    %1215 = vmatprep.subr.bf16.mxu0 %v1119
    %1216 = vmatpush1.bf16.msra.mxu0 %v1118
    %1217 = vmatprep.subr.bf16.mxu0 %v1123
    %1218 = vmatpush1.bf16.msra.mxu0 %v1122
    %1219 = vmatprep.subr.bf16.mxu0 %v1127
    %1220 = vmatpush1.bf16.msra.mxu0 %v1126
    %1221 = vmatprep.subr.bf16.mxu0 %v1131
    %1222 = vmatpush1.bf16.msra.mxu0 %v1130
    %1223 = vmatprep.subr.bf16.mxu0 %v1135
    %1224 = vmatpush1.bf16.msra.mxu0 %v1134
    %1225 = vmatprep.subr.bf16.mxu0 0
    %1226 = vmatpush1.bf16.msra.mxu0 0
    %1227 = vmatprep.subr.bf16.mxu0 0
    %1228 = vmatpush1.bf16.msra.mxu0 0
    %1229 = vmatprep.subr.bf16.mxu0 0
    %1230 = vmatpush1.bf16.msra.mxu0 0
    %1231 = vmatprep.subr.bf16.mxu0 0
    %1232 = vmatpush1.bf16.msra.mxu0 0
    %1233 = vmatprep.subr.bf16.mxu0 0
    %1234 = vmatpush1.bf16.msra.mxu0 0
    %1235 = vmatprep.subr.bf16.mxu0 0
    %1236 = vmatpush1.bf16.msra.mxu0 0
    %1237 = vmatprep.subr.bf16.mxu0 0
    %1238 = vmatpush1.bf16.msra.mxu0 0
    %1239 = vmatprep.subr.bf16.mxu0 0
    %1240 = vmatpush1.bf16.msra.mxu0 0
    %1241 = vmatprep.mubr.bf16.mxu0 0
    %1242 = vmatmul.mubr.bf16.gmra.mrb[0].mxu0 %v975
    %v1243 = vpop.f32.mrb[0].mxu0
    %v1244 = vadd.f32 0.0, %v1243
    %v1245 = vpop.f32.mrb[0].mxu0
    %v1246 = vadd.f32 0.0, %v1245
    %v1247 = vpop.f32.mrb[0].mxu0
    %v1248 = vpop.f32.mrb[0].mxu0
    %1249 = vdwg.mxu0
    %v1254 = vcombine.low %v1203, %v1205
    %v1255 = vcombine.low %v1244, %v1246
    %v1257 = vunpack.c.l.s4 1966171168
    %v1258 = vunpack.c.0.s8 %v1257
    %v1259 = vlaneseq
    %v1260 = vshrl.u32 %v1259, 7
    %v1261 = vsub.s32 %v1258, %v1260
    %v1262 = vrot.slane %v1254, %v1261
    %v1264 = vunpack.c.l.s4 1966171168
    %v1265 = vunpack.c.0.s8 %v1264
    %v1266 = vlaneseq
    %v1267 = vshrl.u32 %v1266, 7
    %v1268 = vsub.s32 %v1265, %v1267
    %v1269 = vrot.slane %v1255, %v1268
    %v1270 = vcombine.low %v1262, %v1269
    %v1272 = vunpack.c.l.s4 1966171168
    %v1273 = vunpack.c.0.s8 %v1272
    %v1274 = vlaneseq
    %v1275 = vshrl.u32 %v1274, 7
    %v1276 = vsub.s32 %v1273, %v1275
    %v1277 = vrot.slane %v1270, %v1276
    %v1279 = vadd.f32 %v974, %v1277
    %v1280 = vmul.f32 %v1279, 0.5
    %v1281 = vtanh.pop %v1280
    %v1282 = vadd.f32 %v1281, 1.0
    %v1283 = vmul.f32 %v1282, 0.5
    %v1285 = vrot.slane %v1279, 3
    %v1287 = vtanh.pop %v1285
    %v1289 = vrot.slane %v1283, 1
    %v1291 = vmul.f32 %v1289, %v960
    %v1292 = vmul.f32 %v1283, %v1287
    %v1293 = vadd.f32 %v1291, %v1292
    %v1294 = vtanh.pop %v1293
    %v1295 = vrot.slane %v1283, 2
    %v1297 = vmul.f32 %v1295, %v1294
    %s1298 = sld [smem:[#allocation5 + $0x2]]
    %p1299 = scmp.eq.s32.totalorder %s1298, 1
    // Predicated region
    $region82: #{tpu_custom_call.1} parent=1 // pred_check
      %p1300 = pneg %p1299
    $region83: #{tpu_custom_call.1} parent=1 // pred_check_branch
      %1302 = sbr.rel (%p1300) target = $region85
    $region84: #{tpu_custom_call.1} parent=1 // pred_region
      %s1303 = sld [smem:[#allocation9 + $0x2]]
      %s1304 = scalar_lea.vmem [#allocation3], %s1303
      %1305 = vst [vmem:[%s1304] sm:$0x1] %v1297
    $region85: #{tpu_custom_call.1} parent=1 // pred_fallthru
      _
    %s1306 = scalar_lea.vmem [#allocation2], 3
    %v1307 = vld [vmem:[%s1306] ss:$8 sm:$0xf]
    %v1308 = vpack.c.bf16 %v1297, %v1297
    %v1309 = vld [vmem:[%s4] sm:$0xff]
    %v1310 = vld [vmem:[%s4 + $0x8] sm:$0xff]
    %v1311 = vld [vmem:[%s4 + $0x10] sm:$0xff]
    %v1312 = vld [vmem:[%s4 + $0x18] sm:$0xff]
    %v1313 = vld [vmem:[%s4 + $0x20] sm:$0xff]
    %v1314 = vld [vmem:[%s4 + $0x28] sm:$0xff]
    %v1315 = vld [vmem:[%s4 + $0x30] sm:$0xff]
    %v1316 = vld [vmem:[%s4 + $0x38] sm:$0xff]
    %v1317 = vld [vmem:[%s4 + $0x40] sm:$0xff]
    %v1318 = vld [vmem:[%s4 + $0x48] sm:$0xff]
    %v1319 = vld [vmem:[%s4 + $0x50] sm:$0xff]
    %v1320 = vld [vmem:[%s4 + $0x58] sm:$0xff]
    %v1321 = vld [vmem:[%s4 + $0x60] sm:$0xff]
    %v1322 = vld [vmem:[%s4 + $0x68] sm:$0xff]
    %v1323 = vld [vmem:[%s4 + $0x70] sm:$0xff]
    %v1324 = vld [vmem:[%s4 + $0x78] sm:$0xff]
    %v1325 = vld [vmem:[%s4 + $0x80] sm:$0xff]
    %v1326 = vld [vmem:[%s4 + $0x88] sm:$0xff]
    %v1327 = vld [vmem:[%s4 + $0x90] sm:$0xff]
    %v1328 = vld [vmem:[%s4 + $0x98] sm:$0xff]
    %v1329 = vld [vmem:[%s4 + $0xa0] sm:$0xff]
    %v1330 = vld [vmem:[%s4 + $0xa8] sm:$0xff]
    %v1331 = vld [vmem:[%s4 + $0xb0] sm:$0xff]
    %v1332 = vld [vmem:[%s4 + $0xb8] sm:$0xff]
    %v1333 = vld [vmem:[%s4 + $0xc0] sm:$0xff]
    %v1334 = vld [vmem:[%s4 + $0xc8] sm:$0xff]
    %v1335 = vld [vmem:[%s4 + $0xd0] sm:$0xff]
    %v1336 = vld [vmem:[%s4 + $0xd8] sm:$0xff]
    %v1337 = vld [vmem:[%s4 + $0xe0] sm:$0xff]
    %v1338 = vld [vmem:[%s4 + $0xe8] sm:$0xff]
    %v1339 = vld [vmem:[%s4 + $0xf0] sm:$0xff]
    %v1340 = vld [vmem:[%s4 + $0xf8] sm:$0xff]
    %v1373 = vunpack.c.l.b16 %v1309
    %v1374 = vunpack.c.h.b16 %v1309
    %v1375 = vunpack.c.l.b16 %v1310
    %v1376 = vunpack.c.h.b16 %v1310
    %v1377 = vunpack.c.l.b16 %v1311
    %v1378 = vunpack.c.h.b16 %v1311
    %v1379 = vunpack.c.l.b16 %v1312
    %v1380 = vunpack.c.h.b16 %v1312
    %v1381 = vunpack.c.l.b16 %v1313
    %v1382 = vunpack.c.h.b16 %v1313
    %v1383 = vunpack.c.l.b16 %v1314
    %v1384 = vunpack.c.h.b16 %v1314
    %v1385 = vunpack.c.l.b16 %v1315
    %v1386 = vunpack.c.h.b16 %v1315
    %v1387 = vunpack.c.l.b16 %v1316
    %v1388 = vunpack.c.h.b16 %v1316
    %v1389 = vunpack.c.l.b16 %v1317
    %v1390 = vunpack.c.h.b16 %v1317
    %v1391 = vunpack.c.l.b16 %v1318
    %v1392 = vunpack.c.h.b16 %v1318
    %v1393 = vunpack.c.l.b16 %v1319
    %v1394 = vunpack.c.h.b16 %v1319
    %v1395 = vunpack.c.l.b16 %v1320
    %v1396 = vunpack.c.h.b16 %v1320
    %v1397 = vunpack.c.l.b16 %v1321
    %v1398 = vunpack.c.h.b16 %v1321
    %v1399 = vunpack.c.l.b16 %v1322
    %v1400 = vunpack.c.h.b16 %v1322
    %v1401 = vunpack.c.l.b16 %v1323
    %v1402 = vunpack.c.h.b16 %v1323
    %v1403 = vunpack.c.l.b16 %v1324
    %v1404 = vunpack.c.h.b16 %v1324
    %v1405 = vunpack.c.l.b16 %v1325
    %v1406 = vunpack.c.h.b16 %v1325
    %v1407 = vunpack.c.l.b16 %v1326
    %v1408 = vunpack.c.h.b16 %v1326
    %v1409 = vunpack.c.l.b16 %v1327
    %v1410 = vunpack.c.h.b16 %v1327
    %v1411 = vunpack.c.l.b16 %v1328
    %v1412 = vunpack.c.h.b16 %v1328
    %v1413 = vunpack.c.l.b16 %v1329
    %v1414 = vunpack.c.h.b16 %v1329
    %v1415 = vunpack.c.l.b16 %v1330
    %v1416 = vunpack.c.h.b16 %v1330
    %v1417 = vunpack.c.l.b16 %v1331
    %v1418 = vunpack.c.h.b16 %v1331
    %v1419 = vunpack.c.l.b16 %v1332
    %v1420 = vunpack.c.h.b16 %v1332
    %v1421 = vunpack.c.l.b16 %v1333
    %v1422 = vunpack.c.h.b16 %v1333
    %v1423 = vunpack.c.l.b16 %v1334
    %v1424 = vunpack.c.h.b16 %v1334
    %v1425 = vunpack.c.l.b16 %v1335
    %v1426 = vunpack.c.h.b16 %v1335
    %v1427 = vunpack.c.l.b16 %v1336
    %v1428 = vunpack.c.h.b16 %v1336
    %v1429 = vunpack.c.l.b16 %v1337
    %v1430 = vunpack.c.h.b16 %v1337
    %v1431 = vunpack.c.l.b16 %v1338
    %v1432 = vunpack.c.h.b16 %v1338
    %v1433 = vunpack.c.l.b16 %v1339
    %v1434 = vunpack.c.h.b16 %v1339
    %v1435 = vunpack.c.l.b16 %v1340
    %v1436 = vunpack.c.h.b16 %v1340
    %v1437 = vpack.c.b16 %v1377, %v1373
    %v1438 = vpack.c.b16 %v1378, %v1374
    %v1439 = vpack.c.b16 %v1379, %v1375
    %v1440 = vpack.c.b16 %v1380, %v1376
    %v1441 = vpack.c.b16 %v1385, %v1381
    %v1442 = vpack.c.b16 %v1386, %v1382
    %v1443 = vpack.c.b16 %v1387, %v1383
    %v1444 = vpack.c.b16 %v1388, %v1384
    %v1445 = vpack.c.b16 %v1393, %v1389
    %v1446 = vpack.c.b16 %v1394, %v1390
    %v1447 = vpack.c.b16 %v1395, %v1391
    %v1448 = vpack.c.b16 %v1396, %v1392
    %v1449 = vpack.c.b16 %v1401, %v1397
    %v1450 = vpack.c.b16 %v1402, %v1398
    %v1451 = vpack.c.b16 %v1403, %v1399
    %v1452 = vpack.c.b16 %v1404, %v1400
    %v1453 = vpack.c.b16 %v1409, %v1405
    %v1454 = vpack.c.b16 %v1410, %v1406
    %v1455 = vpack.c.b16 %v1411, %v1407
    %v1456 = vpack.c.b16 %v1412, %v1408
    %v1457 = vpack.c.b16 %v1417, %v1413
    %v1458 = vpack.c.b16 %v1418, %v1414
    %v1459 = vpack.c.b16 %v1419, %v1415
    %v1460 = vpack.c.b16 %v1420, %v1416
    %v1461 = vpack.c.b16 %v1425, %v1421
    %v1462 = vpack.c.b16 %v1426, %v1422
    %v1463 = vpack.c.b16 %v1427, %v1423
    %v1464 = vpack.c.b16 %v1428, %v1424
    %v1465 = vpack.c.b16 %v1433, %v1429
    %v1466 = vpack.c.b16 %v1434, %v1430
    %v1467 = vpack.c.b16 %v1435, %v1431
    %v1468 = vpack.c.b16 %v1436, %v1432
    %1501 = vmatprep.subr.bf16.mxu0 %v1438
    %1502 = vmatpush1.bf16.msra.mxu0 %v1437
    %1503 = vmatprep.subr.bf16.mxu0 %v1442
    %1504 = vmatpush1.bf16.msra.mxu0 %v1441
    %1505 = vmatprep.subr.bf16.mxu0 %v1446
    %1506 = vmatpush1.bf16.msra.mxu0 %v1445
    %1507 = vmatprep.subr.bf16.mxu0 %v1450
    %1508 = vmatpush1.bf16.msra.mxu0 %v1449
    %1509 = vmatprep.subr.bf16.mxu0 %v1454
    %1510 = vmatpush1.bf16.msra.mxu0 %v1453
    %1511 = vmatprep.subr.bf16.mxu0 %v1458
    %1512 = vmatpush1.bf16.msra.mxu0 %v1457
    %1513 = vmatprep.subr.bf16.mxu0 %v1462
    %1514 = vmatpush1.bf16.msra.mxu0 %v1461
    %1515 = vmatprep.subr.bf16.mxu0 %v1466
    %1516 = vmatpush1.bf16.msra.mxu0 %v1465
    %1517 = vmatprep.subr.bf16.mxu0 0
    %1518 = vmatpush1.bf16.msra.mxu0 0
    %1519 = vmatprep.subr.bf16.mxu0 0
    %1520 = vmatpush1.bf16.msra.mxu0 0
    %1521 = vmatprep.subr.bf16.mxu0 0
    %1522 = vmatpush1.bf16.msra.mxu0 0
    %1523 = vmatprep.subr.bf16.mxu0 0
    %1524 = vmatpush1.bf16.msra.mxu0 0
    %1525 = vmatprep.subr.bf16.mxu0 0
    %1526 = vmatpush1.bf16.msra.mxu0 0
    %1527 = vmatprep.subr.bf16.mxu0 0
    %1528 = vmatpush1.bf16.msra.mxu0 0
    %1529 = vmatprep.subr.bf16.mxu0 0
    %1530 = vmatpush1.bf16.msra.mxu0 0
    %1531 = vmatprep.subr.bf16.mxu0 0
    %1532 = vmatpush1.bf16.msra.mxu0 0
    %1533 = vmatprep.mubr.bf16.mxu0 0
    %1534 = vmatmul.mubr.bf16.gmra.mrb[0].mxu0 %v1308
    %v1535 = vpop.f32.mrb[0].mxu0
    %v1536 = vadd.f32 0.0, %v1535
    %v1537 = vpop.f32.mrb[0].mxu0
    %v1538 = vadd.f32 0.0, %v1537
    %v1539 = vpop.f32.mrb[0].mxu0
    %v1540 = vpop.f32.mrb[0].mxu0
    %1541 = vdwg.mxu0
    %1542 = vmatprep.subr.bf16.mxu0 %v1440
    %1543 = vmatpush1.bf16.msra.mxu0 %v1439
    %1544 = vmatprep.subr.bf16.mxu0 %v1444
    %1545 = vmatpush1.bf16.msra.mxu0 %v1443
    %1546 = vmatprep.subr.bf16.mxu0 %v1448
    %1547 = vmatpush1.bf16.msra.mxu0 %v1447
    %1548 = vmatprep.subr.bf16.mxu0 %v1452
    %1549 = vmatpush1.bf16.msra.mxu0 %v1451
    %1550 = vmatprep.subr.bf16.mxu0 %v1456
    %1551 = vmatpush1.bf16.msra.mxu0 %v1455
    %1552 = vmatprep.subr.bf16.mxu0 %v1460
    %1553 = vmatpush1.bf16.msra.mxu0 %v1459
    %1554 = vmatprep.subr.bf16.mxu0 %v1464
    %1555 = vmatpush1.bf16.msra.mxu0 %v1463
    %1556 = vmatprep.subr.bf16.mxu0 %v1468
    %1557 = vmatpush1.bf16.msra.mxu0 %v1467
    %1558 = vmatprep.subr.bf16.mxu0 0
    %1559 = vmatpush1.bf16.msra.mxu0 0
    %1560 = vmatprep.subr.bf16.mxu0 0
    %1561 = vmatpush1.bf16.msra.mxu0 0
    %1562 = vmatprep.subr.bf16.mxu0 0
    %1563 = vmatpush1.bf16.msra.mxu0 0
    %1564 = vmatprep.subr.bf16.mxu0 0
    %1565 = vmatpush1.bf16.msra.mxu0 0
    %1566 = vmatprep.subr.bf16.mxu0 0
    %1567 = vmatpush1.bf16.msra.mxu0 0
    %1568 = vmatprep.subr.bf16.mxu0 0
    %1569 = vmatpush1.bf16.msra.mxu0 0
    %1570 = vmatprep.subr.bf16.mxu0 0
    %1571 = vmatpush1.bf16.msra.mxu0 0
    %1572 = vmatprep.subr.bf16.mxu0 0
    %1573 = vmatpush1.bf16.msra.mxu0 0
    %1574 = vmatprep.mubr.bf16.mxu0 0
    %1575 = vmatmul.mubr.bf16.gmra.mrb[0].mxu0 %v1308
    %v1576 = vpop.f32.mrb[0].mxu0
    %v1577 = vadd.f32 0.0, %v1576
    %v1578 = vpop.f32.mrb[0].mxu0
    %v1579 = vadd.f32 0.0, %v1578
    %v1580 = vpop.f32.mrb[0].mxu0
    %v1581 = vpop.f32.mrb[0].mxu0
    %1582 = vdwg.mxu0
    %v1587 = vcombine.low %v1536, %v1538
    %v1588 = vcombine.low %v1577, %v1579
    %v1590 = vunpack.c.l.s4 1966171168
    %v1591 = vunpack.c.0.s8 %v1590
    %v1592 = vlaneseq
    %v1593 = vshrl.u32 %v1592, 7
    %v1594 = vsub.s32 %v1591, %v1593
    %v1595 = vrot.slane %v1587, %v1594
    %v1597 = vunpack.c.l.s4 1966171168
    %v1598 = vunpack.c.0.s8 %v1597
    %v1599 = vlaneseq
    %v1600 = vshrl.u32 %v1599, 7
    %v1601 = vsub.s32 %v1598, %v1600
    %v1602 = vrot.slane %v1588, %v1601
    %v1603 = vcombine.low %v1595, %v1602
    %v1605 = vunpack.c.l.s4 1966171168
    %v1606 = vunpack.c.0.s8 %v1605
    %v1607 = vlaneseq
    %v1608 = vshrl.u32 %v1607, 7
    %v1609 = vsub.s32 %v1606, %v1608
    %v1610 = vrot.slane %v1603, %v1609
    %v1612 = vadd.f32 %v1307, %v1610
    %v1613 = vmul.f32 %v1612, 0.5
    %v1614 = vtanh.pop %v1613
    %v1615 = vadd.f32 %v1614, 1.0
    %v1616 = vmul.f32 %v1615, 0.5
    %v1618 = vrot.slane %v1612, 3
    %v1620 = vtanh.pop %v1618
    %v1622 = vrot.slane %v1616, 1
    %v1624 = vmul.f32 %v1622, %v1293
    %v1625 = vmul.f32 %v1616, %v1620
    %v1626 = vadd.f32 %v1624, %v1625
    %v1627 = vtanh.pop %v1626
    %v1628 = vrot.slane %v1616, 2
    %v1630 = vmul.f32 %v1628, %v1627
    %s1631 = sld [smem:[#allocation5 + $0x3]]
    %p1632 = scmp.eq.s32.totalorder %s1631, 1
    // Predicated region
    $region86: #{tpu_custom_call.1} parent=1 // pred_check
      %p1633 = pneg %p1632
    $region87: #{tpu_custom_call.1} parent=1 // pred_check_branch
      %1635 = sbr.rel (%p1633) target = $region89
    $region88: #{tpu_custom_call.1} parent=1 // pred_region
      %s1636 = sld [smem:[#allocation9 + $0x3]]
      %s1637 = scalar_lea.vmem [#allocation3], %s1636
      %1638 = vst [vmem:[%s1637] sm:$0x1] %v1630
    $region89: #{tpu_custom_call.1} parent=1 // pred_fallthru
      _
    %s1639 = scalar_lea.vmem [#allocation2], 4
    %v1640 = vld [vmem:[%s1639] ss:$8 sm:$0xf]
    %v1641 = vpack.c.bf16 %v1630, %v1630
    %v1642 = vld [vmem:[%s4] sm:$0xff]
    %v1643 = vld [vmem:[%s4 + $0x8] sm:$0xff]
    %v1644 = vld [vmem:[%s4 + $0x10] sm:$0xff]
    %v1645 = vld [vmem:[%s4 + $0x18] sm:$0xff]
    %v1646 = vld [vmem:[%s4 + $0x20] sm:$0xff]
    %v1647 = vld [vmem:[%s4 + $0x28] sm:$0xff]
    %v1648 = vld [vmem:[%s4 + $0x30] sm:$0xff]
    %v1649 = vld [vmem:[%s4 + $0x38] sm:$0xff]
    %v1650 = vld [vmem:[%s4 + $0x40] sm:$0xff]
    %v1651 = vld [vmem:[%s4 + $0x48] sm:$0xff]
    %v1652 = vld [vmem:[%s4 + $0x50] sm:$0xff]
    %v1653 = vld [vmem:[%s4 + $0x58] sm:$0xff]
    %v1654 = vld [vmem:[%s4 + $0x60] sm:$0xff]
    %v1655 = vld [vmem:[%s4 + $0x68] sm:$0xff]
    %v1656 = vld [vmem:[%s4 + $0x70] sm:$0xff]
    %v1657 = vld [vmem:[%s4 + $0x78] sm:$0xff]
    %v1658 = vld [vmem:[%s4 + $0x80] sm:$0xff]
    %v1659 = vld [vmem:[%s4 + $0x88] sm:$0xff]
    %v1660 = vld [vmem:[%s4 + $0x90] sm:$0xff]
    %v1661 = vld [vmem:[%s4 + $0x98] sm:$0xff]
    %v1662 = vld [vmem:[%s4 + $0xa0] sm:$0xff]
    %v1663 = vld [vmem:[%s4 + $0xa8] sm:$0xff]
    %v1664 = vld [vmem:[%s4 + $0xb0] sm:$0xff]
    %v1665 = vld [vmem:[%s4 + $0xb8] sm:$0xff]
    %v1666 = vld [vmem:[%s4 + $0xc0] sm:$0xff]
    %v1667 = vld [vmem:[%s4 + $0xc8] sm:$0xff]
    %v1668 = vld [vmem:[%s4 + $0xd0] sm:$0xff]
    %v1669 = vld [vmem:[%s4 + $0xd8] sm:$0xff]
    %v1670 = vld [vmem:[%s4 + $0xe0] sm:$0xff]
    %v1671 = vld [vmem:[%s4 + $0xe8] sm:$0xff]
    %v1672 = vld [vmem:[%s4 + $0xf0] sm:$0xff]
    %v1673 = vld [vmem:[%s4 + $0xf8] sm:$0xff]
    %v1706 = vunpack.c.l.b16 %v1642
    %v1707 = vunpack.c.h.b16 %v1642
    %v1708 = vunpack.c.l.b16 %v1643
    %v1709 = vunpack.c.h.b16 %v1643
    %v1710 = vunpack.c.l.b16 %v1644
    %v1711 = vunpack.c.h.b16 %v1644
    %v1712 = vunpack.c.l.b16 %v1645
    %v1713 = vunpack.c.h.b16 %v1645
    %v1714 = vunpack.c.l.b16 %v1646
    %v1715 = vunpack.c.h.b16 %v1646
    %v1716 = vunpack.c.l.b16 %v1647
    %v1717 = vunpack.c.h.b16 %v1647
    %v1718 = vunpack.c.l.b16 %v1648
    %v1719 = vunpack.c.h.b16 %v1648
    %v1720 = vunpack.c.l.b16 %v1649
    %v1721 = vunpack.c.h.b16 %v1649
    %v1722 = vunpack.c.l.b16 %v1650
    %v1723 = vunpack.c.h.b16 %v1650
    %v1724 = vunpack.c.l.b16 %v1651
    %v1725 = vunpack.c.h.b16 %v1651
    %v1726 = vunpack.c.l.b16 %v1652
    %v1727 = vunpack.c.h.b16 %v1652
    %v1728 = vunpack.c.l.b16 %v1653
    %v1729 = vunpack.c.h.b16 %v1653
    %v1730 = vunpack.c.l.b16 %v1654
    %v1731 = vunpack.c.h.b16 %v1654
    %v1732 = vunpack.c.l.b16 %v1655
    %v1733 = vunpack.c.h.b16 %v1655
    %v1734 = vunpack.c.l.b16 %v1656
    %v1735 = vunpack.c.h.b16 %v1656
    %v1736 = vunpack.c.l.b16 %v1657
    %v1737 = vunpack.c.h.b16 %v1657
    %v1738 = vunpack.c.l.b16 %v1658
    %v1739 = vunpack.c.h.b16 %v1658
    %v1740 = vunpack.c.l.b16 %v1659
    %v1741 = vunpack.c.h.b16 %v1659
    %v1742 = vunpack.c.l.b16 %v1660
    %v1743 = vunpack.c.h.b16 %v1660
    %v1744 = vunpack.c.l.b16 %v1661
    %v1745 = vunpack.c.h.b16 %v1661
    %v1746 = vunpack.c.l.b16 %v1662
    %v1747 = vunpack.c.h.b16 %v1662
    %v1748 = vunpack.c.l.b16 %v1663
    %v1749 = vunpack.c.h.b16 %v1663
    %v1750 = vunpack.c.l.b16 %v1664
    %v1751 = vunpack.c.h.b16 %v1664
    %v1752 = vunpack.c.l.b16 %v1665
    %v1753 = vunpack.c.h.b16 %v1665
    %v1754 = vunpack.c.l.b16 %v1666
    %v1755 = vunpack.c.h.b16 %v1666
    %v1756 = vunpack.c.l.b16 %v1667
    %v1757 = vunpack.c.h.b16 %v1667
    %v1758 = vunpack.c.l.b16 %v1668
    %v1759 = vunpack.c.h.b16 %v1668
    %v1760 = vunpack.c.l.b16 %v1669
    %v1761 = vunpack.c.h.b16 %v1669
    %v1762 = vunpack.c.l.b16 %v1670
    %v1763 = vunpack.c.h.b16 %v1670
    %v1764 = vunpack.c.l.b16 %v1671
    %v1765 = vunpack.c.h.b16 %v1671
    %v1766 = vunpack.c.l.b16 %v1672
    %v1767 = vunpack.c.h.b16 %v1672
    %v1768 = vunpack.c.l.b16 %v1673
    %v1769 = vunpack.c.h.b16 %v1673
    %v1770 = vpack.c.b16 %v1710, %v1706
    %v1771 = vpack.c.b16 %v1711, %v1707
    %v1772 = vpack.c.b16 %v1712, %v1708
    %v1773 = vpack.c.b16 %v1713, %v1709
    %v1774 = vpack.c.b16 %v1718, %v1714
    %v1775 = vpack.c.b16 %v1719, %v1715
    %v1776 = vpack.c.b16 %v1720, %v1716
    %v1777 = vpack.c.b16 %v1721, %v1717
    %v1778 = vpack.c.b16 %v1726, %v1722
    %v1779 = vpack.c.b16 %v1727, %v1723
    %v1780 = vpack.c.b16 %v1728, %v1724
    %v1781 = vpack.c.b16 %v1729, %v1725
    %v1782 = vpack.c.b16 %v1734, %v1730
    %v1783 = vpack.c.b16 %v1735, %v1731
    %v1784 = vpack.c.b16 %v1736, %v1732
    %v1785 = vpack.c.b16 %v1737, %v1733
    %v1786 = vpack.c.b16 %v1742, %v1738
    %v1787 = vpack.c.b16 %v1743, %v1739
    %v1788 = vpack.c.b16 %v1744, %v1740
    %v1789 = vpack.c.b16 %v1745, %v1741
    %v1790 = vpack.c.b16 %v1750, %v1746
    %v1791 = vpack.c.b16 %v1751, %v1747
    %v1792 = vpack.c.b16 %v1752, %v1748
    %v1793 = vpack.c.b16 %v1753, %v1749
    %v1794 = vpack.c.b16 %v1758, %v1754
    %v1795 = vpack.c.b16 %v1759, %v1755
    %v1796 = vpack.c.b16 %v1760, %v1756
    %v1797 = vpack.c.b16 %v1761, %v1757
    %v1798 = vpack.c.b16 %v1766, %v1762
    %v1799 = vpack.c.b16 %v1767, %v1763
    %v1800 = vpack.c.b16 %v1768, %v1764
    %v1801 = vpack.c.b16 %v1769, %v1765
    %1834 = vmatprep.subr.bf16.mxu0 %v1771
    %1835 = vmatpush1.bf16.msra.mxu0 %v1770
    %1836 = vmatprep.subr.bf16.mxu0 %v1775
    %1837 = vmatpush1.bf16.msra.mxu0 %v1774
    %1838 = vmatprep.subr.bf16.mxu0 %v1779
    %1839 = vmatpush1.bf16.msra.mxu0 %v1778
    %1840 = vmatprep.subr.bf16.mxu0 %v1783
    %1841 = vmatpush1.bf16.msra.mxu0 %v1782
    %1842 = vmatprep.subr.bf16.mxu0 %v1787
    %1843 = vmatpush1.bf16.msra.mxu0 %v1786
    %1844 = vmatprep.subr.bf16.mxu0 %v1791
    %1845 = vmatpush1.bf16.msra.mxu0 %v1790
    %1846 = vmatprep.subr.bf16.mxu0 %v1795
    %1847 = vmatpush1.bf16.msra.mxu0 %v1794
    %1848 = vmatprep.subr.bf16.mxu0 %v1799
    %1849 = vmatpush1.bf16.msra.mxu0 %v1798
    %1850 = vmatprep.subr.bf16.mxu0 0
    %1851 = vmatpush1.bf16.msra.mxu0 0
    %1852 = vmatprep.subr.bf16.mxu0 0
    %1853 = vmatpush1.bf16.msra.mxu0 0
    %1854 = vmatprep.subr.bf16.mxu0 0
    %1855 = vmatpush1.bf16.msra.mxu0 0
    %1856 = vmatprep.subr.bf16.mxu0 0
    %1857 = vmatpush1.bf16.msra.mxu0 0
    %1858 = vmatprep.subr.bf16.mxu0 0
    %1859 = vmatpush1.bf16.msra.mxu0 0
    %1860 = vmatprep.subr.bf16.mxu0 0
    %1861 = vmatpush1.bf16.msra.mxu0 0
    %1862 = vmatprep.subr.bf16.mxu0 0
    %1863 = vmatpush1.bf16.msra.mxu0 0
    %1864 = vmatprep.subr.bf16.mxu0 0
    %1865 = vmatpush1.bf16.msra.mxu0 0
    %1866 = vmatprep.mubr.bf16.mxu0 0
    %1867 = vmatmul.mubr.bf16.gmra.mrb[0].mxu0 %v1641
    %v1868 = vpop.f32.mrb[0].mxu0
    %v1869 = vadd.f32 0.0, %v1868
    %v1870 = vpop.f32.mrb[0].mxu0
    %v1871 = vadd.f32 0.0, %v1870
    %v1872 = vpop.f32.mrb[0].mxu0
    %v1873 = vpop.f32.mrb[0].mxu0
    %1874 = vdwg.mxu0
    %1875 = vmatprep.subr.bf16.mxu0 %v1773
    %1876 = vmatpush1.bf16.msra.mxu0 %v1772
    %1877 = vmatprep.subr.bf16.mxu0 %v1777
    %1878 = vmatpush1.bf16.msra.mxu0 %v1776
    %1879 = vmatprep.subr.bf16.mxu0 %v1781
    %1880 = vmatpush1.bf16.msra.mxu0 %v1780
    %1881 = vmatprep.subr.bf16.mxu0 %v1785
    %1882 = vmatpush1.bf16.msra.mxu0 %v1784
    %1883 = vmatprep.subr.bf16.mxu0 %v1789
    %1884 = vmatpush1.bf16.msra.mxu0 %v1788
    %1885 = vmatprep.subr.bf16.mxu0 %v1793
    %1886 = vmatpush1.bf16.msra.mxu0 %v1792
    %1887 = vmatprep.subr.bf16.mxu0 %v1797
    %1888 = vmatpush1.bf16.msra.mxu0 %v1796
    %1889 = vmatprep.subr.bf16.mxu0 %v1801
    %1890 = vmatpush1.bf16.msra.mxu0 %v1800
    %1891 = vmatprep.subr.bf16.mxu0 0
    %1892 = vmatpush1.bf16.msra.mxu0 0
    %1893 = vmatprep.subr.bf16.mxu0 0
    %1894 = vmatpush1.bf16.msra.mxu0 0
    %1895 = vmatprep.subr.bf16.mxu0 0
    %1896 = vmatpush1.bf16.msra.mxu0 0
    %1897 = vmatprep.subr.bf16.mxu0 0
    %1898 = vmatpush1.bf16.msra.mxu0 0
    %1899 = vmatprep.subr.bf16.mxu0 0
    %1900 = vmatpush1.bf16.msra.mxu0 0
    %1901 = vmatprep.subr.bf16.mxu0 0
    %1902 = vmatpush1.bf16.msra.mxu0 0
    %1903 = vmatprep.subr.bf16.mxu0 0
    %1904 = vmatpush1.bf16.msra.mxu0 0
    %1905 = vmatprep.subr.bf16.mxu0 0
    %1906 = vmatpush1.bf16.msra.mxu0 0
    %1907 = vmatprep.mubr.bf16.mxu0 0
    %1908 = vmatmul.mubr.bf16.gmra.mrb[0].mxu0 %v1641
    %v1909 = vpop.f32.mrb[0].mxu0
    %v1910 = vadd.f32 0.0, %v1909
    %v1911 = vpop.f32.mrb[0].mxu0
    %v1912 = vadd.f32 0.0, %v1911
    %v1913 = vpop.f32.mrb[0].mxu0
    %v1914 = vpop.f32.mrb[0].mxu0
    %1915 = vdwg.mxu0
    %v1920 = vcombine.low %v1869, %v1871
    %v1921 = vcombine.low %v1910, %v1912
    %v1923 = vunpack.c.l.s4 1966171168
    %v1924 = vunpack.c.0.s8 %v1923
    %v1925 = vlaneseq
    %v1926 = vshrl.u32 %v1925, 7
    %v1927 = vsub.s32 %v1924, %v1926
    %v1928 = vrot.slane %v1920, %v1927
    %v1930 = vunpack.c.l.s4 1966171168
    %v1931 = vunpack.c.0.s8 %v1930
    %v1932 = vlaneseq
    %v1933 = vshrl.u32 %v1932, 7
    %v1934 = vsub.s32 %v1931, %v1933
    %v1935 = vrot.slane %v1921, %v1934
    %v1936 = vcombine.low %v1928, %v1935
    %v1938 = vunpack.c.l.s4 1966171168
    %v1939 = vunpack.c.0.s8 %v1938
    %v1940 = vlaneseq
    %v1941 = vshrl.u32 %v1940, 7
    %v1942 = vsub.s32 %v1939, %v1941
    %v1943 = vrot.slane %v1936, %v1942
    %v1945 = vadd.f32 %v1640, %v1943
    %v1946 = vmul.f32 %v1945, 0.5
    %v1947 = vtanh.pop %v1946
    %v1948 = vadd.f32 %v1947, 1.0
    %v1949 = vmul.f32 %v1948, 0.5
    %v1951 = vrot.slane %v1945, 3
    %v1953 = vtanh.pop %v1951
    %v1955 = vrot.slane %v1949, 1
    %v1957 = vmul.f32 %v1955, %v1626
    %v1958 = vmul.f32 %v1949, %v1953
    %v1959 = vadd.f32 %v1957, %v1958
    %v1960 = vtanh.pop %v1959
    %v1961 = vrot.slane %v1949, 2
    %v1963 = vmul.f32 %v1961, %v1960
    %s1964 = sld [smem:[#allocation5 + $0x4]]
    %p1965 = scmp.eq.s32.totalorder %s1964, 1
    // Predicated region
    $region90: #{tpu_custom_call.1} parent=1 // pred_check
      %p1966 = pneg %p1965
    $region91: #{tpu_custom_call.1} parent=1 // pred_check_branch
      %1968 = sbr.rel (%p1966) target = $region93
    $region92: #{tpu_custom_call.1} parent=1 // pred_region
      %s1969 = sld [smem:[#allocation9 + $0x4]]
      %s1970 = scalar_lea.vmem [#allocation3], %s1969
      %1971 = vst [vmem:[%s1970] sm:$0x1] %v1963
    $region93: #{tpu_custom_call.1} parent=1 // pred_fallthru
      _
    %s1972 = scalar_lea.vmem [#allocation2], 5
    %v1973 = vld [vmem:[%s1972] ss:$8 sm:$0xf]
    %v1974 = vpack.c.bf16 %v1963, %v1963
    %v1975 = vld [vmem:[%s4] sm:$0xff]
    %v1976 = vld [vmem:[%s4 + $0x8] sm:$0xff]
    %v1977 = vld [vmem:[%s4 + $0x10] sm:$0xff]
    %v1978 = vld [vmem:[%s4 + $0x18] sm:$0xff]
    %v1979 = vld [vmem:[%s4 + $0x20] sm:$0xff]
    %v1980 = vld [vmem:[%s4 + $0x28] sm:$0xff]
    %v1981 = vld [vmem:[%s4 + $0x30] sm:$0xff]
    %v1982 = vld [vmem:[%s4 + $0x38] sm:$0xff]
    %v1983 = vld [vmem:[%s4 + $0x40] sm:$0xff]
    %v1984 = vld [vmem:[%s4 + $0x48] sm:$0xff]
    %v1985 = vld [vmem:[%s4 + $0x50] sm:$0xff]
    %v1986 = vld [vmem:[%s4 + $0x58] sm:$0xff]
    %v1987 = vld [vmem:[%s4 + $0x60] sm:$0xff]
    %v1988 = vld [vmem:[%s4 + $0x68] sm:$0xff]
    %v1989 = vld [vmem:[%s4 + $0x70] sm:$0xff]
    %v1990 = vld [vmem:[%s4 + $0x78] sm:$0xff]
    %v1991 = vld [vmem:[%s4 + $0x80] sm:$0xff]
    %v1992 = vld [vmem:[%s4 + $0x88] sm:$0xff]
    %v1993 = vld [vmem:[%s4 + $0x90] sm:$0xff]
    %v1994 = vld [vmem:[%s4 + $0x98] sm:$0xff]
    %v1995 = vld [vmem:[%s4 + $0xa0] sm:$0xff]
    %v1996 = vld [vmem:[%s4 + $0xa8] sm:$0xff]
    %v1997 = vld [vmem:[%s4 + $0xb0] sm:$0xff]
    %v1998 = vld [vmem:[%s4 + $0xb8] sm:$0xff]
    %v1999 = vld [vmem:[%s4 + $0xc0] sm:$0xff]
    %v2000 = vld [vmem:[%s4 + $0xc8] sm:$0xff]
    %v2001 = vld [vmem:[%s4 + $0xd0] sm:$0xff]
    %v2002 = vld [vmem:[%s4 + $0xd8] sm:$0xff]
    %v2003 = vld [vmem:[%s4 + $0xe0] sm:$0xff]
    %v2004 = vld [vmem:[%s4 + $0xe8] sm:$0xff]
    %v2005 = vld [vmem:[%s4 + $0xf0] sm:$0xff]
    %v2006 = vld [vmem:[%s4 + $0xf8] sm:$0xff]
    %v2039 = vunpack.c.l.b16 %v1975
    %v2040 = vunpack.c.h.b16 %v1975
    %v2041 = vunpack.c.l.b16 %v1976
    %v2042 = vunpack.c.h.b16 %v1976
    %v2043 = vunpack.c.l.b16 %v1977
    %v2044 = vunpack.c.h.b16 %v1977
    %v2045 = vunpack.c.l.b16 %v1978
    %v2046 = vunpack.c.h.b16 %v1978
    %v2047 = vunpack.c.l.b16 %v1979
    %v2048 = vunpack.c.h.b16 %v1979
    %v2049 = vunpack.c.l.b16 %v1980
    %v2050 = vunpack.c.h.b16 %v1980
    %v2051 = vunpack.c.l.b16 %v1981
    %v2052 = vunpack.c.h.b16 %v1981
    %v2053 = vunpack.c.l.b16 %v1982
    %v2054 = vunpack.c.h.b16 %v1982
    %v2055 = vunpack.c.l.b16 %v1983
    %v2056 = vunpack.c.h.b16 %v1983
    %v2057 = vunpack.c.l.b16 %v1984
    %v2058 = vunpack.c.h.b16 %v1984
    %v2059 = vunpack.c.l.b16 %v1985
    %v2060 = vunpack.c.h.b16 %v1985
    %v2061 = vunpack.c.l.b16 %v1986
    %v2062 = vunpack.c.h.b16 %v1986
    %v2063 = vunpack.c.l.b16 %v1987
    %v2064 = vunpack.c.h.b16 %v1987
    %v2065 = vunpack.c.l.b16 %v1988
    %v2066 = vunpack.c.h.b16 %v1988
    %v2067 = vunpack.c.l.b16 %v1989
    %v2068 = vunpack.c.h.b16 %v1989
    %v2069 = vunpack.c.l.b16 %v1990
    %v2070 = vunpack.c.h.b16 %v1990
    %v2071 = vunpack.c.l.b16 %v1991
    %v2072 = vunpack.c.h.b16 %v1991
    %v2073 = vunpack.c.l.b16 %v1992
    %v2074 = vunpack.c.h.b16 %v1992
    %v2075 = vunpack.c.l.b16 %v1993
    %v2076 = vunpack.c.h.b16 %v1993
    %v2077 = vunpack.c.l.b16 %v1994
    %v2078 = vunpack.c.h.b16 %v1994
    %v2079 = vunpack.c.l.b16 %v1995
    %v2080 = vunpack.c.h.b16 %v1995
    %v2081 = vunpack.c.l.b16 %v1996
    %v2082 = vunpack.c.h.b16 %v1996
    %v2083 = vunpack.c.l.b16 %v1997
    %v2084 = vunpack.c.h.b16 %v1997
    %v2085 = vunpack.c.l.b16 %v1998
    %v2086 = vunpack.c.h.b16 %v1998
    %v2087 = vunpack.c.l.b16 %v1999
    %v2088 = vunpack.c.h.b16 %v1999
    %v2089 = vunpack.c.l.b16 %v2000
    %v2090 = vunpack.c.h.b16 %v2000
    %v2091 = vunpack.c.l.b16 %v2001
    %v2092 = vunpack.c.h.b16 %v2001
    %v2093 = vunpack.c.l.b16 %v2002
    %v2094 = vunpack.c.h.b16 %v2002
    %v2095 = vunpack.c.l.b16 %v2003
    %v2096 = vunpack.c.h.b16 %v2003
    %v2097 = vunpack.c.l.b16 %v2004
    %v2098 = vunpack.c.h.b16 %v2004
    %v2099 = vunpack.c.l.b16 %v2005
    %v2100 = vunpack.c.h.b16 %v2005
    %v2101 = vunpack.c.l.b16 %v2006
    %v2102 = vunpack.c.h.b16 %v2006
    %v2103 = vpack.c.b16 %v2043, %v2039
    %v2104 = vpack.c.b16 %v2044, %v2040
    %v2105 = vpack.c.b16 %v2045, %v2041
    %v2106 = vpack.c.b16 %v2046, %v2042
    %v2107 = vpack.c.b16 %v2051, %v2047
    %v2108 = vpack.c.b16 %v2052, %v2048
    %v2109 = vpack.c.b16 %v2053, %v2049
    %v2110 = vpack.c.b16 %v2054, %v2050
    %v2111 = vpack.c.b16 %v2059, %v2055
    %v2112 = vpack.c.b16 %v2060, %v2056
    %v2113 = vpack.c.b16 %v2061, %v2057
    %v2114 = vpack.c.b16 %v2062, %v2058
    %v2115 = vpack.c.b16 %v2067, %v2063
    %v2116 = vpack.c.b16 %v2068, %v2064
    %v2117 = vpack.c.b16 %v2069, %v2065
    %v2118 = vpack.c.b16 %v2070, %v2066
    %v2119 = vpack.c.b16 %v2075, %v2071
    %v2120 = vpack.c.b16 %v2076, %v2072
    %v2121 = vpack.c.b16 %v2077, %v2073
    %v2122 = vpack.c.b16 %v2078, %v2074
    %v2123 = vpack.c.b16 %v2083, %v2079
    %v2124 = vpack.c.b16 %v2084, %v2080
    %v2125 = vpack.c.b16 %v2085, %v2081
    %v2126 = vpack.c.b16 %v2086, %v2082
    %v2127 = vpack.c.b16 %v2091, %v2087
    %v2128 = vpack.c.b16 %v2092, %v2088
    %v2129 = vpack.c.b16 %v2093, %v2089
    %v2130 = vpack.c.b16 %v2094, %v2090
    %v2131 = vpack.c.b16 %v2099, %v2095
    %v2132 = vpack.c.b16 %v2100, %v2096
    %v2133 = vpack.c.b16 %v2101, %v2097
    %v2134 = vpack.c.b16 %v2102, %v2098
    %2167 = vmatprep.subr.bf16.mxu0 %v2104
    %2168 = vmatpush1.bf16.msra.mxu0 %v2103
    %2169 = vmatprep.subr.bf16.mxu0 %v2108
    %2170 = vmatpush1.bf16.msra.mxu0 %v2107
    %2171 = vmatprep.subr.bf16.mxu0 %v2112
    %2172 = vmatpush1.bf16.msra.mxu0 %v2111
    %2173 = vmatprep.subr.bf16.mxu0 %v2116
    %2174 = vmatpush1.bf16.msra.mxu0 %v2115
    %2175 = vmatprep.subr.bf16.mxu0 %v2120
    %2176 = vmatpush1.bf16.msra.mxu0 %v2119
    %2177 = vmatprep.subr.bf16.mxu0 %v2124
    %2178 = vmatpush1.bf16.msra.mxu0 %v2123
    %2179 = vmatprep.subr.bf16.mxu0 %v2128
    %2180 = vmatpush1.bf16.msra.mxu0 %v2127
    %2181 = vmatprep.subr.bf16.mxu0 %v2132
    %2182 = vmatpush1.bf16.msra.mxu0 %v2131
    %2183 = vmatprep.subr.bf16.mxu0 0
    %2184 = vmatpush1.bf16.msra.mxu0 0
    %2185 = vmatprep.subr.bf16.mxu0 0
    %2186 = vmatpush1.bf16.msra.mxu0 0
    %2187 = vmatprep.subr.bf16.mxu0 0
    %2188 = vmatpush1.bf16.msra.mxu0 0
    %2189 = vmatprep.subr.bf16.mxu0 0
    %2190 = vmatpush1.bf16.msra.mxu0 0
    %2191 = vmatprep.subr.bf16.mxu0 0
    %2192 = vmatpush1.bf16.msra.mxu0 0
    %2193 = vmatprep.subr.bf16.mxu0 0
    %2194 = vmatpush1.bf16.msra.mxu0 0
    %2195 = vmatprep.subr.bf16.mxu0 0
    %2196 = vmatpush1.bf16.msra.mxu0 0
    %2197 = vmatprep.subr.bf16.mxu0 0
    %2198 = vmatpush1.bf16.msra.mxu0 0
    %2199 = vmatprep.mubr.bf16.mxu0 0
    %2200 = vmatmul.mubr.bf16.gmra.mrb[0].mxu0 %v1974
    %v2201 = vpop.f32.mrb[0].mxu0
    %v2202 = vadd.f32 0.0, %v2201
    %v2203 = vpop.f32.mrb[0].mxu0
    %v2204 = vadd.f32 0.0, %v2203
    %v2205 = vpop.f32.mrb[0].mxu0
    %v2206 = vpop.f32.mrb[0].mxu0
    %2207 = vdwg.mxu0
    %2208 = vmatprep.subr.bf16.mxu0 %v2106
    %2209 = vmatpush1.bf16.msra.mxu0 %v2105
    %2210 = vmatprep.subr.bf16.mxu0 %v2110
    %2211 = vmatpush1.bf16.msra.mxu0 %v2109
    %2212 = vmatprep.subr.bf16.mxu0 %v2114
    %2213 = vmatpush1.bf16.msra.mxu0 %v2113
    %2214 = vmatprep.subr.bf16.mxu0 %v2118
    %2215 = vmatpush1.bf16.msra.mxu0 %v2117
    %2216 = vmatprep.subr.bf16.mxu0 %v2122
    %2217 = vmatpush1.bf16.msra.mxu0 %v2121
    %2218 = vmatprep.subr.bf16.mxu0 %v2126
    %2219 = vmatpush1.bf16.msra.mxu0 %v2125
    %2220 = vmatprep.subr.bf16.mxu0 %v2130
    %2221 = vmatpush1.bf16.msra.mxu0 %v2129
    %2222 = vmatprep.subr.bf16.mxu0 %v2134
    %2223 = vmatpush1.bf16.msra.mxu0 %v2133
    %2224 = vmatprep.subr.bf16.mxu0 0
    %2225 = vmatpush1.bf16.msra.mxu0 0
    %2226 = vmatprep.subr.bf16.mxu0 0
    %2227 = vmatpush1.bf16.msra.mxu0 0
    %2228 = vmatprep.subr.bf16.mxu0 0
    %2229 = vmatpush1.bf16.msra.mxu0 0
    %2230 = vmatprep.subr.bf16.mxu0 0
    %2231 = vmatpush1.bf16.msra.mxu0 0
    %2232 = vmatprep.subr.bf16.mxu0 0
    %2233 = vmatpush1.bf16.msra.mxu0 0
    %2234 = vmatprep.subr.bf16.mxu0 0
    %2235 = vmatpush1.bf16.msra.mxu0 0
    %2236 = vmatprep.subr.bf16.mxu0 0
    %2237 = vmatpush1.bf16.msra.mxu0 0
    %2238 = vmatprep.subr.bf16.mxu0 0
    %2239 = vmatpush1.bf16.msra.mxu0 0
    %2240 = vmatprep.mubr.bf16.mxu0 0
    %2241 = vmatmul.mubr.bf16.gmra.mrb[0].mxu0 %v1974
    %v2242 = vpop.f32.mrb[0].mxu0
    %v2243 = vadd.f32 0.0, %v2242
    %v2244 = vpop.f32.mrb[0].mxu0
    %v2245 = vadd.f32 0.0, %v2244
    %v2246 = vpop.f32.mrb[0].mxu0
    %v2247 = vpop.f32.mrb[0].mxu0
    %2248 = vdwg.mxu0
    %v2253 = vcombine.low %v2202, %v2204
    %v2254 = vcombine.low %v2243, %v2245
    %v2256 = vunpack.c.l.s4 1966171168
    %v2257 = vunpack.c.0.s8 %v2256
    %v2258 = vlaneseq
    %v2259 = vshrl.u32 %v2258, 7
    %v2260 = vsub.s32 %v2257, %v2259
    %v2261 = vrot.slane %v2253, %v2260
    %v2263 = vunpack.c.l.s4 1966171168
    %v2264 = vunpack.c.0.s8 %v2263
    %v2265 = vlaneseq
    %v2266 = vshrl.u32 %v2265, 7
    %v2267 = vsub.s32 %v2264, %v2266
    %v2268 = vrot.slane %v2254, %v2267
    %v2269 = vcombine.low %v2261, %v2268
    %v2271 = vunpack.c.l.s4 1966171168
    %v2272 = vunpack.c.0.s8 %v2271
    %v2273 = vlaneseq
    %v2274 = vshrl.u32 %v2273, 7
    %v2275 = vsub.s32 %v2272, %v2274
    %v2276 = vrot.slane %v2269, %v2275
    %v2278 = vadd.f32 %v1973, %v2276
    %v2279 = vmul.f32 %v2278, 0.5
    %v2280 = vtanh.pop %v2279
    %v2281 = vadd.f32 %v2280, 1.0
    %v2282 = vmul.f32 %v2281, 0.5
    %v2284 = vrot.slane %v2278, 3
    %v2286 = vtanh.pop %v2284
    %v2288 = vrot.slane %v2282, 1
    %v2290 = vmul.f32 %v2288, %v1959
    %v2291 = vmul.f32 %v2282, %v2286
    %v2292 = vadd.f32 %v2290, %v2291
    %v2293 = vtanh.pop %v2292
    %v2294 = vrot.slane %v2282, 2
    %v2296 = vmul.f32 %v2294, %v2293
    %s2297 = sld [smem:[#allocation5 + $0x5]]
    %p2298 = scmp.eq.s32.totalorder %s2297, 1
    // Predicated region
    $region94: #{tpu_custom_call.1} parent=1 // pred_check
      %p2299 = pneg %p2298
    $region95: #{tpu_custom_call.1} parent=1 // pred_check_branch
      %2301 = sbr.rel (%p2299) target = $region97
    $region96: #{tpu_custom_call.1} parent=1 // pred_region
      %s2302 = sld [smem:[#allocation9 + $0x5]]
      %s2303 = scalar_lea.vmem [#allocation3], %s2302
      %2304 = vst [vmem:[%s2303] sm:$0x1] %v2296
    $region97: #{tpu_custom_call.1} parent=1 // pred_fallthru
      _
    %s2305 = scalar_lea.vmem [#allocation2], 6
    %v2306 = vld [vmem:[%s2305] ss:$8 sm:$0xf]
    %v2307 = vpack.c.bf16 %v2296, %v2296
    %v2308 = vld [vmem:[%s4] sm:$0xff]
    %v2309 = vld [vmem:[%s4 + $0x8] sm:$0xff]
    %v2310 = vld [vmem:[%s4 + $0x10] sm:$0xff]
    %v2311 = vld [vmem:[%s4 + $0x18] sm:$0xff]
    %v2312 = vld [vmem:[%s4 + $0x20] sm:$0xff]
    %v2313 = vld [vmem:[%s4 + $0x28] sm:$0xff]
    %v2314 = vld [vmem:[%s4 + $0x30] sm:$0xff]
    %v2315 = vld [vmem:[%s4 + $0x38] sm:$0xff]
    %v2316 = vld [vmem:[%s4 + $0x40] sm:$0xff]
    %v2317 = vld [vmem:[%s4 + $0x48] sm:$0xff]
    %v2318 = vld [vmem:[%s4 + $0x50] sm:$0xff]
    %v2319 = vld [vmem:[%s4 + $0x58] sm:$0xff]
    %v2320 = vld [vmem:[%s4 + $0x60] sm:$0xff]
    %v2321 = vld [vmem:[%s4 + $0x68] sm:$0xff]
    %v2322 = vld [vmem:[%s4 + $0x70] sm:$0xff]
    %v2323 = vld [vmem:[%s4 + $0x78] sm:$0xff]
    %v2324 = vld [vmem:[%s4 + $0x80] sm:$0xff]
    %v2325 = vld [vmem:[%s4 + $0x88] sm:$0xff]
    %v2326 = vld [vmem:[%s4 + $0x90] sm:$0xff]
    %v2327 = vld [vmem:[%s4 + $0x98] sm:$0xff]
    %v2328 = vld [vmem:[%s4 + $0xa0] sm:$0xff]
    %v2329 = vld [vmem:[%s4 + $0xa8] sm:$0xff]
    %v2330 = vld [vmem:[%s4 + $0xb0] sm:$0xff]
    %v2331 = vld [vmem:[%s4 + $0xb8] sm:$0xff]
    %v2332 = vld [vmem:[%s4 + $0xc0] sm:$0xff]
    %v2333 = vld [vmem:[%s4 + $0xc8] sm:$0xff]
    %v2334 = vld [vmem:[%s4 + $0xd0] sm:$0xff]
    %v2335 = vld [vmem:[%s4 + $0xd8] sm:$0xff]
    %v2336 = vld [vmem:[%s4 + $0xe0] sm:$0xff]
    %v2337 = vld [vmem:[%s4 + $0xe8] sm:$0xff]
    %v2338 = vld [vmem:[%s4 + $0xf0] sm:$0xff]
    %v2339 = vld [vmem:[%s4 + $0xf8] sm:$0xff]
    %v2372 = vunpack.c.l.b16 %v2308
    %v2373 = vunpack.c.h.b16 %v2308
    %v2374 = vunpack.c.l.b16 %v2309
    %v2375 = vunpack.c.h.b16 %v2309
    %v2376 = vunpack.c.l.b16 %v2310
    %v2377 = vunpack.c.h.b16 %v2310
    %v2378 = vunpack.c.l.b16 %v2311
    %v2379 = vunpack.c.h.b16 %v2311
    %v2380 = vunpack.c.l.b16 %v2312
    %v2381 = vunpack.c.h.b16 %v2312
    %v2382 = vunpack.c.l.b16 %v2313
    %v2383 = vunpack.c.h.b16 %v2313
    %v2384 = vunpack.c.l.b16 %v2314
    %v2385 = vunpack.c.h.b16 %v2314
    %v2386 = vunpack.c.l.b16 %v2315
    %v2387 = vunpack.c.h.b16 %v2315
    %v2388 = vunpack.c.l.b16 %v2316
    %v2389 = vunpack.c.h.b16 %v2316
    %v2390 = vunpack.c.l.b16 %v2317
    %v2391 = vunpack.c.h.b16 %v2317
    %v2392 = vunpack.c.l.b16 %v2318
    %v2393 = vunpack.c.h.b16 %v2318
    %v2394 = vunpack.c.l.b16 %v2319
    %v2395 = vunpack.c.h.b16 %v2319
    %v2396 = vunpack.c.l.b16 %v2320
    %v2397 = vunpack.c.h.b16 %v2320
    %v2398 = vunpack.c.l.b16 %v2321
    %v2399 = vunpack.c.h.b16 %v2321
    %v2400 = vunpack.c.l.b16 %v2322
    %v2401 = vunpack.c.h.b16 %v2322
    %v2402 = vunpack.c.l.b16 %v2323
    %v2403 = vunpack.c.h.b16 %v2323
    %v2404 = vunpack.c.l.b16 %v2324
    %v2405 = vunpack.c.h.b16 %v2324
    %v2406 = vunpack.c.l.b16 %v2325
    %v2407 = vunpack.c.h.b16 %v2325
    %v2408 = vunpack.c.l.b16 %v2326
    %v2409 = vunpack.c.h.b16 %v2326
    %v2410 = vunpack.c.l.b16 %v2327
    %v2411 = vunpack.c.h.b16 %v2327
    %v2412 = vunpack.c.l.b16 %v2328
    %v2413 = vunpack.c.h.b16 %v2328
    %v2414 = vunpack.c.l.b16 %v2329
    %v2415 = vunpack.c.h.b16 %v2329
    %v2416 = vunpack.c.l.b16 %v2330
    %v2417 = vunpack.c.h.b16 %v2330
    %v2418 = vunpack.c.l.b16 %v2331
    %v2419 = vunpack.c.h.b16 %v2331
    %v2420 = vunpack.c.l.b16 %v2332
    %v2421 = vunpack.c.h.b16 %v2332
    %v2422 = vunpack.c.l.b16 %v2333
    %v2423 = vunpack.c.h.b16 %v2333
    %v2424 = vunpack.c.l.b16 %v2334
    %v2425 = vunpack.c.h.b16 %v2334
    %v2426 = vunpack.c.l.b16 %v2335
    %v2427 = vunpack.c.h.b16 %v2335
    %v2428 = vunpack.c.l.b16 %v2336
    %v2429 = vunpack.c.h.b16 %v2336
    %v2430 = vunpack.c.l.b16 %v2337
    %v2431 = vunpack.c.h.b16 %v2337
    %v2432 = vunpack.c.l.b16 %v2338
    %v2433 = vunpack.c.h.b16 %v2338
    %v2434 = vunpack.c.l.b16 %v2339
    %v2435 = vunpack.c.h.b16 %v2339
    %v2436 = vpack.c.b16 %v2376, %v2372
    %v2437 = vpack.c.b16 %v2377, %v2373
    %v2438 = vpack.c.b16 %v2378, %v2374
    %v2439 = vpack.c.b16 %v2379, %v2375
    %v2440 = vpack.c.b16 %v2384, %v2380
    %v2441 = vpack.c.b16 %v2385, %v2381
    %v2442 = vpack.c.b16 %v2386, %v2382
    %v2443 = vpack.c.b16 %v2387, %v2383
    %v2444 = vpack.c.b16 %v2392, %v2388
    %v2445 = vpack.c.b16 %v2393, %v2389
    %v2446 = vpack.c.b16 %v2394, %v2390
    %v2447 = vpack.c.b16 %v2395, %v2391
    %v2448 = vpack.c.b16 %v2400, %v2396
    %v2449 = vpack.c.b16 %v2401, %v2397
    %v2450 = vpack.c.b16 %v2402, %v2398
    %v2451 = vpack.c.b16 %v2403, %v2399
    %v2452 = vpack.c.b16 %v2408, %v2404
    %v2453 = vpack.c.b16 %v2409, %v2405
    %v2454 = vpack.c.b16 %v2410, %v2406
    %v2455 = vpack.c.b16 %v2411, %v2407
    %v2456 = vpack.c.b16 %v2416, %v2412
    %v2457 = vpack.c.b16 %v2417, %v2413
    %v2458 = vpack.c.b16 %v2418, %v2414
    %v2459 = vpack.c.b16 %v2419, %v2415
    %v2460 = vpack.c.b16 %v2424, %v2420
    %v2461 = vpack.c.b16 %v2425, %v2421
    %v2462 = vpack.c.b16 %v2426, %v2422
    %v2463 = vpack.c.b16 %v2427, %v2423
    %v2464 = vpack.c.b16 %v2432, %v2428
    %v2465 = vpack.c.b16 %v2433, %v2429
    %v2466 = vpack.c.b16 %v2434, %v2430
    %v2467 = vpack.c.b16 %v2435, %v2431
    %2500 = vmatprep.subr.bf16.mxu0 %v2437
    %2501 = vmatpush1.bf16.msra.mxu0 %v2436
    %2502 = vmatprep.subr.bf16.mxu0 %v2441
    %2503 = vmatpush1.bf16.msra.mxu0 %v2440
    %2504 = vmatprep.subr.bf16.mxu0 %v2445
    %2505 = vmatpush1.bf16.msra.mxu0 %v2444
    %2506 = vmatprep.subr.bf16.mxu0 %v2449
    %2507 = vmatpush1.bf16.msra.mxu0 %v2448
    %2508 = vmatprep.subr.bf16.mxu0 %v2453
    %2509 = vmatpush1.bf16.msra.mxu0 %v2452
    %2510 = vmatprep.subr.bf16.mxu0 %v2457
    %2511 = vmatpush1.bf16.msra.mxu0 %v2456
    %2512 = vmatprep.subr.bf16.mxu0 %v2461
    %2513 = vmatpush1.bf16.msra.mxu0 %v2460
    %2514 = vmatprep.subr.bf16.mxu0 %v2465
    %2515 = vmatpush1.bf16.msra.mxu0 %v2464
    %2516 = vmatprep.subr.bf16.mxu0 0
    %2517 = vmatpush1.bf16.msra.mxu0 0
    %2518 = vmatprep.subr.bf16.mxu0 0
    %2519 = vmatpush1.bf16.msra.mxu0 0
    %2520 = vmatprep.subr.bf16.mxu0 0
    %2521 = vmatpush1.bf16.msra.mxu0 0
    %2522 = vmatprep.subr.bf16.mxu0 0
    %2523 = vmatpush1.bf16.msra.mxu0 0
    %2524 = vmatprep.subr.bf16.mxu0 0
    %2525 = vmatpush1.bf16.msra.mxu0 0
    %2526 = vmatprep.subr.bf16.mxu0 0
    %2527 = vmatpush1.bf16.msra.mxu0 0
    %2528 = vmatprep.subr.bf16.mxu0 0
    %2529 = vmatpush1.bf16.msra.mxu0 0
    %2530 = vmatprep.subr.bf16.mxu0 0
    %2531 = vmatpush1.bf16.msra.mxu0 0
    %2532 = vmatprep.mubr.bf16.mxu0 0
    %2533 = vmatmul.mubr.bf16.gmra.mrb[0].mxu0 %v2307
    %v2534 = vpop.f32.mrb[0].mxu0
    %v2535 = vadd.f32 0.0, %v2534
    %v2536 = vpop.f32.mrb[0].mxu0
    %v2537 = vadd.f32 0.0, %v2536
    %v2538 = vpop.f32.mrb[0].mxu0
    %v2539 = vpop.f32.mrb[0].mxu0
    %2540 = vdwg.mxu0
    %2541 = vmatprep.subr.bf16.mxu0 %v2439
    %2542 = vmatpush1.bf16.msra.mxu0 %v2438
    %2543 = vmatprep.subr.bf16.mxu0 %v2443
    %2544 = vmatpush1.bf16.msra.mxu0 %v2442
    %2545 = vmatprep.subr.bf16.mxu0 %v2447
    %2546 = vmatpush1.bf16.msra.mxu0 %v2446
    %2547 = vmatprep.subr.bf16.mxu0 %v2451
    %2548 = vmatpush1.bf16.msra.mxu0 %v2450
    %2549 = vmatprep.subr.bf16.mxu0 %v2455
    %2550 = vmatpush1.bf16.msra.mxu0 %v2454
    %2551 = vmatprep.subr.bf16.mxu0 %v2459
    %2552 = vmatpush1.bf16.msra.mxu0 %v2458
    %2553 = vmatprep.subr.bf16.mxu0 %v2463
    %2554 = vmatpush1.bf16.msra.mxu0 %v2462
    %2555 = vmatprep.subr.bf16.mxu0 %v2467
    %2556 = vmatpush1.bf16.msra.mxu0 %v2466
    %2557 = vmatprep.subr.bf16.mxu0 0
    %2558 = vmatpush1.bf16.msra.mxu0 0
    %2559 = vmatprep.subr.bf16.mxu0 0
    %2560 = vmatpush1.bf16.msra.mxu0 0
    %2561 = vmatprep.subr.bf16.mxu0 0
    %2562 = vmatpush1.bf16.msra.mxu0 0
    %2563 = vmatprep.subr.bf16.mxu0 0
    %2564 = vmatpush1.bf16.msra.mxu0 0
    %2565 = vmatprep.subr.bf16.mxu0 0
    %2566 = vmatpush1.bf16.msra.mxu0 0
    %2567 = vmatprep.subr.bf16.mxu0 0
    %2568 = vmatpush1.bf16.msra.mxu0 0
    %2569 = vmatprep.subr.bf16.mxu0 0
    %2570 = vmatpush1.bf16.msra.mxu0 0
    %2571 = vmatprep.subr.bf16.mxu0 0
    %2572 = vmatpush1.bf16.msra.mxu0 0
    %2573 = vmatprep.mubr.bf16.mxu0 0
    %2574 = vmatmul.mubr.bf16.gmra.mrb[0].mxu0 %v2307
    %v2575 = vpop.f32.mrb[0].mxu0
    %v2576 = vadd.f32 0.0, %v2575
    %v2577 = vpop.f32.mrb[0].mxu0
    %v2578 = vadd.f32 0.0, %v2577
    %v2579 = vpop.f32.mrb[0].mxu0
    %v2580 = vpop.f32.mrb[0].mxu0
    %2581 = vdwg.mxu0
    %v2586 = vcombine.low %v2535, %v2537
    %v2587 = vcombine.low %v2576, %v2578
    %v2589 = vunpack.c.l.s4 1966171168
    %v2590 = vunpack.c.0.s8 %v2589
    %v2591 = vlaneseq
    %v2592 = vshrl.u32 %v2591, 7
    %v2593 = vsub.s32 %v2590, %v2592
    %v2594 = vrot.slane %v2586, %v2593
    %v2596 = vunpack.c.l.s4 1966171168
    %v2597 = vunpack.c.0.s8 %v2596
    %v2598 = vlaneseq
    %v2599 = vshrl.u32 %v2598, 7
    %v2600 = vsub.s32 %v2597, %v2599
    %v2601 = vrot.slane %v2587, %v2600
    %v2602 = vcombine.low %v2594, %v2601
    %v2604 = vunpack.c.l.s4 1966171168
    %v2605 = vunpack.c.0.s8 %v2604
    %v2606 = vlaneseq
    %v2607 = vshrl.u32 %v2606, 7
    %v2608 = vsub.s32 %v2605, %v2607
    %v2609 = vrot.slane %v2602, %v2608
    %v2611 = vadd.f32 %v2306, %v2609
    %v2612 = vmul.f32 %v2611, 0.5
    %v2613 = vtanh.pop %v2612
    %v2614 = vadd.f32 %v2613, 1.0
    %v2615 = vmul.f32 %v2614, 0.5
    %v2617 = vrot.slane %v2611, 3
    %v2619 = vtanh.pop %v2617
    %v2621 = vrot.slane %v2615, 1
    %v2623 = vmul.f32 %v2621, %v2292
    %v2624 = vmul.f32 %v2615, %v2619
    %v2625 = vadd.f32 %v2623, %v2624
    %v2626 = vtanh.pop %v2625
    %v2627 = vrot.slane %v2615, 2
    %v2629 = vmul.f32 %v2627, %v2626
    %s2630 = sld [smem:[#allocation5 + $0x6]]
    %p2631 = scmp.eq.s32.totalorder %s2630, 1
    // Predicated region
    $region98: #{tpu_custom_call.1} parent=1 // pred_check
      %p2632 = pneg %p2631
    $region99: #{tpu_custom_call.1} parent=1 // pred_check_branch
      %2634 = sbr.rel (%p2632) target = $region101
    $region100: #{tpu_custom_call.1} parent=1 // pred_region
      %s2635 = sld [smem:[#allocation9 + $0x6]]
      %s2636 = scalar_lea.vmem [#allocation3], %s2635
      %2637 = vst [vmem:[%s2636] sm:$0x1] %v2629
    $region101: #{tpu_custom_call.1} parent=1 // pred_fallthru
      _
    %s2638 = scalar_lea.vmem [#allocation2], 7
    %v2639 = vld [vmem:[%s2638] ss:$8 sm:$0xf]
    %v2640 = vpack.c.bf16 %v2629, %v2629
    %v2641 = vld [vmem:[%s4] sm:$0xff]
    %v2642 = vld [vmem:[%s4 + $0x8] sm:$0xff]
    %v2643 = vld [vmem:[%s4 + $0x10] sm:$0xff]
    %v2644 = vld [vmem:[%s4 + $0x18] sm:$0xff]
    %v2645 = vld [vmem:[%s4 + $0x20] sm:$0xff]
    %v2646 = vld [vmem:[%s4 + $0x28] sm:$0xff]
    %v2647 = vld [vmem:[%s4 + $0x30] sm:$0xff]
    %v2648 = vld [vmem:[%s4 + $0x38] sm:$0xff]
    %v2649 = vld [vmem:[%s4 + $0x40] sm:$0xff]
    %v2650 = vld [vmem:[%s4 + $0x48] sm:$0xff]
    %v2651 = vld [vmem:[%s4 + $0x50] sm:$0xff]
    %v2652 = vld [vmem:[%s4 + $0x58] sm:$0xff]
    %v2653 = vld [vmem:[%s4 + $0x60] sm:$0xff]
    %v2654 = vld [vmem:[%s4 + $0x68] sm:$0xff]
    %v2655 = vld [vmem:[%s4 + $0x70] sm:$0xff]
    %v2656 = vld [vmem:[%s4 + $0x78] sm:$0xff]
    %v2657 = vld [vmem:[%s4 + $0x80] sm:$0xff]
    %v2658 = vld [vmem:[%s4 + $0x88] sm:$0xff]
    %v2659 = vld [vmem:[%s4 + $0x90] sm:$0xff]
    %v2660 = vld [vmem:[%s4 + $0x98] sm:$0xff]
    %v2661 = vld [vmem:[%s4 + $0xa0] sm:$0xff]
    %v2662 = vld [vmem:[%s4 + $0xa8] sm:$0xff]
    %v2663 = vld [vmem:[%s4 + $0xb0] sm:$0xff]
    %v2664 = vld [vmem:[%s4 + $0xb8] sm:$0xff]
    %v2665 = vld [vmem:[%s4 + $0xc0] sm:$0xff]
    %v2666 = vld [vmem:[%s4 + $0xc8] sm:$0xff]
    %v2667 = vld [vmem:[%s4 + $0xd0] sm:$0xff]
    %v2668 = vld [vmem:[%s4 + $0xd8] sm:$0xff]
    %v2669 = vld [vmem:[%s4 + $0xe0] sm:$0xff]
    %v2670 = vld [vmem:[%s4 + $0xe8] sm:$0xff]
    %v2671 = vld [vmem:[%s4 + $0xf0] sm:$0xff]
    %v2672 = vld [vmem:[%s4 + $0xf8] sm:$0xff]
    %v2705 = vunpack.c.l.b16 %v2641
    %v2706 = vunpack.c.h.b16 %v2641
    %v2707 = vunpack.c.l.b16 %v2642
    %v2708 = vunpack.c.h.b16 %v2642
    %v2709 = vunpack.c.l.b16 %v2643
    %v2710 = vunpack.c.h.b16 %v2643
    %v2711 = vunpack.c.l.b16 %v2644
    %v2712 = vunpack.c.h.b16 %v2644
    %v2713 = vunpack.c.l.b16 %v2645
    %v2714 = vunpack.c.h.b16 %v2645
    %v2715 = vunpack.c.l.b16 %v2646
    %v2716 = vunpack.c.h.b16 %v2646
    %v2717 = vunpack.c.l.b16 %v2647
    %v2718 = vunpack.c.h.b16 %v2647
    %v2719 = vunpack.c.l.b16 %v2648
    %v2720 = vunpack.c.h.b16 %v2648
    %v2721 = vunpack.c.l.b16 %v2649
    %v2722 = vunpack.c.h.b16 %v2649
    %v2723 = vunpack.c.l.b16 %v2650
    %v2724 = vunpack.c.h.b16 %v2650
    %v2725 = vunpack.c.l.b16 %v2651
    %v2726 = vunpack.c.h.b16 %v2651
    %v2727 = vunpack.c.l.b16 %v2652
    %v2728 = vunpack.c.h.b16 %v2652
    %v2729 = vunpack.c.l.b16 %v2653
    %v2730 = vunpack.c.h.b16 %v2653
    %v2731 = vunpack.c.l.b16 %v2654
    %v2732 = vunpack.c.h.b16 %v2654
    %v2733 = vunpack.c.l.b16 %v2655
    %v2734 = vunpack.c.h.b16 %v2655
    %v2735 = vunpack.c.l.b16 %v2656
    %v2736 = vunpack.c.h.b16 %v2656
    %v2737 = vunpack.c.l.b16 %v2657
    %v2738 = vunpack.c.h.b16 %v2657
    %v2739 = vunpack.c.l.b16 %v2658
    %v2740 = vunpack.c.h.b16 %v2658
    %v2741 = vunpack.c.l.b16 %v2659
    %v2742 = vunpack.c.h.b16 %v2659
    %v2743 = vunpack.c.l.b16 %v2660
    %v2744 = vunpack.c.h.b16 %v2660
    %v2745 = vunpack.c.l.b16 %v2661
    %v2746 = vunpack.c.h.b16 %v2661
    %v2747 = vunpack.c.l.b16 %v2662
    %v2748 = vunpack.c.h.b16 %v2662
    %v2749 = vunpack.c.l.b16 %v2663
    %v2750 = vunpack.c.h.b16 %v2663
    %v2751 = vunpack.c.l.b16 %v2664
    %v2752 = vunpack.c.h.b16 %v2664
    %v2753 = vunpack.c.l.b16 %v2665
    %v2754 = vunpack.c.h.b16 %v2665
    %v2755 = vunpack.c.l.b16 %v2666
    %v2756 = vunpack.c.h.b16 %v2666
    %v2757 = vunpack.c.l.b16 %v2667
    %v2758 = vunpack.c.h.b16 %v2667
    %v2759 = vunpack.c.l.b16 %v2668
    %v2760 = vunpack.c.h.b16 %v2668
    %v2761 = vunpack.c.l.b16 %v2669
    %v2762 = vunpack.c.h.b16 %v2669
    %v2763 = vunpack.c.l.b16 %v2670
    %v2764 = vunpack.c.h.b16 %v2670
    %v2765 = vunpack.c.l.b16 %v2671
    %v2766 = vunpack.c.h.b16 %v2671
    %v2767 = vunpack.c.l.b16 %v2672
    %v2768 = vunpack.c.h.b16 %v2672
    %v2769 = vpack.c.b16 %v2709, %v2705
    %v2770 = vpack.c.b16 %v2710, %v2706
    %v2771 = vpack.c.b16 %v2711, %v2707
    %v2772 = vpack.c.b16 %v2712, %v2708
    %v2773 = vpack.c.b16 %v2717, %v2713
    %v2774 = vpack.c.b16 %v2718, %v2714
    %v2775 = vpack.c.b16 %v2719, %v2715
    %v2776 = vpack.c.b16 %v2720, %v2716
    %v2777 = vpack.c.b16 %v2725, %v2721
    %v2778 = vpack.c.b16 %v2726, %v2722
    %v2779 = vpack.c.b16 %v2727, %v2723
    %v2780 = vpack.c.b16 %v2728, %v2724
    %v2781 = vpack.c.b16 %v2733, %v2729
    %v2782 = vpack.c.b16 %v2734, %v2730
    %v2783 = vpack.c.b16 %v2735, %v2731
    %v2784 = vpack.c.b16 %v2736, %v2732
    %v2785 = vpack.c.b16 %v2741, %v2737
    %v2786 = vpack.c.b16 %v2742, %v2738
    %v2787 = vpack.c.b16 %v2743, %v2739
    %v2788 = vpack.c.b16 %v2744, %v2740
    %v2789 = vpack.c.b16 %v2749, %v2745
    %v2790 = vpack.c.b16 %v2750, %v2746
    %v2791 = vpack.c.b16 %v2751, %v2747
    %v2792 = vpack.c.b16 %v2752, %v2748
    %v2793 = vpack.c.b16 %v2757, %v2753
    %v2794 = vpack.c.b16 %v2758, %v2754
    %v2795 = vpack.c.b16 %v2759, %v2755
    %v2796 = vpack.c.b16 %v2760, %v2756
    %v2797 = vpack.c.b16 %v2765, %v2761
    %v2798 = vpack.c.b16 %v2766, %v2762
    %v2799 = vpack.c.b16 %v2767, %v2763
    %v2800 = vpack.c.b16 %v2768, %v2764
    %2833 = vmatprep.subr.bf16.mxu0 %v2770
    %2834 = vmatpush1.bf16.msra.mxu0 %v2769
    %2835 = vmatprep.subr.bf16.mxu0 %v2774
    %2836 = vmatpush1.bf16.msra.mxu0 %v2773
    %2837 = vmatprep.subr.bf16.mxu0 %v2778
    %2838 = vmatpush1.bf16.msra.mxu0 %v2777
    %2839 = vmatprep.subr.bf16.mxu0 %v2782
    %2840 = vmatpush1.bf16.msra.mxu0 %v2781
    %2841 = vmatprep.subr.bf16.mxu0 %v2786
    %2842 = vmatpush1.bf16.msra.mxu0 %v2785
    %2843 = vmatprep.subr.bf16.mxu0 %v2790
    %2844 = vmatpush1.bf16.msra.mxu0 %v2789
    %2845 = vmatprep.subr.bf16.mxu0 %v2794
    %2846 = vmatpush1.bf16.msra.mxu0 %v2793
    %2847 = vmatprep.subr.bf16.mxu0 %v2798
    %2848 = vmatpush1.bf16.msra.mxu0 %v2797
    %2849 = vmatprep.subr.bf16.mxu0 0
    %2850 = vmatpush1.bf16.msra.mxu0 0
    %2851 = vmatprep.subr.bf16.mxu0 0
    %2852 = vmatpush1.bf16.msra.mxu0 0
    %2853 = vmatprep.subr.bf16.mxu0 0
    %2854 = vmatpush1.bf16.msra.mxu0 0
    %2855 = vmatprep.subr.bf16.mxu0 0
    %2856 = vmatpush1.bf16.msra.mxu0 0
    %2857 = vmatprep.subr.bf16.mxu0 0
    %2858 = vmatpush1.bf16.msra.mxu0 0
    %2859 = vmatprep.subr.bf16.mxu0 0
    %2860 = vmatpush1.bf16.msra.mxu0 0
    %2861 = vmatprep.subr.bf16.mxu0 0
    %2862 = vmatpush1.bf16.msra.mxu0 0
    %2863 = vmatprep.subr.bf16.mxu0 0
    %2864 = vmatpush1.bf16.msra.mxu0 0
    %2865 = vmatprep.mubr.bf16.mxu0 0
    %2866 = vmatmul.mubr.bf16.gmra.mrb[0].mxu0 %v2640
    %v2867 = vpop.f32.mrb[0].mxu0
    %v2868 = vadd.f32 0.0, %v2867
    %v2869 = vpop.f32.mrb[0].mxu0
    %v2870 = vadd.f32 0.0, %v2869
    %v2871 = vpop.f32.mrb[0].mxu0
    %v2872 = vpop.f32.mrb[0].mxu0
    %2873 = vdwg.mxu0
    %2874 = vmatprep.subr.bf16.mxu0 %v2772
    %2875 = vmatpush1.bf16.msra.mxu0 %v2771
    %2876 = vmatprep.subr.bf16.mxu0 %v2776
    %2877 = vmatpush1.bf16.msra.mxu0 %v2775
    %2878 = vmatprep.subr.bf16.mxu0 %v2780
    %2879 = vmatpush1.bf16.msra.mxu0 %v2779
    %2880 = vmatprep.subr.bf16.mxu0 %v2784
    %2881 = vmatpush1.bf16.msra.mxu0 %v2783
    %2882 = vmatprep.subr.bf16.mxu0 %v2788
    %2883 = vmatpush1.bf16.msra.mxu0 %v2787
    %2884 = vmatprep.subr.bf16.mxu0 %v2792
    %2885 = vmatpush1.bf16.msra.mxu0 %v2791
    %2886 = vmatprep.subr.bf16.mxu0 %v2796
    %2887 = vmatpush1.bf16.msra.mxu0 %v2795
    %2888 = vmatprep.subr.bf16.mxu0 %v2800
    %2889 = vmatpush1.bf16.msra.mxu0 %v2799
    %2890 = vmatprep.subr.bf16.mxu0 0
    %2891 = vmatpush1.bf16.msra.mxu0 0
    %2892 = vmatprep.subr.bf16.mxu0 0
    %2893 = vmatpush1.bf16.msra.mxu0 0
    %2894 = vmatprep.subr.bf16.mxu0 0
    %2895 = vmatpush1.bf16.msra.mxu0 0
    %2896 = vmatprep.subr.bf16.mxu0 0
    %2897 = vmatpush1.bf16.msra.mxu0 0
    %2898 = vmatprep.subr.bf16.mxu0 0
    %2899 = vmatpush1.bf16.msra.mxu0 0
    %2900 = vmatprep.subr.bf16.mxu0 0
    %2901 = vmatpush1.bf16.msra.mxu0 0
    %2902 = vmatprep.subr.bf16.mxu0 0
    %2903 = vmatpush1.bf16.msra.mxu0 0
    %2904 = vmatprep.subr.bf16.mxu0 0
    %2905 = vmatpush1.bf16.msra.mxu0 0
    %2906 = vmatprep.mubr.bf16.mxu0 0
    %2907 = vmatmul.mubr.bf16.gmra.mrb[0].mxu0 %v2640
    %v2908 = vpop.f32.mrb[0].mxu0
    %v2909 = vadd.f32 0.0, %v2908
    %v2910 = vpop.f32.mrb[0].mxu0
    %v2911 = vadd.f32 0.0, %v2910
    %v2912 = vpop.f32.mrb[0].mxu0
    %v2913 = vpop.f32.mrb[0].mxu0
    %2914 = vdwg.mxu0
    %v2919 = vcombine.low %v2868, %v2870
    %v2920 = vcombine.low %v2909, %v2911
    %v2922 = vunpack.c.l.s4 1966171168
    %v2923 = vunpack.c.0.s8 %v2922
    %v2924 = vlaneseq
    %v2925 = vshrl.u32 %v2924, 7
    %v2926 = vsub.s32 %v2923, %v2925
    %v2927 = vrot.slane %v2919, %v2926
    %v2929 = vunpack.c.l.s4 1966171168
    %v2930 = vunpack.c.0.s8 %v2929
    %v2931 = vlaneseq
    %v2932 = vshrl.u32 %v2931, 7
    %v2933 = vsub.s32 %v2930, %v2932
    %v2934 = vrot.slane %v2920, %v2933
    %v2935 = vcombine.low %v2927, %v2934
    %v2937 = vunpack.c.l.s4 1966171168
    %v2938 = vunpack.c.0.s8 %v2937
    %v2939 = vlaneseq
    %v2940 = vshrl.u32 %v2939, 7
    %v2941 = vsub.s32 %v2938, %v2940
    %v2942 = vrot.slane %v2935, %v2941
    %v2944 = vadd.f32 %v2639, %v2942
    %v2945 = vmul.f32 %v2944, 0.5
    %v2946 = vtanh.pop %v2945
    %v2947 = vadd.f32 %v2946, 1.0
    %v2948 = vmul.f32 %v2947, 0.5
    %v2950 = vrot.slane %v2944, 3
    %v2952 = vtanh.pop %v2950
    %v2954 = vrot.slane %v2948, 1
    %v2956 = vmul.f32 %v2954, %v2625
    %v2957 = vmul.f32 %v2948, %v2952
    %v2958 = vadd.f32 %v2956, %v2957
    %v2959 = vtanh.pop %v2958
    %v2960 = vrot.slane %v2948, 2
    %v2962 = vmul.f32 %v2960, %v2959
    %s2963 = sld [smem:[#allocation5 + $0x7]]
    %p2964 = scmp.eq.s32.totalorder %s2963, 1
    // Predicated region
    $region102: #{tpu_custom_call.1} parent=1 // pred_check
      %p2965 = pneg %p2964
    $region103: #{tpu_custom_call.1} parent=1 // pred_check_branch
      %2967 = sbr.rel (%p2965) target = $region105
    $region104: #{tpu_custom_call.1} parent=1 // pred_region
      %s2968 = sld [smem:[#allocation9 + $0x7]]
      %s2969 = scalar_lea.vmem [#allocation3], %s2968
      %2970 = vst [vmem:[%s2969] sm:$0x1] %v2962
    $region105: #{tpu_custom_call.1} parent=1 // pred_fallthru
      _
    %s2971 = scalar_lea.vmem [#allocation2], 32
    %v2972 = vld [vmem:[%s2971] ss:$8 sm:$0xf]
    %v2973 = vpack.c.bf16 %v2962, %v2962
    %v2974 = vld [vmem:[%s4] sm:$0xff]
    %v2975 = vld [vmem:[%s4 + $0x8] sm:$0xff]
    %v2976 = vld [vmem:[%s4 + $0x10] sm:$0xff]
    %v2977 = vld [vmem:[%s4 + $0x18] sm:$0xff]
    %v2978 = vld [vmem:[%s4 + $0x20] sm:$0xff]
    %v2979 = vld [vmem:[%s4 + $0x28] sm:$0xff]
    %v2980 = vld [vmem:[%s4 + $0x30] sm:$0xff]
    %v2981 = vld [vmem:[%s4 + $0x38] sm:$0xff]
    %v2982 = vld [vmem:[%s4 + $0x40] sm:$0xff]
    %v2983 = vld [vmem:[%s4 + $0x48] sm:$0xff]
    %v2984 = vld [vmem:[%s4 + $0x50] sm:$0xff]
    %v2985 = vld [vmem:[%s4 + $0x58] sm:$0xff]
    %v2986 = vld [vmem:[%s4 + $0x60] sm:$0xff]
    %v2987 = vld [vmem:[%s4 + $0x68] sm:$0xff]
    %v2988 = vld [vmem:[%s4 + $0x70] sm:$0xff]
    %v2989 = vld [vmem:[%s4 + $0x78] sm:$0xff]
    %v2990 = vld [vmem:[%s4 + $0x80] sm:$0xff]
    %v2991 = vld [vmem:[%s4 + $0x88] sm:$0xff]
    %v2992 = vld [vmem:[%s4 + $0x90] sm:$0xff]
    %v2993 = vld [vmem:[%s4 + $0x98] sm:$0xff]
    %v2994 = vld [vmem:[%s4 + $0xa0] sm:$0xff]
    %v2995 = vld [vmem:[%s4 + $0xa8] sm:$0xff]
    %v2996 = vld [vmem:[%s4 + $0xb0] sm:$0xff]
    %v2997 = vld [vmem:[%s4 + $0xb8] sm:$0xff]
    %v2998 = vld [vmem:[%s4 + $0xc0] sm:$0xff]
    %v2999 = vld [vmem:[%s4 + $0xc8] sm:$0xff]
    %v3000 = vld [vmem:[%s4 + $0xd0] sm:$0xff]
    %v3001 = vld [vmem:[%s4 + $0xd8] sm:$0xff]
    %v3002 = vld [vmem:[%s4 + $0xe0] sm:$0xff]
    %v3003 = vld [vmem:[%s4 + $0xe8] sm:$0xff]
    %v3004 = vld [vmem:[%s4 + $0xf0] sm:$0xff]
    %v3005 = vld [vmem:[%s4 + $0xf8] sm:$0xff]
    %v3038 = vunpack.c.l.b16 %v2974
    %v3039 = vunpack.c.h.b16 %v2974
    %v3040 = vunpack.c.l.b16 %v2975
    %v3041 = vunpack.c.h.b16 %v2975
    %v3042 = vunpack.c.l.b16 %v2976
    %v3043 = vunpack.c.h.b16 %v2976
    %v3044 = vunpack.c.l.b16 %v2977
    %v3045 = vunpack.c.h.b16 %v2977
    %v3046 = vunpack.c.l.b16 %v2978
    %v3047 = vunpack.c.h.b16 %v2978
    %v3048 = vunpack.c.l.b16 %v2979
    %v3049 = vunpack.c.h.b16 %v2979
    %v3050 = vunpack.c.l.b16 %v2980
    %v3051 = vunpack.c.h.b16 %v2980
    %v3052 = vunpack.c.l.b16 %v2981
    %v3053 = vunpack.c.h.b16 %v2981
    %v3054 = vunpack.c.l.b16 %v2982
    %v3055 = vunpack.c.h.b16 %v2982
    %v3056 = vunpack.c.l.b16 %v2983
    %v3057 = vunpack.c.h.b16 %v2983
    %v3058 = vunpack.c.l.b16 %v2984
    %v3059 = vunpack.c.h.b16 %v2984
    %v3060 = vunpack.c.l.b16 %v2985
    %v3061 = vunpack.c.h.b16 %v2985
    %v3062 = vunpack.c.l.b16 %v2986
    %v3063 = vunpack.c.h.b16 %v2986
    %v3064 = vunpack.c.l.b16 %v2987
    %v3065 = vunpack.c.h.b16 %v2987
    %v3066 = vunpack.c.l.b16 %v2988
    %v3067 = vunpack.c.h.b16 %v2988
    %v3068 = vunpack.c.l.b16 %v2989
    %v3069 = vunpack.c.h.b16 %v2989
    %v3070 = vunpack.c.l.b16 %v2990
    %v3071 = vunpack.c.h.b16 %v2990
    %v3072 = vunpack.c.l.b16 %v2991
    %v3073 = vunpack.c.h.b16 %v2991
    %v3074 = vunpack.c.l.b16 %v2992
    %v3075 = vunpack.c.h.b16 %v2992
    %v3076 = vunpack.c.l.b16 %v2993
    %v3077 = vunpack.c.h.b16 %v2993
    %v3078 = vunpack.c.l.b16 %v2994
    %v3079 = vunpack.c.h.b16 %v2994
    %v3080 = vunpack.c.l.b16 %v2995
    %v3081 = vunpack.c.h.b16 %v2995
    %v3082 = vunpack.c.l.b16 %v2996
    %v3083 = vunpack.c.h.b16 %v2996
    %v3084 = vunpack.c.l.b16 %v2997
    %v3085 = vunpack.c.h.b16 %v2997
    %v3086 = vunpack.c.l.b16 %v2998
    %v3087 = vunpack.c.h.b16 %v2998
    %v3088 = vunpack.c.l.b16 %v2999
    %v3089 = vunpack.c.h.b16 %v2999
    %v3090 = vunpack.c.l.b16 %v3000
    %v3091 = vunpack.c.h.b16 %v3000
    %v3092 = vunpack.c.l.b16 %v3001
    %v3093 = vunpack.c.h.b16 %v3001
    %v3094 = vunpack.c.l.b16 %v3002
    %v3095 = vunpack.c.h.b16 %v3002
    %v3096 = vunpack.c.l.b16 %v3003
    %v3097 = vunpack.c.h.b16 %v3003
    %v3098 = vunpack.c.l.b16 %v3004
    %v3099 = vunpack.c.h.b16 %v3004
    %v3100 = vunpack.c.l.b16 %v3005
    %v3101 = vunpack.c.h.b16 %v3005
    %v3102 = vpack.c.b16 %v3042, %v3038
    %v3103 = vpack.c.b16 %v3043, %v3039
    %v3104 = vpack.c.b16 %v3044, %v3040
    %v3105 = vpack.c.b16 %v3045, %v3041
    %v3106 = vpack.c.b16 %v3050, %v3046
    %v3107 = vpack.c.b16 %v3051, %v3047
    %v3108 = vpack.c.b16 %v3052, %v3048
    %v3109 = vpack.c.b16 %v3053, %v3049
    %v3110 = vpack.c.b16 %v3058, %v3054
    %v3111 = vpack.c.b16 %v3059, %v3055
    %v3112 = vpack.c.b16 %v3060, %v3056
    %v3113 = vpack.c.b16 %v3061, %v3057
    %v3114 = vpack.c.b16 %v3066, %v3062
    %v3115 = vpack.c.b16 %v3067, %v3063
    %v3116 = vpack.c.b16 %v3068, %v3064
    %v3117 = vpack.c.b16 %v3069, %v3065
    %v3118 = vpack.c.b16 %v3074, %v3070
    %v3119 = vpack.c.b16 %v3075, %v3071
    %v3120 = vpack.c.b16 %v3076, %v3072
    %v3121 = vpack.c.b16 %v3077, %v3073
    %v3122 = vpack.c.b16 %v3082, %v3078
    %v3123 = vpack.c.b16 %v3083, %v3079
    %v3124 = vpack.c.b16 %v3084, %v3080
    %v3125 = vpack.c.b16 %v3085, %v3081
    %v3126 = vpack.c.b16 %v3090, %v3086
    %v3127 = vpack.c.b16 %v3091, %v3087
    %v3128 = vpack.c.b16 %v3092, %v3088
    %v3129 = vpack.c.b16 %v3093, %v3089
    %v3130 = vpack.c.b16 %v3098, %v3094
    %v3131 = vpack.c.b16 %v3099, %v3095
    %v3132 = vpack.c.b16 %v3100, %v3096
    %v3133 = vpack.c.b16 %v3101, %v3097
    %3166 = vmatprep.subr.bf16.mxu0 %v3103
    %3167 = vmatpush1.bf16.msra.mxu0 %v3102
    %3168 = vmatprep.subr.bf16.mxu0 %v3107
    %3169 = vmatpush1.bf16.msra.mxu0 %v3106
    %3170 = vmatprep.subr.bf16.mxu0 %v3111
    %3171 = vmatpush1.bf16.msra.mxu0 %v3110
    %3172 = vmatprep.subr.bf16.mxu0 %v3115
    %3173 = vmatpush1.bf16.msra.mxu0 %v3114
    %3174 = vmatprep.subr.bf16.mxu0 %v3119
    %3175 = vmatpush1.bf16.msra.mxu0 %v3118
    %3176 = vmatprep.subr.bf16.mxu0 %v3123
    %3177 = vmatpush1.bf16.msra.mxu0 %v3122
    %3178 = vmatprep.subr.bf16.mxu0 %v3127
    %3179 = vmatpush1.bf16.msra.mxu0 %v3126
    %3180 = vmatprep.subr.bf16.mxu0 %v3131
    %3181 = vmatpush1.bf16.msra.mxu0 %v3130
    %3182 = vmatprep.subr.bf16.mxu0 0
    %3183 = vmatpush1.bf16.msra.mxu0 0
    %3184 = vmatprep.subr.bf16.mxu0 0
    %3185 = vmatpush1.bf16.msra.mxu0 0
    %3186 = vmatprep.subr.bf16.mxu0 0
    %3187 = vmatpush1.bf16.msra.mxu0 0
    %3188 = vmatprep.subr.bf16.mxu0 0
    %3189 = vmatpush1.bf16.msra.mxu0 0
    %3190 = vmatprep.subr.bf16.mxu0 0
    %3191 = vmatpush1.bf16.msra.mxu0 0
    %3192 = vmatprep.subr.bf16.mxu0 0
    %3193 = vmatpush1.bf16.msra.mxu0 0
    %3194 = vmatprep.subr.bf16.mxu0 0
    %3195 = vmatpush1.bf16.msra.mxu0 0
    %3196 = vmatprep.subr.bf16.mxu0 0
    %3197 = vmatpush1.bf16.msra.mxu0 0
    %3198 = vmatprep.mubr.bf16.mxu0 0
    %3199 = vmatmul.mubr.bf16.gmra.mrb[0].mxu0 %v2973
    %v3200 = vpop.f32.mrb[0].mxu0
    %v3201 = vadd.f32 0.0, %v3200
    %v3202 = vpop.f32.mrb[0].mxu0
    %v3203 = vadd.f32 0.0, %v3202
    %v3204 = vpop.f32.mrb[0].mxu0
    %v3205 = vpop.f32.mrb[0].mxu0
    %3206 = vdwg.mxu0
    %3207 = vmatprep.subr.bf16.mxu0 %v3105
    %3208 = vmatpush1.bf16.msra.mxu0 %v3104
    %3209 = vmatprep.subr.bf16.mxu0 %v3109
    %3210 = vmatpush1.bf16.msra.mxu0 %v3108
    %3211 = vmatprep.subr.bf16.mxu0 %v3113
    %3212 = vmatpush1.bf16.msra.mxu0 %v3112
    %3213 = vmatprep.subr.bf16.mxu0 %v3117
    %3214 = vmatpush1.bf16.msra.mxu0 %v3116
    %3215 = vmatprep.subr.bf16.mxu0 %v3121
    %3216 = vmatpush1.bf16.msra.mxu0 %v3120
    %3217 = vmatprep.subr.bf16.mxu0 %v3125
    %3218 = vmatpush1.bf16.msra.mxu0 %v3124
    %3219 = vmatprep.subr.bf16.mxu0 %v3129
    %3220 = vmatpush1.bf16.msra.mxu0 %v3128
    %3221 = vmatprep.subr.bf16.mxu0 %v3133
    %3222 = vmatpush1.bf16.msra.mxu0 %v3132
    %3223 = vmatprep.subr.bf16.mxu0 0
    %3224 = vmatpush1.bf16.msra.mxu0 0
    %3225 = vmatprep.subr.bf16.mxu0 0
    %3226 = vmatpush1.bf16.msra.mxu0 0
    %3227 = vmatprep.subr.bf16.mxu0 0
    %3228 = vmatpush1.bf16.msra.mxu0 0
    %3229 = vmatprep.subr.bf16.mxu0 0
    %3230 = vmatpush1.bf16.msra.mxu0 0
    %3231 = vmatprep.subr.bf16.mxu0 0
    %3232 = vmatpush1.bf16.msra.mxu0 0
    %3233 = vmatprep.subr.bf16.mxu0 0
    %3234 = vmatpush1.bf16.msra.mxu0 0
    %3235 = vmatprep.subr.bf16.mxu0 0
    %3236 = vmatpush1.bf16.msra.mxu0 0
    %3237 = vmatprep.subr.bf16.mxu0 0
    %3238 = vmatpush1.bf16.msra.mxu0 0
    %3239 = vmatprep.mubr.bf16.mxu0 0
    %3240 = vmatmul.mubr.bf16.gmra.mrb[0].mxu0 %v2973
    %v3241 = vpop.f32.mrb[0].mxu0
    %v3242 = vadd.f32 0.0, %v3241
    %v3243 = vpop.f32.mrb[0].mxu0
    %v3244 = vadd.f32 0.0, %v3243
    %v3245 = vpop.f32.mrb[0].mxu0
    %v3246 = vpop.f32.mrb[0].mxu0
    %3247 = vdwg.mxu0
    %v3252 = vcombine.low %v3201, %v3203
    %v3253 = vcombine.low %v3242, %v3244
    %v3255 = vunpack.c.l.s4 1966171168
    %v3256 = vunpack.c.0.s8 %v3255
    %v3257 = vlaneseq
    %v3258 = vshrl.u32 %v3257, 7
    %v3259 = vsub.s32 %v3256, %v3258
    %v3260 = vrot.slane %v3252, %v3259
    %v3262 = vunpack.c.l.s4 1966171168
    %v3263 = vunpack.c.0.s8 %v3262
    %v3264 = vlaneseq
    %v3265 = vshrl.u32 %v3264, 7
    %v3266 = vsub.s32 %v3263, %v3265
    %v3267 = vrot.slane %v3253, %v3266
    %v3268 = vcombine.low %v3260, %v3267
    %v3270 = vunpack.c.l.s4 1966171168
    %v3271 = vunpack.c.0.s8 %v3270
    %v3272 = vlaneseq
    %v3273 = vshrl.u32 %v3272, 7
    %v3274 = vsub.s32 %v3271, %v3273
    %v3275 = vrot.slane %v3268, %v3274
    %v3277 = vadd.f32 %v2972, %v3275
    %v3278 = vmul.f32 %v3277, 0.5
    %v3279 = vtanh.pop %v3278
    %v3280 = vadd.f32 %v3279, 1.0
    %v3281 = vmul.f32 %v3280, 0.5
    %v3283 = vrot.slane %v3277, 3
    %v3285 = vtanh.pop %v3283
    %v3287 = vrot.slane %v3281, 1
    %v3289 = vmul.f32 %v3287, %v2958
    %v3290 = vmul.f32 %v3281, %v3285
    %v3291 = vadd.f32 %v3289, %v3290
    %v3292 = vtanh.pop %v3291
    %v3293 = vrot.slane %v3281, 2
    %v3295 = vmul.f32 %v3293, %v3292
    %s3296 = sld [smem:[#allocation5 + $0x8]]
    %p3297 = scmp.eq.s32.totalorder %s3296, 1
    // Predicated region
    $region106: #{tpu_custom_call.1} parent=1 // pred_check
      %p3298 = pneg %p3297
    $region107: #{tpu_custom_call.1} parent=1 // pred_check_branch
      %3300 = sbr.rel (%p3298) target = $region109
    $region108: #{tpu_custom_call.1} parent=1 // pred_region
      %s3301 = sld [smem:[#allocation9 + $0x8]]
      %s3302 = scalar_lea.vmem [#allocation3], %s3301
      %3303 = vst [vmem:[%s3302] sm:$0x1] %v3295
    $region109: #{tpu_custom_call.1} parent=1 // pred_fallthru
      _
    %s3304 = scalar_lea.vmem [#allocation2], 33
    %v3305 = vld [vmem:[%s3304] ss:$8 sm:$0xf]
    %v3306 = vpack.c.bf16 %v3295, %v3295
    %v3307 = vld [vmem:[%s4] sm:$0xff]
    %v3308 = vld [vmem:[%s4 + $0x8] sm:$0xff]
    %v3309 = vld [vmem:[%s4 + $0x10] sm:$0xff]
    %v3310 = vld [vmem:[%s4 + $0x18] sm:$0xff]
    %v3311 = vld [vmem:[%s4 + $0x20] sm:$0xff]
    %v3312 = vld [vmem:[%s4 + $0x28] sm:$0xff]
    %v3313 = vld [vmem:[%s4 + $0x30] sm:$0xff]
    %v3314 = vld [vmem:[%s4 + $0x38] sm:$0xff]
    %v3315 = vld [vmem:[%s4 + $0x40] sm:$0xff]
    %v3316 = vld [vmem:[%s4 + $0x48] sm:$0xff]
    %v3317 = vld [vmem:[%s4 + $0x50] sm:$0xff]
    %v3318 = vld [vmem:[%s4 + $0x58] sm:$0xff]
    %v3319 = vld [vmem:[%s4 + $0x60] sm:$0xff]
    %v3320 = vld [vmem:[%s4 + $0x68] sm:$0xff]
    %v3321 = vld [vmem:[%s4 + $0x70] sm:$0xff]
    %v3322 = vld [vmem:[%s4 + $0x78] sm:$0xff]
    %v3323 = vld [vmem:[%s4 + $0x80] sm:$0xff]
    %v3324 = vld [vmem:[%s4 + $0x88] sm:$0xff]
    %v3325 = vld [vmem:[%s4 + $0x90] sm:$0xff]
    %v3326 = vld [vmem:[%s4 + $0x98] sm:$0xff]
    %v3327 = vld [vmem:[%s4 + $0xa0] sm:$0xff]
    %v3328 = vld [vmem:[%s4 + $0xa8] sm:$0xff]
    %v3329 = vld [vmem:[%s4 + $0xb0] sm:$0xff]
    %v3330 = vld [vmem:[%s4 + $0xb8] sm:$0xff]
    %v3331 = vld [vmem:[%s4 + $0xc0] sm:$0xff]
    %v3332 = vld [vmem:[%s4 + $0xc8] sm:$0xff]
    %v3333 = vld [vmem:[%s4 + $0xd0] sm:$0xff]
    %v3334 = vld [vmem:[%s4 + $0xd8] sm:$0xff]
    %v3335 = vld [vmem:[%s4 + $0xe0] sm:$0xff]
    %v3336 = vld [vmem:[%s4 + $0xe8] sm:$0xff]
    %v3337 = vld [vmem:[%s4 + $0xf0] sm:$0xff]
    %v3338 = vld [vmem:[%s4 + $0xf8] sm:$0xff]
    %v3371 = vunpack.c.l.b16 %v3307
    %v3372 = vunpack.c.h.b16 %v3307
    %v3373 = vunpack.c.l.b16 %v3308
    %v3374 = vunpack.c.h.b16 %v3308
    %v3375 = vunpack.c.l.b16 %v3309
    %v3376 = vunpack.c.h.b16 %v3309
    %v3377 = vunpack.c.l.b16 %v3310
    %v3378 = vunpack.c.h.b16 %v3310
    %v3379 = vunpack.c.l.b16 %v3311
    %v3380 = vunpack.c.h.b16 %v3311
    %v3381 = vunpack.c.l.b16 %v3312
    %v3382 = vunpack.c.h.b16 %v3312
    %v3383 = vunpack.c.l.b16 %v3313
    %v3384 = vunpack.c.h.b16 %v3313
    %v3385 = vunpack.c.l.b16 %v3314
    %v3386 = vunpack.c.h.b16 %v3314
    %v3387 = vunpack.c.l.b16 %v3315
    %v3388 = vunpack.c.h.b16 %v3315
    %v3389 = vunpack.c.l.b16 %v3316
    %v3390 = vunpack.c.h.b16 %v3316
    %v3391 = vunpack.c.l.b16 %v3317
    %v3392 = vunpack.c.h.b16 %v3317
    %v3393 = vunpack.c.l.b16 %v3318
    %v3394 = vunpack.c.h.b16 %v3318
    %v3395 = vunpack.c.l.b16 %v3319
    %v3396 = vunpack.c.h.b16 %v3319
    %v3397 = vunpack.c.l.b16 %v3320
    %v3398 = vunpack.c.h.b16 %v3320
    %v3399 = vunpack.c.l.b16 %v3321
    %v3400 = vunpack.c.h.b16 %v3321
    %v3401 = vunpack.c.l.b16 %v3322
    %v3402 = vunpack.c.h.b16 %v3322
    %v3403 = vunpack.c.l.b16 %v3323
    %v3404 = vunpack.c.h.b16 %v3323
    %v3405 = vunpack.c.l.b16 %v3324
    %v3406 = vunpack.c.h.b16 %v3324
    %v3407 = vunpack.c.l.b16 %v3325
    %v3408 = vunpack.c.h.b16 %v3325
    %v3409 = vunpack.c.l.b16 %v3326
    %v3410 = vunpack.c.h.b16 %v3326
    %v3411 = vunpack.c.l.b16 %v3327
    %v3412 = vunpack.c.h.b16 %v3327
    %v3413 = vunpack.c.l.b16 %v3328
    %v3414 = vunpack.c.h.b16 %v3328
    %v3415 = vunpack.c.l.b16 %v3329
    %v3416 = vunpack.c.h.b16 %v3329
    %v3417 = vunpack.c.l.b16 %v3330
    %v3418 = vunpack.c.h.b16 %v3330
    %v3419 = vunpack.c.l.b16 %v3331
    %v3420 = vunpack.c.h.b16 %v3331
    %v3421 = vunpack.c.l.b16 %v3332
    %v3422 = vunpack.c.h.b16 %v3332
    %v3423 = vunpack.c.l.b16 %v3333
    %v3424 = vunpack.c.h.b16 %v3333
    %v3425 = vunpack.c.l.b16 %v3334
    %v3426 = vunpack.c.h.b16 %v3334
    %v3427 = vunpack.c.l.b16 %v3335
    %v3428 = vunpack.c.h.b16 %v3335
    %v3429 = vunpack.c.l.b16 %v3336
    %v3430 = vunpack.c.h.b16 %v3336
    %v3431 = vunpack.c.l.b16 %v3337
    %v3432 = vunpack.c.h.b16 %v3337
    %v3433 = vunpack.c.l.b16 %v3338
    %v3434 = vunpack.c.h.b16 %v3338
    %v3435 = vpack.c.b16 %v3375, %v3371
    %v3436 = vpack.c.b16 %v3376, %v3372
    %v3437 = vpack.c.b16 %v3377, %v3373
    %v3438 = vpack.c.b16 %v3378, %v3374
    %v3439 = vpack.c.b16 %v3383, %v3379
    %v3440 = vpack.c.b16 %v3384, %v3380
    %v3441 = vpack.c.b16 %v3385, %v3381
    %v3442 = vpack.c.b16 %v3386, %v3382
    %v3443 = vpack.c.b16 %v3391, %v3387
    %v3444 = vpack.c.b16 %v3392, %v3388
    %v3445 = vpack.c.b16 %v3393, %v3389
    %v3446 = vpack.c.b16 %v3394, %v3390
    %v3447 = vpack.c.b16 %v3399, %v3395
    %v3448 = vpack.c.b16 %v3400, %v3396
    %v3449 = vpack.c.b16 %v3401, %v3397
    %v3450 = vpack.c.b16 %v3402, %v3398
    %v3451 = vpack.c.b16 %v3407, %v3403
    %v3452 = vpack.c.b16 %v3408, %v3404
    %v3453 = vpack.c.b16 %v3409, %v3405
    %v3454 = vpack.c.b16 %v3410, %v3406
    %v3455 = vpack.c.b16 %v3415, %v3411
    %v3456 = vpack.c.b16 %v3416, %v3412
    %v3457 = vpack.c.b16 %v3417, %v3413
    %v3458 = vpack.c.b16 %v3418, %v3414
    %v3459 = vpack.c.b16 %v3423, %v3419
    %v3460 = vpack.c.b16 %v3424, %v3420
    %v3461 = vpack.c.b16 %v3425, %v3421
    %v3462 = vpack.c.b16 %v3426, %v3422
    %v3463 = vpack.c.b16 %v3431, %v3427
    %v3464 = vpack.c.b16 %v3432, %v3428
    %v3465 = vpack.c.b16 %v3433, %v3429
    %v3466 = vpack.c.b16 %v3434, %v3430
    %3499 = vmatprep.subr.bf16.mxu0 %v3436
    %3500 = vmatpush1.bf16.msra.mxu0 %v3435
    %3501 = vmatprep.subr.bf16.mxu0 %v3440
    %3502 = vmatpush1.bf16.msra.mxu0 %v3439
    %3503 = vmatprep.subr.bf16.mxu0 %v3444
    %3504 = vmatpush1.bf16.msra.mxu0 %v3443
    %3505 = vmatprep.subr.bf16.mxu0 %v3448
    %3506 = vmatpush1.bf16.msra.mxu0 %v3447
    %3507 = vmatprep.subr.bf16.mxu0 %v3452
    %3508 = vmatpush1.bf16.msra.mxu0 %v3451
    %3509 = vmatprep.subr.bf16.mxu0 %v3456
    %3510 = vmatpush1.bf16.msra.mxu0 %v3455
    %3511 = vmatprep.subr.bf16.mxu0 %v3460
    %3512 = vmatpush1.bf16.msra.mxu0 %v3459
    %3513 = vmatprep.subr.bf16.mxu0 %v3464
    %3514 = vmatpush1.bf16.msra.mxu0 %v3463
    %3515 = vmatprep.subr.bf16.mxu0 0
    %3516 = vmatpush1.bf16.msra.mxu0 0
    %3517 = vmatprep.subr.bf16.mxu0 0
    %3518 = vmatpush1.bf16.msra.mxu0 0
    %3519 = vmatprep.subr.bf16.mxu0 0
    %3520 = vmatpush1.bf16.msra.mxu0 0
    %3521 = vmatprep.subr.bf16.mxu0 0
    %3522 = vmatpush1.bf16.msra.mxu0 0
    %3523 = vmatprep.subr.bf16.mxu0 0
    %3524 = vmatpush1.bf16.msra.mxu0 0
    %3525 = vmatprep.subr.bf16.mxu0 0
    %3526 = vmatpush1.bf16.msra.mxu0 0
    %3527 = vmatprep.subr.bf16.mxu0 0
    %3528 = vmatpush1.bf16.msra.mxu0 0
    %3529 = vmatprep.subr.bf16.mxu0 0
    %3530 = vmatpush1.bf16.msra.mxu0 0
    %3531 = vmatprep.mubr.bf16.mxu0 0
    %3532 = vmatmul.mubr.bf16.gmra.mrb[0].mxu0 %v3306
    %v3533 = vpop.f32.mrb[0].mxu0
    %v3534 = vadd.f32 0.0, %v3533
    %v3535 = vpop.f32.mrb[0].mxu0
    %v3536 = vadd.f32 0.0, %v3535
    %v3537 = vpop.f32.mrb[0].mxu0
    %v3538 = vpop.f32.mrb[0].mxu0
    %3539 = vdwg.mxu0
    %3540 = vmatprep.subr.bf16.mxu0 %v3438
    %3541 = vmatpush1.bf16.msra.mxu0 %v3437
    %3542 = vmatprep.subr.bf16.mxu0 %v3442
    %3543 = vmatpush1.bf16.msra.mxu0 %v3441
    %3544 = vmatprep.subr.bf16.mxu0 %v3446
    %3545 = vmatpush1.bf16.msra.mxu0 %v3445
    %3546 = vmatprep.subr.bf16.mxu0 %v3450
    %3547 = vmatpush1.bf16.msra.mxu0 %v3449
    %3548 = vmatprep.subr.bf16.mxu0 %v3454
    %3549 = vmatpush1.bf16.msra.mxu0 %v3453
    %3550 = vmatprep.subr.bf16.mxu0 %v3458
    %3551 = vmatpush1.bf16.msra.mxu0 %v3457
    %3552 = vmatprep.subr.bf16.mxu0 %v3462
    %3553 = vmatpush1.bf16.msra.mxu0 %v3461
    %3554 = vmatprep.subr.bf16.mxu0 %v3466
    %3555 = vmatpush1.bf16.msra.mxu0 %v3465
    %3556 = vmatprep.subr.bf16.mxu0 0
    %3557 = vmatpush1.bf16.msra.mxu0 0
    %3558 = vmatprep.subr.bf16.mxu0 0
    %3559 = vmatpush1.bf16.msra.mxu0 0
    %3560 = vmatprep.subr.bf16.mxu0 0
    %3561 = vmatpush1.bf16.msra.mxu0 0
    %3562 = vmatprep.subr.bf16.mxu0 0
    %3563 = vmatpush1.bf16.msra.mxu0 0
    %3564 = vmatprep.subr.bf16.mxu0 0
    %3565 = vmatpush1.bf16.msra.mxu0 0
    %3566 = vmatprep.subr.bf16.mxu0 0
    %3567 = vmatpush1.bf16.msra.mxu0 0
    %3568 = vmatprep.subr.bf16.mxu0 0
    %3569 = vmatpush1.bf16.msra.mxu0 0
    %3570 = vmatprep.subr.bf16.mxu0 0
    %3571 = vmatpush1.bf16.msra.mxu0 0
    %3572 = vmatprep.mubr.bf16.mxu0 0
    %3573 = vmatmul.mubr.bf16.gmra.mrb[0].mxu0 %v3306
    %v3574 = vpop.f32.mrb[0].mxu0
    %v3575 = vadd.f32 0.0, %v3574
    %v3576 = vpop.f32.mrb[0].mxu0
    %v3577 = vadd.f32 0.0, %v3576
    %v3578 = vpop.f32.mrb[0].mxu0
    %v3579 = vpop.f32.mrb[0].mxu0
    %3580 = vdwg.mxu0
    %v3585 = vcombine.low %v3534, %v3536
    %v3586 = vcombine.low %v3575, %v3577
    %v3588 = vunpack.c.l.s4 1966171168
    %v3589 = vunpack.c.0.s8 %v3588
    %v3590 = vlaneseq
    %v3591 = vshrl.u32 %v3590, 7
    %v3592 = vsub.s32 %v3589, %v3591
    %v3593 = vrot.slane %v3585, %v3592
    %v3595 = vunpack.c.l.s4 1966171168
    %v3596 = vunpack.c.0.s8 %v3595
    %v3597 = vlaneseq
    %v3598 = vshrl.u32 %v3597, 7
    %v3599 = vsub.s32 %v3596, %v3598
    %v3600 = vrot.slane %v3586, %v3599
    %v3601 = vcombine.low %v3593, %v3600
    %v3603 = vunpack.c.l.s4 1966171168
    %v3604 = vunpack.c.0.s8 %v3603
    %v3605 = vlaneseq
    %v3606 = vshrl.u32 %v3605, 7
    %v3607 = vsub.s32 %v3604, %v3606
    %v3608 = vrot.slane %v3601, %v3607
    %v3610 = vadd.f32 %v3305, %v3608
    %v3611 = vmul.f32 %v3610, 0.5
    %v3612 = vtanh.pop %v3611
    %v3613 = vadd.f32 %v3612, 1.0
    %v3614 = vmul.f32 %v3613, 0.5
    %v3616 = vrot.slane %v3610, 3
    %v3618 = vtanh.pop %v3616
    %v3620 = vrot.slane %v3614, 1
    %v3622 = vmul.f32 %v3620, %v3291
    %v3623 = vmul.f32 %v3614, %v3618
    %v3624 = vadd.f32 %v3622, %v3623
    %v3625 = vtanh.pop %v3624
    %v3626 = vrot.slane %v3614, 2
    %v3628 = vmul.f32 %v3626, %v3625
    %s3629 = sld [smem:[#allocation5 + $0x9]]
    %p3630 = scmp.eq.s32.totalorder %s3629, 1
    // Predicated region
    $region110: #{tpu_custom_call.1} parent=1 // pred_check
      %p3631 = pneg %p3630
    $region111: #{tpu_custom_call.1} parent=1 // pred_check_branch
      %3633 = sbr.rel (%p3631) target = $region113
    $region112: #{tpu_custom_call.1} parent=1 // pred_region
      %s3634 = sld [smem:[#allocation9 + $0x9]]
      %s3635 = scalar_lea.vmem [#allocation3], %s3634
      %3636 = vst [vmem:[%s3635] sm:$0x1] %v3628
    $region113: #{tpu_custom_call.1} parent=1 // pred_fallthru
      _
    %s3637 = scalar_lea.vmem [#allocation2], 34
    %v3638 = vld [vmem:[%s3637] ss:$8 sm:$0xf]
    %v3639 = vpack.c.bf16 %v3628, %v3628
    %v3640 = vld [vmem:[%s4] sm:$0xff]
    %v3641 = vld [vmem:[%s4 + $0x8] sm:$0xff]
    %v3642 = vld [vmem:[%s4 + $0x10] sm:$0xff]
    %v3643 = vld [vmem:[%s4 + $0x18] sm:$0xff]
    %v3644 = vld [vmem:[%s4 + $0x20] sm:$0xff]
    %v3645 = vld [vmem:[%s4 + $0x28] sm:$0xff]
    %v3646 = vld [vmem:[%s4 + $0x30] sm:$0xff]
    %v3647 = vld [vmem:[%s4 + $0x38] sm:$0xff]
    %v3648 = vld [vmem:[%s4 + $0x40] sm:$0xff]
    %v3649 = vld [vmem:[%s4 + $0x48] sm:$0xff]
    %v3650 = vld [vmem:[%s4 + $0x50] sm:$0xff]
    %v3651 = vld [vmem:[%s4 + $0x58] sm:$0xff]
    %v3652 = vld [vmem:[%s4 + $0x60] sm:$0xff]
    %v3653 = vld [vmem:[%s4 + $0x68] sm:$0xff]
    %v3654 = vld [vmem:[%s4 + $0x70] sm:$0xff]
    %v3655 = vld [vmem:[%s4 + $0x78] sm:$0xff]
    %v3656 = vld [vmem:[%s4 + $0x80] sm:$0xff]
    %v3657 = vld [vmem:[%s4 + $0x88] sm:$0xff]
    %v3658 = vld [vmem:[%s4 + $0x90] sm:$0xff]
    %v3659 = vld [vmem:[%s4 + $0x98] sm:$0xff]
    %v3660 = vld [vmem:[%s4 + $0xa0] sm:$0xff]
    %v3661 = vld [vmem:[%s4 + $0xa8] sm:$0xff]
    %v3662 = vld [vmem:[%s4 + $0xb0] sm:$0xff]
    %v3663 = vld [vmem:[%s4 + $0xb8] sm:$0xff]
    %v3664 = vld [vmem:[%s4 + $0xc0] sm:$0xff]
    %v3665 = vld [vmem:[%s4 + $0xc8] sm:$0xff]
    %v3666 = vld [vmem:[%s4 + $0xd0] sm:$0xff]
    %v3667 = vld [vmem:[%s4 + $0xd8] sm:$0xff]
    %v3668 = vld [vmem:[%s4 + $0xe0] sm:$0xff]
    %v3669 = vld [vmem:[%s4 + $0xe8] sm:$0xff]
    %v3670 = vld [vmem:[%s4 + $0xf0] sm:$0xff]
    %v3671 = vld [vmem:[%s4 + $0xf8] sm:$0xff]
    %v3704 = vunpack.c.l.b16 %v3640
    %v3705 = vunpack.c.h.b16 %v3640
    %v3706 = vunpack.c.l.b16 %v3641
    %v3707 = vunpack.c.h.b16 %v3641
    %v3708 = vunpack.c.l.b16 %v3642
    %v3709 = vunpack.c.h.b16 %v3642
    %v3710 = vunpack.c.l.b16 %v3643
    %v3711 = vunpack.c.h.b16 %v3643
    %v3712 = vunpack.c.l.b16 %v3644
    %v3713 = vunpack.c.h.b16 %v3644
    %v3714 = vunpack.c.l.b16 %v3645
    %v3715 = vunpack.c.h.b16 %v3645
    %v3716 = vunpack.c.l.b16 %v3646
    %v3717 = vunpack.c.h.b16 %v3646
    %v3718 = vunpack.c.l.b16 %v3647
    %v3719 = vunpack.c.h.b16 %v3647
    %v3720 = vunpack.c.l.b16 %v3648
    %v3721 = vunpack.c.h.b16 %v3648
    %v3722 = vunpack.c.l.b16 %v3649
    %v3723 = vunpack.c.h.b16 %v3649
    %v3724 = vunpack.c.l.b16 %v3650
    %v3725 = vunpack.c.h.b16 %v3650
    %v3726 = vunpack.c.l.b16 %v3651
    %v3727 = vunpack.c.h.b16 %v3651
    %v3728 = vunpack.c.l.b16 %v3652
    %v3729 = vunpack.c.h.b16 %v3652
    %v3730 = vunpack.c.l.b16 %v3653
    %v3731 = vunpack.c.h.b16 %v3653
    %v3732 = vunpack.c.l.b16 %v3654
    %v3733 = vunpack.c.h.b16 %v3654
    %v3734 = vunpack.c.l.b16 %v3655
    %v3735 = vunpack.c.h.b16 %v3655
    %v3736 = vunpack.c.l.b16 %v3656
    %v3737 = vunpack.c.h.b16 %v3656
    %v3738 = vunpack.c.l.b16 %v3657
    %v3739 = vunpack.c.h.b16 %v3657
    %v3740 = vunpack.c.l.b16 %v3658
    %v3741 = vunpack.c.h.b16 %v3658
    %v3742 = vunpack.c.l.b16 %v3659
    %v3743 = vunpack.c.h.b16 %v3659
    %v3744 = vunpack.c.l.b16 %v3660
    %v3745 = vunpack.c.h.b16 %v3660
    %v3746 = vunpack.c.l.b16 %v3661
    %v3747 = vunpack.c.h.b16 %v3661
    %v3748 = vunpack.c.l.b16 %v3662
    %v3749 = vunpack.c.h.b16 %v3662
    %v3750 = vunpack.c.l.b16 %v3663
    %v3751 = vunpack.c.h.b16 %v3663
    %v3752 = vunpack.c.l.b16 %v3664
    %v3753 = vunpack.c.h.b16 %v3664
    %v3754 = vunpack.c.l.b16 %v3665
    %v3755 = vunpack.c.h.b16 %v3665
    %v3756 = vunpack.c.l.b16 %v3666
    %v3757 = vunpack.c.h.b16 %v3666
    %v3758 = vunpack.c.l.b16 %v3667
    %v3759 = vunpack.c.h.b16 %v3667
    %v3760 = vunpack.c.l.b16 %v3668
    %v3761 = vunpack.c.h.b16 %v3668
    %v3762 = vunpack.c.l.b16 %v3669
    %v3763 = vunpack.c.h.b16 %v3669
    %v3764 = vunpack.c.l.b16 %v3670
    %v3765 = vunpack.c.h.b16 %v3670
    %v3766 = vunpack.c.l.b16 %v3671
    %v3767 = vunpack.c.h.b16 %v3671
    %v3768 = vpack.c.b16 %v3708, %v3704
    %v3769 = vpack.c.b16 %v3709, %v3705
    %v3770 = vpack.c.b16 %v3710, %v3706
    %v3771 = vpack.c.b16 %v3711, %v3707
    %v3772 = vpack.c.b16 %v3716, %v3712
    %v3773 = vpack.c.b16 %v3717, %v3713
    %v3774 = vpack.c.b16 %v3718, %v3714
    %v3775 = vpack.c.b16 %v3719, %v3715
    %v3776 = vpack.c.b16 %v3724, %v3720
    %v3777 = vpack.c.b16 %v3725, %v3721
    %v3778 = vpack.c.b16 %v3726, %v3722
    %v3779 = vpack.c.b16 %v3727, %v3723
    %v3780 = vpack.c.b16 %v3732, %v3728
    %v3781 = vpack.c.b16 %v3733, %v3729
    %v3782 = vpack.c.b16 %v3734, %v3730
    %v3783 = vpack.c.b16 %v3735, %v3731
    %v3784 = vpack.c.b16 %v3740, %v3736
    %v3785 = vpack.c.b16 %v3741, %v3737
    %v3786 = vpack.c.b16 %v3742, %v3738
    %v3787 = vpack.c.b16 %v3743, %v3739
    %v3788 = vpack.c.b16 %v3748, %v3744
    %v3789 = vpack.c.b16 %v3749, %v3745
    %v3790 = vpack.c.b16 %v3750, %v3746
    %v3791 = vpack.c.b16 %v3751, %v3747
    %v3792 = vpack.c.b16 %v3756, %v3752
    %v3793 = vpack.c.b16 %v3757, %v3753
    %v3794 = vpack.c.b16 %v3758, %v3754
    %v3795 = vpack.c.b16 %v3759, %v3755
    %v3796 = vpack.c.b16 %v3764, %v3760
    %v3797 = vpack.c.b16 %v3765, %v3761
    %v3798 = vpack.c.b16 %v3766, %v3762
    %v3799 = vpack.c.b16 %v3767, %v3763
    %3832 = vmatprep.subr.bf16.mxu0 %v3769
    %3833 = vmatpush1.bf16.msra.mxu0 %v3768
    %3834 = vmatprep.subr.bf16.mxu0 %v3773
    %3835 = vmatpush1.bf16.msra.mxu0 %v3772
    %3836 = vmatprep.subr.bf16.mxu0 %v3777
    %3837 = vmatpush1.bf16.msra.mxu0 %v3776
    %3838 = vmatprep.subr.bf16.mxu0 %v3781
    %3839 = vmatpush1.bf16.msra.mxu0 %v3780
    %3840 = vmatprep.subr.bf16.mxu0 %v3785
    %3841 = vmatpush1.bf16.msra.mxu0 %v3784
    %3842 = vmatprep.subr.bf16.mxu0 %v3789
    %3843 = vmatpush1.bf16.msra.mxu0 %v3788
    %3844 = vmatprep.subr.bf16.mxu0 %v3793
    %3845 = vmatpush1.bf16.msra.mxu0 %v3792
    %3846 = vmatprep.subr.bf16.mxu0 %v3797
    %3847 = vmatpush1.bf16.msra.mxu0 %v3796
    %3848 = vmatprep.subr.bf16.mxu0 0
    %3849 = vmatpush1.bf16.msra.mxu0 0
    %3850 = vmatprep.subr.bf16.mxu0 0
    %3851 = vmatpush1.bf16.msra.mxu0 0
    %3852 = vmatprep.subr.bf16.mxu0 0
    %3853 = vmatpush1.bf16.msra.mxu0 0
    %3854 = vmatprep.subr.bf16.mxu0 0
    %3855 = vmatpush1.bf16.msra.mxu0 0
    %3856 = vmatprep.subr.bf16.mxu0 0
    %3857 = vmatpush1.bf16.msra.mxu0 0
    %3858 = vmatprep.subr.bf16.mxu0 0
    %3859 = vmatpush1.bf16.msra.mxu0 0
    %3860 = vmatprep.subr.bf16.mxu0 0
    %3861 = vmatpush1.bf16.msra.mxu0 0
    %3862 = vmatprep.subr.bf16.mxu0 0
    %3863 = vmatpush1.bf16.msra.mxu0 0
    %3864 = vmatprep.mubr.bf16.mxu0 0
    %3865 = vmatmul.mubr.bf16.gmra.mrb[0].mxu0 %v3639
    %v3866 = vpop.f32.mrb[0].mxu0
    %v3867 = vadd.f32 0.0, %v3866
    %v3868 = vpop.f32.mrb[0].mxu0
    %v3869 = vadd.f32 0.0, %v3868
    %v3870 = vpop.f32.mrb[0].mxu0
    %v3871 = vpop.f32.mrb[0].mxu0
    %3872 = vdwg.mxu0
    %3873 = vmatprep.subr.bf16.mxu0 %v3771
    %3874 = vmatpush1.bf16.msra.mxu0 %v3770
    %3875 = vmatprep.subr.bf16.mxu0 %v3775
    %3876 = vmatpush1.bf16.msra.mxu0 %v3774
    %3877 = vmatprep.subr.bf16.mxu0 %v3779
    %3878 = vmatpush1.bf16.msra.mxu0 %v3778
    %3879 = vmatprep.subr.bf16.mxu0 %v3783
    %3880 = vmatpush1.bf16.msra.mxu0 %v3782
    %3881 = vmatprep.subr.bf16.mxu0 %v3787
    %3882 = vmatpush1.bf16.msra.mxu0 %v3786
    %3883 = vmatprep.subr.bf16.mxu0 %v3791
    %3884 = vmatpush1.bf16.msra.mxu0 %v3790
    %3885 = vmatprep.subr.bf16.mxu0 %v3795
    %3886 = vmatpush1.bf16.msra.mxu0 %v3794
    %3887 = vmatprep.subr.bf16.mxu0 %v3799
    %3888 = vmatpush1.bf16.msra.mxu0 %v3798
    %3889 = vmatprep.subr.bf16.mxu0 0
    %3890 = vmatpush1.bf16.msra.mxu0 0
    %3891 = vmatprep.subr.bf16.mxu0 0
    %3892 = vmatpush1.bf16.msra.mxu0 0
    %3893 = vmatprep.subr.bf16.mxu0 0
    %3894 = vmatpush1.bf16.msra.mxu0 0
    %3895 = vmatprep.subr.bf16.mxu0 0
    %3896 = vmatpush1.bf16.msra.mxu0 0
    %3897 = vmatprep.subr.bf16.mxu0 0
    %3898 = vmatpush1.bf16.msra.mxu0 0
    %3899 = vmatprep.subr.bf16.mxu0 0
    %3900 = vmatpush1.bf16.msra.mxu0 0
    %3901 = vmatprep.subr.bf16.mxu0 0
    %3902 = vmatpush1.bf16.msra.mxu0 0
    %3903 = vmatprep.subr.bf16.mxu0 0
    %3904 = vmatpush1.bf16.msra.mxu0 0
    %3905 = vmatprep.mubr.bf16.mxu0 0
    %3906 = vmatmul.mubr.bf16.gmra.mrb[0].mxu0 %v3639
    %v3907 = vpop.f32.mrb[0].mxu0
    %v3908 = vadd.f32 0.0, %v3907
    %v3909 = vpop.f32.mrb[0].mxu0
    %v3910 = vadd.f32 0.0, %v3909
    %v3911 = vpop.f32.mrb[0].mxu0
    %v3912 = vpop.f32.mrb[0].mxu0
    %3913 = vdwg.mxu0
    %v3918 = vcombine.low %v3867, %v3869
    %v3919 = vcombine.low %v3908, %v3910
    %v3921 = vunpack.c.l.s4 1966171168
    %v3922 = vunpack.c.0.s8 %v3921
    %v3923 = vlaneseq
    %v3924 = vshrl.u32 %v3923, 7
    %v3925 = vsub.s32 %v3922, %v3924
    %v3926 = vrot.slane %v3918, %v3925
    %v3928 = vunpack.c.l.s4 1966171168
    %v3929 = vunpack.c.0.s8 %v3928
    %v3930 = vlaneseq
    %v3931 = vshrl.u32 %v3930, 7
    %v3932 = vsub.s32 %v3929, %v3931
    %v3933 = vrot.slane %v3919, %v3932
    %v3934 = vcombine.low %v3926, %v3933
    %v3936 = vunpack.c.l.s4 1966171168
    %v3937 = vunpack.c.0.s8 %v3936
    %v3938 = vlaneseq
    %v3939 = vshrl.u32 %v3938, 7
    %v3940 = vsub.s32 %v3937, %v3939
    %v3941 = vrot.slane %v3934, %v3940
    %v3943 = vadd.f32 %v3638, %v3941
    %v3944 = vmul.f32 %v3943, 0.5
    %v3945 = vtanh.pop %v3944
    %v3946 = vadd.f32 %v3945, 1.0
    %v3947 = vmul.f32 %v3946, 0.5
    %v3949 = vrot.slane %v3943, 3
    %v3951 = vtanh.pop %v3949
    %v3953 = vrot.slane %v3947, 1
    %v3955 = vmul.f32 %v3953, %v3624
    %v3956 = vmul.f32 %v3947, %v3951
    %v3957 = vadd.f32 %v3955, %v3956
    %v3958 = vtanh.pop %v3957
    %v3959 = vrot.slane %v3947, 2
    %v3961 = vmul.f32 %v3959, %v3958
    %s3962 = sld [smem:[#allocation5 + $0xa]]
    %p3963 = scmp.eq.s32.totalorder %s3962, 1
    // Predicated region
    $region114: #{tpu_custom_call.1} parent=1 // pred_check
      %p3964 = pneg %p3963
    $region115: #{tpu_custom_call.1} parent=1 // pred_check_branch
      %3966 = sbr.rel (%p3964) target = $region117
    $region116: #{tpu_custom_call.1} parent=1 // pred_region
      %s3967 = sld [smem:[#allocation9 + $0xa]]
      %s3968 = scalar_lea.vmem [#allocation3], %s3967
      %3969 = vst [vmem:[%s3968] sm:$0x1] %v3961
    $region117: #{tpu_custom_call.1} parent=1 // pred_fallthru
      _
    %s3970 = scalar_lea.vmem [#allocation2], 35
    %v3971 = vld [vmem:[%s3970] ss:$8 sm:$0xf]
    %v3972 = vpack.c.bf16 %v3961, %v3961
    %v3973 = vld [vmem:[%s4] sm:$0xff]
    %v3974 = vld [vmem:[%s4 + $0x8] sm:$0xff]
    %v3975 = vld [vmem:[%s4 + $0x10] sm:$0xff]
    %v3976 = vld [vmem:[%s4 + $0x18] sm:$0xff]
    %v3977 = vld [vmem:[%s4 + $0x20] sm:$0xff]
    %v3978 = vld [vmem:[%s4 + $0x28] sm:$0xff]
    %v3979 = vld [vmem:[%s4 + $0x30] sm:$0xff]
    %v3980 = vld [vmem:[%s4 + $0x38] sm:$0xff]
    %v3981 = vld [vmem:[%s4 + $0x40] sm:$0xff]
    %v3982 = vld [vmem:[%s4 + $0x48] sm:$0xff]
    %v3983 = vld [vmem:[%s4 + $0x50] sm:$0xff]
    %v3984 = vld [vmem:[%s4 + $0x58] sm:$0xff]
    %v3985 = vld [vmem:[%s4 + $0x60] sm:$0xff]
    %v3986 = vld [vmem:[%s4 + $0x68] sm:$0xff]
    %v3987 = vld [vmem:[%s4 + $0x70] sm:$0xff]
    %v3988 = vld [vmem:[%s4 + $0x78] sm:$0xff]
    %v3989 = vld [vmem:[%s4 + $0x80] sm:$0xff]
    %v3990 = vld [vmem:[%s4 + $0x88] sm:$0xff]
    %v3991 = vld [vmem:[%s4 + $0x90] sm:$0xff]
    %v3992 = vld [vmem:[%s4 + $0x98] sm:$0xff]
    %v3993 = vld [vmem:[%s4 + $0xa0] sm:$0xff]
    %v3994 = vld [vmem:[%s4 + $0xa8] sm:$0xff]
    %v3995 = vld [vmem:[%s4 + $0xb0] sm:$0xff]
    %v3996 = vld [vmem:[%s4 + $0xb8] sm:$0xff]
    %v3997 = vld [vmem:[%s4 + $0xc0] sm:$0xff]
    %v3998 = vld [vmem:[%s4 + $0xc8] sm:$0xff]
    %v3999 = vld [vmem:[%s4 + $0xd0] sm:$0xff]
    %v4000 = vld [vmem:[%s4 + $0xd8] sm:$0xff]
    %v4001 = vld [vmem:[%s4 + $0xe0] sm:$0xff]
    %v4002 = vld [vmem:[%s4 + $0xe8] sm:$0xff]
    %v4003 = vld [vmem:[%s4 + $0xf0] sm:$0xff]
    %v4004 = vld [vmem:[%s4 + $0xf8] sm:$0xff]
    %v4037 = vunpack.c.l.b16 %v3973
    %v4038 = vunpack.c.h.b16 %v3973
    %v4039 = vunpack.c.l.b16 %v3974
    %v4040 = vunpack.c.h.b16 %v3974
    %v4041 = vunpack.c.l.b16 %v3975
    %v4042 = vunpack.c.h.b16 %v3975
    %v4043 = vunpack.c.l.b16 %v3976
    %v4044 = vunpack.c.h.b16 %v3976
    %v4045 = vunpack.c.l.b16 %v3977
    %v4046 = vunpack.c.h.b16 %v3977
    %v4047 = vunpack.c.l.b16 %v3978
    %v4048 = vunpack.c.h.b16 %v3978
    %v4049 = vunpack.c.l.b16 %v3979
    %v4050 = vunpack.c.h.b16 %v3979
    %v4051 = vunpack.c.l.b16 %v3980
    %v4052 = vunpack.c.h.b16 %v3980
    %v4053 = vunpack.c.l.b16 %v3981
    %v4054 = vunpack.c.h.b16 %v3981
    %v4055 = vunpack.c.l.b16 %v3982
    %v4056 = vunpack.c.h.b16 %v3982
    %v4057 = vunpack.c.l.b16 %v3983
    %v4058 = vunpack.c.h.b16 %v3983
    %v4059 = vunpack.c.l.b16 %v3984
    %v4060 = vunpack.c.h.b16 %v3984
    %v4061 = vunpack.c.l.b16 %v3985
    %v4062 = vunpack.c.h.b16 %v3985
    %v4063 = vunpack.c.l.b16 %v3986
    %v4064 = vunpack.c.h.b16 %v3986
    %v4065 = vunpack.c.l.b16 %v3987
    %v4066 = vunpack.c.h.b16 %v3987
    %v4067 = vunpack.c.l.b16 %v3988
    %v4068 = vunpack.c.h.b16 %v3988
    %v4069 = vunpack.c.l.b16 %v3989
    %v4070 = vunpack.c.h.b16 %v3989
    %v4071 = vunpack.c.l.b16 %v3990
    %v4072 = vunpack.c.h.b16 %v3990
    %v4073 = vunpack.c.l.b16 %v3991
    %v4074 = vunpack.c.h.b16 %v3991
    %v4075 = vunpack.c.l.b16 %v3992
    %v4076 = vunpack.c.h.b16 %v3992
    %v4077 = vunpack.c.l.b16 %v3993
    %v4078 = vunpack.c.h.b16 %v3993
    %v4079 = vunpack.c.l.b16 %v3994
    %v4080 = vunpack.c.h.b16 %v3994
    %v4081 = vunpack.c.l.b16 %v3995
    %v4082 = vunpack.c.h.b16 %v3995
    %v4083 = vunpack.c.l.b16 %v3996
    %v4084 = vunpack.c.h.b16 %v3996
    %v4085 = vunpack.c.l.b16 %v3997
    %v4086 = vunpack.c.h.b16 %v3997
    %v4087 = vunpack.c.l.b16 %v3998
    %v4088 = vunpack.c.h.b16 %v3998
    %v4089 = vunpack.c.l.b16 %v3999
    %v4090 = vunpack.c.h.b16 %v3999
    %v4091 = vunpack.c.l.b16 %v4000
    %v4092 = vunpack.c.h.b16 %v4000
    %v4093 = vunpack.c.l.b16 %v4001
    %v4094 = vunpack.c.h.b16 %v4001
    %v4095 = vunpack.c.l.b16 %v4002
    %v4096 = vunpack.c.h.b16 %v4002
    %v4097 = vunpack.c.l.b16 %v4003
    %v4098 = vunpack.c.h.b16 %v4003
    %v4099 = vunpack.c.l.b16 %v4004
    %v4100 = vunpack.c.h.b16 %v4004
    %v4101 = vpack.c.b16 %v4041, %v4037
    %v4102 = vpack.c.b16 %v4042, %v4038
    %v4103 = vpack.c.b16 %v4043, %v4039
    %v4104 = vpack.c.b16 %v4044, %v4040
    %v4105 = vpack.c.b16 %v4049, %v4045
    %v4106 = vpack.c.b16 %v4050, %v4046
    %v4107 = vpack.c.b16 %v4051, %v4047
    %v4108 = vpack.c.b16 %v4052, %v4048
    %v4109 = vpack.c.b16 %v4057, %v4053
    %v4110 = vpack.c.b16 %v4058, %v4054
    %v4111 = vpack.c.b16 %v4059, %v4055
    %v4112 = vpack.c.b16 %v4060, %v4056
    %v4113 = vpack.c.b16 %v4065, %v4061
    %v4114 = vpack.c.b16 %v4066, %v4062
    %v4115 = vpack.c.b16 %v4067, %v4063
    %v4116 = vpack.c.b16 %v4068, %v4064
    %v4117 = vpack.c.b16 %v4073, %v4069
    %v4118 = vpack.c.b16 %v4074, %v4070
    %v4119 = vpack.c.b16 %v4075, %v4071
    %v4120 = vpack.c.b16 %v4076, %v4072
    %v4121 = vpack.c.b16 %v4081, %v4077
    %v4122 = vpack.c.b16 %v4082, %v4078
    %v4123 = vpack.c.b16 %v4083, %v4079
    %v4124 = vpack.c.b16 %v4084, %v4080
    %v4125 = vpack.c.b16 %v4089, %v4085
    %v4126 = vpack.c.b16 %v4090, %v4086
    %v4127 = vpack.c.b16 %v4091, %v4087
    %v4128 = vpack.c.b16 %v4092, %v4088
    %v4129 = vpack.c.b16 %v4097, %v4093
    %v4130 = vpack.c.b16 %v4098, %v4094
    %v4131 = vpack.c.b16 %v4099, %v4095
    %v4132 = vpack.c.b16 %v4100, %v4096
    %4165 = vmatprep.subr.bf16.mxu0 %v4102
    %4166 = vmatpush1.bf16.msra.mxu0 %v4101
    %4167 = vmatprep.subr.bf16.mxu0 %v4106
    %4168 = vmatpush1.bf16.msra.mxu0 %v4105
    %4169 = vmatprep.subr.bf16.mxu0 %v4110
    %4170 = vmatpush1.bf16.msra.mxu0 %v4109
    %4171 = vmatprep.subr.bf16.mxu0 %v4114
    %4172 = vmatpush1.bf16.msra.mxu0 %v4113
    %4173 = vmatprep.subr.bf16.mxu0 %v4118
    %4174 = vmatpush1.bf16.msra.mxu0 %v4117
    %4175 = vmatprep.subr.bf16.mxu0 %v4122
    %4176 = vmatpush1.bf16.msra.mxu0 %v4121
    %4177 = vmatprep.subr.bf16.mxu0 %v4126
    %4178 = vmatpush1.bf16.msra.mxu0 %v4125
    %4179 = vmatprep.subr.bf16.mxu0 %v4130
    %4180 = vmatpush1.bf16.msra.mxu0 %v4129
    %4181 = vmatprep.subr.bf16.mxu0 0
    %4182 = vmatpush1.bf16.msra.mxu0 0
    %4183 = vmatprep.subr.bf16.mxu0 0
    %4184 = vmatpush1.bf16.msra.mxu0 0
    %4185 = vmatprep.subr.bf16.mxu0 0
    %4186 = vmatpush1.bf16.msra.mxu0 0
    %4187 = vmatprep.subr.bf16.mxu0 0
    %4188 = vmatpush1.bf16.msra.mxu0 0
    %4189 = vmatprep.subr.bf16.mxu0 0
    %4190 = vmatpush1.bf16.msra.mxu0 0
    %4191 = vmatprep.subr.bf16.mxu0 0
    %4192 = vmatpush1.bf16.msra.mxu0 0
    %4193 = vmatprep.subr.bf16.mxu0 0
    %4194 = vmatpush1.bf16.msra.mxu0 0
    %4195 = vmatprep.subr.bf16.mxu0 0
    %4196 = vmatpush1.bf16.msra.mxu0 0
    %4197 = vmatprep.mubr.bf16.mxu0 0
    %4198 = vmatmul.mubr.bf16.gmra.mrb[0].mxu0 %v3972
    %v4199 = vpop.f32.mrb[0].mxu0
    %v4200 = vadd.f32 0.0, %v4199
    %v4201 = vpop.f32.mrb[0].mxu0
    %v4202 = vadd.f32 0.0, %v4201
    %v4203 = vpop.f32.mrb[0].mxu0
    %v4204 = vpop.f32.mrb[0].mxu0
    %4205 = vdwg.mxu0
    %4206 = vmatprep.subr.bf16.mxu0 %v4104
    %4207 = vmatpush1.bf16.msra.mxu0 %v4103
    %4208 = vmatprep.subr.bf16.mxu0 %v4108
    %4209 = vmatpush1.bf16.msra.mxu0 %v4107
    %4210 = vmatprep.subr.bf16.mxu0 %v4112
    %4211 = vmatpush1.bf16.msra.mxu0 %v4111
    %4212 = vmatprep.subr.bf16.mxu0 %v4116
    %4213 = vmatpush1.bf16.msra.mxu0 %v4115
    %4214 = vmatprep.subr.bf16.mxu0 %v4120
    %4215 = vmatpush1.bf16.msra.mxu0 %v4119
    %4216 = vmatprep.subr.bf16.mxu0 %v4124
    %4217 = vmatpush1.bf16.msra.mxu0 %v4123
    %4218 = vmatprep.subr.bf16.mxu0 %v4128
    %4219 = vmatpush1.bf16.msra.mxu0 %v4127
    %4220 = vmatprep.subr.bf16.mxu0 %v4132
    %4221 = vmatpush1.bf16.msra.mxu0 %v4131
    %4222 = vmatprep.subr.bf16.mxu0 0
    %4223 = vmatpush1.bf16.msra.mxu0 0
    %4224 = vmatprep.subr.bf16.mxu0 0
    %4225 = vmatpush1.bf16.msra.mxu0 0
    %4226 = vmatprep.subr.bf16.mxu0 0
    %4227 = vmatpush1.bf16.msra.mxu0 0
    %4228 = vmatprep.subr.bf16.mxu0 0
    %4229 = vmatpush1.bf16.msra.mxu0 0
    %4230 = vmatprep.subr.bf16.mxu0 0
    %4231 = vmatpush1.bf16.msra.mxu0 0
    %4232 = vmatprep.subr.bf16.mxu0 0
    %4233 = vmatpush1.bf16.msra.mxu0 0
    %4234 = vmatprep.subr.bf16.mxu0 0
    %4235 = vmatpush1.bf16.msra.mxu0 0
    %4236 = vmatprep.subr.bf16.mxu0 0
    %4237 = vmatpush1.bf16.msra.mxu0 0
    %4238 = vmatprep.mubr.bf16.mxu0 0
    %4239 = vmatmul.mubr.bf16.gmra.mrb[0].mxu0 %v3972
    %v4240 = vpop.f32.mrb[0].mxu0
    %v4241 = vadd.f32 0.0, %v4240
    %v4242 = vpop.f32.mrb[0].mxu0
    %v4243 = vadd.f32 0.0, %v4242
    %v4244 = vpop.f32.mrb[0].mxu0
    %v4245 = vpop.f32.mrb[0].mxu0
    %4246 = vdwg.mxu0
    %v4251 = vcombine.low %v4200, %v4202
    %v4252 = vcombine.low %v4241, %v4243
    %v4254 = vunpack.c.l.s4 1966171168
    %v4255 = vunpack.c.0.s8 %v4254
    %v4256 = vlaneseq
    %v4257 = vshrl.u32 %v4256, 7
    %v4258 = vsub.s32 %v4255, %v4257
    %v4259 = vrot.slane %v4251, %v4258
    %v4261 = vunpack.c.l.s4 1966171168
    %v4262 = vunpack.c.0.s8 %v4261
    %v4263 = vlaneseq
    %v4264 = vshrl.u32 %v4263, 7
    %v4265 = vsub.s32 %v4262, %v4264
    %v4266 = vrot.slane %v4252, %v4265
    %v4267 = vcombine.low %v4259, %v4266
    %v4269 = vunpack.c.l.s4 1966171168
    %v4270 = vunpack.c.0.s8 %v4269
    %v4271 = vlaneseq
    %v4272 = vshrl.u32 %v4271, 7
    %v4273 = vsub.s32 %v4270, %v4272
    %v4274 = vrot.slane %v4267, %v4273
    %v4276 = vadd.f32 %v3971, %v4274
    %v4277 = vmul.f32 %v4276, 0.5
    %v4278 = vtanh.pop %v4277
    %v4279 = vadd.f32 %v4278, 1.0
    %v4280 = vmul.f32 %v4279, 0.5
    %v4282 = vrot.slane %v4276, 3
    %v4284 = vtanh.pop %v4282
    %v4286 = vrot.slane %v4280, 1
    %v4288 = vmul.f32 %v4286, %v3957
    %v4289 = vmul.f32 %v4280, %v4284
    %v4290 = vadd.f32 %v4288, %v4289
    %v4291 = vtanh.pop %v4290
    %v4292 = vrot.slane %v4280, 2
    %v4294 = vmul.f32 %v4292, %v4291
    %s4295 = sld [smem:[#allocation5 + $0xb]]
    %p4296 = scmp.eq.s32.totalorder %s4295, 1
    // Predicated region
    $region118: #{tpu_custom_call.1} parent=1 // pred_check
      %p4297 = pneg %p4296
    $region119: #{tpu_custom_call.1} parent=1 // pred_check_branch
      %4299 = sbr.rel (%p4297) target = $region121
    $region120: #{tpu_custom_call.1} parent=1 // pred_region
      %s4300 = sld [smem:[#allocation9 + $0xb]]
      %s4301 = scalar_lea.vmem [#allocation3], %s4300
      %4302 = vst [vmem:[%s4301] sm:$0x1] %v4294
    $region121: #{tpu_custom_call.1} parent=1 // pred_fallthru
      _
    %v4303 = vld [vmem:[#allocation3] sm:$0x7]
    %v4304 = vpack.c.bf16 %v4303, %v4303
    %v4305 = vld [vmem:[#allocation14] sm:$0xff]
    %v4306 = vld [vmem:[#allocation14 + $0x8] sm:$0xff]
    %v4307 = vld [vmem:[#allocation14 + $0x10] sm:$0xff]
    %v4308 = vld [vmem:[#allocation14 + $0x18] sm:$0xff]
    %v4309 = vld [vmem:[#allocation14 + $0x20] sm:$0xff]
    %v4310 = vld [vmem:[#allocation14 + $0x28] sm:$0xff]
    %v4311 = vld [vmem:[#allocation14 + $0x30] sm:$0xff]
    %v4312 = vld [vmem:[#allocation14 + $0x38] sm:$0xff]
    %v4313 = vld [vmem:[#allocation14 + $0x40] sm:$0xff]
    %v4314 = vld [vmem:[#allocation14 + $0x48] sm:$0xff]
    %v4315 = vld [vmem:[#allocation14 + $0x50] sm:$0xff]
    %v4316 = vld [vmem:[#allocation14 + $0x58] sm:$0xff]
    %v4317 = vld [vmem:[#allocation14 + $0x60] sm:$0xff]
    %v4318 = vld [vmem:[#allocation14 + $0x68] sm:$0xff]
    %v4319 = vld [vmem:[#allocation14 + $0x70] sm:$0xff]
    %v4320 = vld [vmem:[#allocation14 + $0x78] sm:$0xff]
    %v4321 = vld [vmem:[#allocation14 + $0x80] sm:$0xff]
    %v4322 = vld [vmem:[#allocation14 + $0x88] sm:$0xff]
    %v4323 = vld [vmem:[#allocation14 + $0x90] sm:$0xff]
    %v4324 = vld [vmem:[#allocation14 + $0x98] sm:$0xff]
    %v4325 = vld [vmem:[#allocation14 + $0xa0] sm:$0xff]
    %v4326 = vld [vmem:[#allocation14 + $0xa8] sm:$0xff]
    %v4327 = vld [vmem:[#allocation14 + $0xb0] sm:$0xff]
    %v4328 = vld [vmem:[#allocation14 + $0xb8] sm:$0xff]
    %v4329 = vld [vmem:[#allocation14 + $0xc0] sm:$0xff]
    %v4330 = vld [vmem:[#allocation14 + $0xc8] sm:$0xff]
    %v4331 = vld [vmem:[#allocation14 + $0xd0] sm:$0xff]
    %v4332 = vld [vmem:[#allocation14 + $0xd8] sm:$0xff]
    %v4333 = vld [vmem:[#allocation14 + $0xe0] sm:$0xff]
    %v4334 = vld [vmem:[#allocation14 + $0xe8] sm:$0xff]
    %v4335 = vld [vmem:[#allocation14 + $0xf0] sm:$0xff]
    %v4336 = vld [vmem:[#allocation14 + $0xf8] sm:$0xff]
    %v4337 = vld [vmem:[#allocation14 + $0x100] sm:$0xff]
    %v4338 = vld [vmem:[#allocation14 + $0x108] sm:$0xff]
    %v4339 = vld [vmem:[#allocation14 + $0x110] sm:$0xff]
    %v4340 = vld [vmem:[#allocation14 + $0x118] sm:$0xff]
    %v4341 = vld [vmem:[#allocation14 + $0x120] sm:$0xff]
    %v4342 = vld [vmem:[#allocation14 + $0x128] sm:$0xff]
    %v4343 = vld [vmem:[#allocation14 + $0x130] sm:$0xff]
    %v4344 = vld [vmem:[#allocation14 + $0x138] sm:$0xff]
    %v4345 = vld [vmem:[#allocation14 + $0x140] sm:$0xff]
    %v4346 = vld [vmem:[#allocation14 + $0x148] sm:$0xff]
    %v4347 = vld [vmem:[#allocation14 + $0x150] sm:$0xff]
    %v4348 = vld [vmem:[#allocation14 + $0x158] sm:$0xff]
    %v4349 = vld [vmem:[#allocation14 + $0x160] sm:$0xff]
    %v4350 = vld [vmem:[#allocation14 + $0x168] sm:$0xff]
    %v4351 = vld [vmem:[#allocation14 + $0x170] sm:$0xff]
    %v4352 = vld [vmem:[#allocation14 + $0x178] sm:$0xff]
    %v4353 = vld [vmem:[%s8] sm:$0x3f]
    %v4355 = vlaneseq
    %v4356 = vshrl.u32 %v4355, 7
    %v4357 = vsub.s32 0, %v4356
    %v4358 = vrot.slane %v4353, %v4357
    %v4359 = vlaneseq
    %v4360 = vshrl.u32 %v4359, 7
    %v4361 = vsub.s32 1, %v4360
    %v4362 = vrot.slane %v4353, %v4361
    %v4363 = vlaneseq
    %v4364 = vshrl.u32 %v4363, 7
    %v4365 = vsub.s32 2, %v4364
    %v4366 = vrot.slane %v4353, %v4365
    %v4367 = vlaneseq
    %v4368 = vshrl.u32 %v4367, 7
    %v4369 = vsub.s32 3, %v4368
    %v4370 = vrot.slane %v4353, %v4369
    %v4371 = vlaneseq
    %v4372 = vshrl.u32 %v4371, 7
    %v4373 = vsub.s32 4, %v4372
    %v4374 = vrot.slane %v4353, %v4373
    %v4375 = vlaneseq
    %v4376 = vshrl.u32 %v4375, 7
    %v4377 = vsub.s32 5, %v4376
    %v4378 = vrot.slane %v4353, %v4377
    %v4433 = vunpack.c.l.b16 %v4305
    %v4434 = vunpack.c.h.b16 %v4305
    %v4435 = vunpack.c.l.b16 %v4306
    %v4436 = vunpack.c.h.b16 %v4306
    %v4437 = vunpack.c.l.b16 %v4307
    %v4438 = vunpack.c.h.b16 %v4307
    %v4439 = vunpack.c.l.b16 %v4308
    %v4440 = vunpack.c.h.b16 %v4308
    %v4441 = vunpack.c.l.b16 %v4309
    %v4442 = vunpack.c.h.b16 %v4309
    %v4443 = vunpack.c.l.b16 %v4310
    %v4444 = vunpack.c.h.b16 %v4310
    %v4445 = vunpack.c.l.b16 %v4311
    %v4446 = vunpack.c.h.b16 %v4311
    %v4447 = vunpack.c.l.b16 %v4312
    %v4448 = vunpack.c.h.b16 %v4312
    %v4449 = vunpack.c.l.b16 %v4313
    %v4450 = vunpack.c.h.b16 %v4313
    %v4451 = vunpack.c.l.b16 %v4314
    %v4452 = vunpack.c.h.b16 %v4314
    %v4453 = vunpack.c.l.b16 %v4315
    %v4454 = vunpack.c.h.b16 %v4315
    %v4455 = vunpack.c.l.b16 %v4316
    %v4456 = vunpack.c.h.b16 %v4316
    %v4457 = vunpack.c.l.b16 %v4317
    %v4458 = vunpack.c.h.b16 %v4317
    %v4459 = vunpack.c.l.b16 %v4318
    %v4460 = vunpack.c.h.b16 %v4318
    %v4461 = vunpack.c.l.b16 %v4319
    %v4462 = vunpack.c.h.b16 %v4319
    %v4463 = vunpack.c.l.b16 %v4320
    %v4464 = vunpack.c.h.b16 %v4320
    %v4465 = vunpack.c.l.b16 %v4321
    %v4466 = vunpack.c.h.b16 %v4321
    %v4467 = vunpack.c.l.b16 %v4322
    %v4468 = vunpack.c.h.b16 %v4322
    %v4469 = vunpack.c.l.b16 %v4323
    %v4470 = vunpack.c.h.b16 %v4323
    %v4471 = vunpack.c.l.b16 %v4324
    %v4472 = vunpack.c.h.b16 %v4324
    %v4473 = vunpack.c.l.b16 %v4325
    %v4474 = vunpack.c.h.b16 %v4325
    %v4475 = vunpack.c.l.b16 %v4326
    %v4476 = vunpack.c.h.b16 %v4326
    %v4477 = vunpack.c.l.b16 %v4327
    %v4478 = vunpack.c.h.b16 %v4327
    %v4479 = vunpack.c.l.b16 %v4328
    %v4480 = vunpack.c.h.b16 %v4328
    %v4481 = vunpack.c.l.b16 %v4329
    %v4482 = vunpack.c.h.b16 %v4329
    %v4483 = vunpack.c.l.b16 %v4330
    %v4484 = vunpack.c.h.b16 %v4330
    %v4485 = vunpack.c.l.b16 %v4331
    %v4486 = vunpack.c.h.b16 %v4331
    %v4487 = vunpack.c.l.b16 %v4332
    %v4488 = vunpack.c.h.b16 %v4332
    %v4489 = vunpack.c.l.b16 %v4333
    %v4490 = vunpack.c.h.b16 %v4333
    %v4491 = vunpack.c.l.b16 %v4334
    %v4492 = vunpack.c.h.b16 %v4334
    %v4493 = vunpack.c.l.b16 %v4335
    %v4494 = vunpack.c.h.b16 %v4335
    %v4495 = vunpack.c.l.b16 %v4336
    %v4496 = vunpack.c.h.b16 %v4336
    %v4497 = vunpack.c.l.b16 %v4337
    %v4498 = vunpack.c.h.b16 %v4337
    %v4499 = vunpack.c.l.b16 %v4338
    %v4500 = vunpack.c.h.b16 %v4338
    %v4501 = vunpack.c.l.b16 %v4339
    %v4502 = vunpack.c.h.b16 %v4339
    %v4503 = vunpack.c.l.b16 %v4340
    %v4504 = vunpack.c.h.b16 %v4340
    %v4505 = vunpack.c.l.b16 %v4341
    %v4506 = vunpack.c.h.b16 %v4341
    %v4507 = vunpack.c.l.b16 %v4342
    %v4508 = vunpack.c.h.b16 %v4342
    %v4509 = vunpack.c.l.b16 %v4343
    %v4510 = vunpack.c.h.b16 %v4343
    %v4511 = vunpack.c.l.b16 %v4344
    %v4512 = vunpack.c.h.b16 %v4344
    %v4513 = vunpack.c.l.b16 %v4345
    %v4514 = vunpack.c.h.b16 %v4345
    %v4515 = vunpack.c.l.b16 %v4346
    %v4516 = vunpack.c.h.b16 %v4346
    %v4517 = vunpack.c.l.b16 %v4347
    %v4518 = vunpack.c.h.b16 %v4347
    %v4519 = vunpack.c.l.b16 %v4348
    %v4520 = vunpack.c.h.b16 %v4348
    %v4521 = vunpack.c.l.b16 %v4349
    %v4522 = vunpack.c.h.b16 %v4349
    %v4523 = vunpack.c.l.b16 %v4350
    %v4524 = vunpack.c.h.b16 %v4350
    %v4525 = vunpack.c.l.b16 %v4351
    %v4526 = vunpack.c.h.b16 %v4351
    %v4527 = vunpack.c.l.b16 %v4352
    %v4528 = vunpack.c.h.b16 %v4352
    %v4529 = vpack.c.b16 %v4439, %v4433
    %v4530 = vpack.c.b16 %v4440, %v4434
    %v4531 = vpack.c.b16 %v4441, %v4435
    %v4532 = vpack.c.b16 %v4442, %v4436
    %v4533 = vpack.c.b16 %v4443, %v4437
    %v4534 = vpack.c.b16 %v4444, %v4438
    %v4535 = vpack.c.b16 %v4451, %v4445
    %v4536 = vpack.c.b16 %v4452, %v4446
    %v4537 = vpack.c.b16 %v4453, %v4447
    %v4538 = vpack.c.b16 %v4454, %v4448
    %v4539 = vpack.c.b16 %v4455, %v4449
    %v4540 = vpack.c.b16 %v4456, %v4450
    %v4541 = vpack.c.b16 %v4463, %v4457
    %v4542 = vpack.c.b16 %v4464, %v4458
    %v4543 = vpack.c.b16 %v4465, %v4459
    %v4544 = vpack.c.b16 %v4466, %v4460
    %v4545 = vpack.c.b16 %v4467, %v4461
    %v4546 = vpack.c.b16 %v4468, %v4462
    %v4547 = vpack.c.b16 %v4475, %v4469
    %v4548 = vpack.c.b16 %v4476, %v4470
    %v4549 = vpack.c.b16 %v4477, %v4471
    %v4550 = vpack.c.b16 %v4478, %v4472
    %v4551 = vpack.c.b16 %v4479, %v4473
    %v4552 = vpack.c.b16 %v4480, %v4474
    %v4553 = vpack.c.b16 %v4487, %v4481
    %v4554 = vpack.c.b16 %v4488, %v4482
    %v4555 = vpack.c.b16 %v4489, %v4483
    %v4556 = vpack.c.b16 %v4490, %v4484
    %v4557 = vpack.c.b16 %v4491, %v4485
    %v4558 = vpack.c.b16 %v4492, %v4486
    %v4559 = vpack.c.b16 %v4499, %v4493
    %v4560 = vpack.c.b16 %v4500, %v4494
    %v4561 = vpack.c.b16 %v4501, %v4495
    %v4562 = vpack.c.b16 %v4502, %v4496
    %v4563 = vpack.c.b16 %v4503, %v4497
    %v4564 = vpack.c.b16 %v4504, %v4498
    %v4565 = vpack.c.b16 %v4511, %v4505
    %v4566 = vpack.c.b16 %v4512, %v4506
    %v4567 = vpack.c.b16 %v4513, %v4507
    %v4568 = vpack.c.b16 %v4514, %v4508
    %v4569 = vpack.c.b16 %v4515, %v4509
    %v4570 = vpack.c.b16 %v4516, %v4510
    %v4571 = vpack.c.b16 %v4523, %v4517
    %v4572 = vpack.c.b16 %v4524, %v4518
    %v4573 = vpack.c.b16 %v4525, %v4519
    %v4574 = vpack.c.b16 %v4526, %v4520
    %v4575 = vpack.c.b16 %v4527, %v4521
    %v4576 = vpack.c.b16 %v4528, %v4522
    %4625 = vmatprep.subr.bf16.mxu0 %v4530
    %4626 = vmatpush1.bf16.msra.mxu0 %v4529
    %4627 = vmatprep.subr.bf16.mxu0 %v4536
    %4628 = vmatpush1.bf16.msra.mxu0 %v4535
    %4629 = vmatprep.subr.bf16.mxu0 %v4542
    %4630 = vmatpush1.bf16.msra.mxu0 %v4541
    %4631 = vmatprep.subr.bf16.mxu0 %v4548
    %4632 = vmatpush1.bf16.msra.mxu0 %v4547
    %4633 = vmatprep.subr.bf16.mxu0 %v4554
    %4634 = vmatpush1.bf16.msra.mxu0 %v4553
    %4635 = vmatprep.subr.bf16.mxu0 %v4560
    %4636 = vmatpush1.bf16.msra.mxu0 %v4559
    %4637 = vmatprep.subr.bf16.mxu0 %v4566
    %4638 = vmatpush1.bf16.msra.mxu0 %v4565
    %4639 = vmatprep.subr.bf16.mxu0 %v4572
    %4640 = vmatpush1.bf16.msra.mxu0 %v4571
    %4641 = vmatprep.subr.bf16.mxu0 0
    %4642 = vmatpush1.bf16.msra.mxu0 0
    %4643 = vmatprep.subr.bf16.mxu0 0
    %4644 = vmatpush1.bf16.msra.mxu0 0
    %4645 = vmatprep.subr.bf16.mxu0 0
    %4646 = vmatpush1.bf16.msra.mxu0 0
    %4647 = vmatprep.subr.bf16.mxu0 0
    %4648 = vmatpush1.bf16.msra.mxu0 0
    %4649 = vmatprep.subr.bf16.mxu0 0
    %4650 = vmatpush1.bf16.msra.mxu0 0
    %4651 = vmatprep.subr.bf16.mxu0 0
    %4652 = vmatpush1.bf16.msra.mxu0 0
    %4653 = vmatprep.subr.bf16.mxu0 0
    %4654 = vmatpush1.bf16.msra.mxu0 0
    %4655 = vmatprep.subr.bf16.mxu0 0
    %4656 = vmatpush1.bf16.msra.mxu0 0
    %4657 = vmatprep.mubr.bf16.mxu0 0
    %4658 = vmatmul.mubr.bf16.gmra.mrb[0].mxu0 %v4304
    %v4659 = vpop.f32.mrb[0].mxu0
    %v4660 = vadd.f32 %v4358, %v4659
    %v4661 = vpop.f32.mrb[0].mxu0
    %v4662 = vadd.f32 %v4362, %v4661
    %v4663 = vpop.f32.mrb[0].mxu0
    %v4664 = vpop.f32.mrb[0].mxu0
    %4665 = vdwg.mxu0
    %4666 = vmatprep.subr.bf16.mxu0 %v4532
    %4667 = vmatpush1.bf16.msra.mxu0 %v4531
    %4668 = vmatprep.subr.bf16.mxu0 %v4538
    %4669 = vmatpush1.bf16.msra.mxu0 %v4537
    %4670 = vmatprep.subr.bf16.mxu0 %v4544
    %4671 = vmatpush1.bf16.msra.mxu0 %v4543
    %4672 = vmatprep.subr.bf16.mxu0 %v4550
    %4673 = vmatpush1.bf16.msra.mxu0 %v4549
    %4674 = vmatprep.subr.bf16.mxu0 %v4556
    %4675 = vmatpush1.bf16.msra.mxu0 %v4555
    %4676 = vmatprep.subr.bf16.mxu0 %v4562
    %4677 = vmatpush1.bf16.msra.mxu0 %v4561
    %4678 = vmatprep.subr.bf16.mxu0 %v4568
    %4679 = vmatpush1.bf16.msra.mxu0 %v4567
    %4680 = vmatprep.subr.bf16.mxu0 %v4574
    %4681 = vmatpush1.bf16.msra.mxu0 %v4573
    %4682 = vmatprep.subr.bf16.mxu0 0
    %4683 = vmatpush1.bf16.msra.mxu0 0
    %4684 = vmatprep.subr.bf16.mxu0 0
    %4685 = vmatpush1.bf16.msra.mxu0 0
    %4686 = vmatprep.subr.bf16.mxu0 0
    %4687 = vmatpush1.bf16.msra.mxu0 0
    %4688 = vmatprep.subr.bf16.mxu0 0
    %4689 = vmatpush1.bf16.msra.mxu0 0
    %4690 = vmatprep.subr.bf16.mxu0 0
    %4691 = vmatpush1.bf16.msra.mxu0 0
    %4692 = vmatprep.subr.bf16.mxu0 0
    %4693 = vmatpush1.bf16.msra.mxu0 0
    %4694 = vmatprep.subr.bf16.mxu0 0
    %4695 = vmatpush1.bf16.msra.mxu0 0
    %4696 = vmatprep.subr.bf16.mxu0 0
    %4697 = vmatpush1.bf16.msra.mxu0 0
    %4698 = vmatprep.mubr.bf16.mxu0 0
    %4699 = vmatmul.mubr.bf16.gmra.mrb[0].mxu0 %v4304
    %v4700 = vpop.f32.mrb[0].mxu0
    %v4701 = vadd.f32 %v4366, %v4700
    %v4702 = vpop.f32.mrb[0].mxu0
    %v4703 = vadd.f32 %v4370, %v4702
    %v4704 = vpop.f32.mrb[0].mxu0
    %v4705 = vpop.f32.mrb[0].mxu0
    %4706 = vdwg.mxu0
    %4707 = vmatprep.subr.bf16.mxu0 %v4534
    %4708 = vmatpush1.bf16.msra.mxu0 %v4533
    %4709 = vmatprep.subr.bf16.mxu0 %v4540
    %4710 = vmatpush1.bf16.msra.mxu0 %v4539
    %4711 = vmatprep.subr.bf16.mxu0 %v4546
    %4712 = vmatpush1.bf16.msra.mxu0 %v4545
    %4713 = vmatprep.subr.bf16.mxu0 %v4552
    %4714 = vmatpush1.bf16.msra.mxu0 %v4551
    %4715 = vmatprep.subr.bf16.mxu0 %v4558
    %4716 = vmatpush1.bf16.msra.mxu0 %v4557
    %4717 = vmatprep.subr.bf16.mxu0 %v4564
    %4718 = vmatpush1.bf16.msra.mxu0 %v4563
    %4719 = vmatprep.subr.bf16.mxu0 %v4570
    %4720 = vmatpush1.bf16.msra.mxu0 %v4569
    %4721 = vmatprep.subr.bf16.mxu0 %v4576
    %4722 = vmatpush1.bf16.msra.mxu0 %v4575
    %4723 = vmatprep.subr.bf16.mxu0 0
    %4724 = vmatpush1.bf16.msra.mxu0 0
    %4725 = vmatprep.subr.bf16.mxu0 0
    %4726 = vmatpush1.bf16.msra.mxu0 0
    %4727 = vmatprep.subr.bf16.mxu0 0
    %4728 = vmatpush1.bf16.msra.mxu0 0
    %4729 = vmatprep.subr.bf16.mxu0 0
    %4730 = vmatpush1.bf16.msra.mxu0 0
    %4731 = vmatprep.subr.bf16.mxu0 0
    %4732 = vmatpush1.bf16.msra.mxu0 0
    %4733 = vmatprep.subr.bf16.mxu0 0
    %4734 = vmatpush1.bf16.msra.mxu0 0
    %4735 = vmatprep.subr.bf16.mxu0 0
    %4736 = vmatpush1.bf16.msra.mxu0 0
    %4737 = vmatprep.subr.bf16.mxu0 0
    %4738 = vmatpush1.bf16.msra.mxu0 0
    %4739 = vmatprep.mubr.bf16.mxu0 0
    %4740 = vmatmul.mubr.bf16.gmra.mrb[0].mxu0 %v4304
    %v4741 = vpop.f32.mrb[0].mxu0
    %v4742 = vadd.f32 %v4374, %v4741
    %v4743 = vpop.f32.mrb[0].mxu0
    %v4744 = vadd.f32 %v4378, %v4743
    %v4745 = vpop.f32.mrb[0].mxu0
    %v4746 = vpop.f32.mrb[0].mxu0
    %4747 = vdwg.mxu0
    %v4754 = vcombine.low %v4660, %v4662
    %v4755 = vcombine.low %v4701, %v4703
    %v4756 = vcombine.low %v4742, %v4744
    %4760 = vst [vmem:[#allocation4] sm:$0x77] %v4754
    %4761 = vst [vmem:[#allocation4 + $0x8] sm:$0x77] %v4755
    %4762 = vst [vmem:[#allocation4 + $0x10] sm:$0x77] %v4756
    %v4763 = vld [vmem:[#allocation4] ss:$4 sm:$0x3f]
    %v4764 = vld [vmem:[#allocation15] sm:$0xff]
    %v4765 = vld [vmem:[#allocation15 + $0x8] sm:$0xff]
    %v4766 = vld [vmem:[#allocation15 + $0x10] sm:$0xff]
    %v4767 = vld [vmem:[#allocation15 + $0x18] sm:$0xff]
    %v4768 = vld [vmem:[#allocation15 + $0x20] sm:$0xff]
    %v4769 = vld [vmem:[#allocation15 + $0x28] sm:$0xff]
    %v4770 = vld [vmem:[#allocation15 + $0x30] sm:$0xff]
    %v4771 = vld [vmem:[#allocation15 + $0x38] sm:$0xff]
    %v4772 = vld [vmem:[#allocation15 + $0x40] sm:$0xff]
    %v4773 = vld [vmem:[#allocation15 + $0x48] sm:$0xff]
    %v4774 = vld [vmem:[#allocation15 + $0x50] sm:$0xff]
    %v4775 = vld [vmem:[#allocation15 + $0x58] sm:$0xff]
    %v4776 = vld [vmem:[#allocation15 + $0x60] sm:$0xff]
    %v4777 = vld [vmem:[#allocation15 + $0x68] sm:$0xff]
    %v4778 = vld [vmem:[#allocation15 + $0x70] sm:$0xff]
    %v4779 = vld [vmem:[#allocation15 + $0x78] sm:$0xff]
    %v4780 = vld [vmem:[#allocation15 + $0x80] sm:$0xff]
    %v4781 = vld [vmem:[#allocation15 + $0x88] sm:$0xff]
    %v4782 = vld [vmem:[#allocation15 + $0x90] sm:$0xff]
    %v4783 = vld [vmem:[#allocation15 + $0x98] sm:$0xff]
    %v4784 = vld [vmem:[#allocation15 + $0xa0] sm:$0xff]
    %v4785 = vld [vmem:[#allocation15 + $0xa8] sm:$0xff]
    %v4786 = vld [vmem:[#allocation15 + $0xb0] sm:$0xff]
    %v4787 = vld [vmem:[#allocation15 + $0xb8] sm:$0xff]
    %v4788 = vld [vmem:[#allocation15 + $0xc0] sm:$0xff]
    %v4789 = vld [vmem:[#allocation15 + $0xc8] sm:$0xff]
    %v4790 = vld [vmem:[#allocation15 + $0xd0] sm:$0xff]
    %v4791 = vld [vmem:[#allocation15 + $0xd8] sm:$0xff]
    %v4792 = vld [vmem:[#allocation15 + $0xe0] sm:$0xff]
    %v4793 = vld [vmem:[#allocation15 + $0xe8] sm:$0xff]
    %v4794 = vld [vmem:[#allocation15 + $0xf0] sm:$0xff]
    %v4795 = vld [vmem:[#allocation15 + $0xf8] sm:$0xff]
    %v4796 = vld [vmem:[#allocation15 + $0x100] sm:$0xff]
    %v4797 = vld [vmem:[#allocation15 + $0x108] sm:$0xff]
    %v4798 = vld [vmem:[#allocation15 + $0x110] sm:$0xff]
    %v4799 = vld [vmem:[#allocation15 + $0x118] sm:$0xff]
    %v4800 = vld [vmem:[#allocation15 + $0x120] sm:$0xff]
    %v4801 = vld [vmem:[#allocation15 + $0x128] sm:$0xff]
    %v4802 = vld [vmem:[#allocation15 + $0x130] sm:$0xff]
    %v4803 = vld [vmem:[#allocation15 + $0x138] sm:$0xff]
    %v4804 = vld [vmem:[#allocation15 + $0x140] sm:$0xff]
    %v4805 = vld [vmem:[#allocation15 + $0x148] sm:$0xff]
    %v4806 = vld [vmem:[#allocation15 + $0x150] sm:$0xff]
    %v4807 = vld [vmem:[#allocation15 + $0x158] sm:$0xff]
    %v4808 = vld [vmem:[#allocation15 + $0x160] sm:$0xff]
    %v4809 = vld [vmem:[#allocation15 + $0x168] sm:$0xff]
    %v4810 = vld [vmem:[#allocation15 + $0x170] sm:$0xff]
    %v4811 = vld [vmem:[#allocation15 + $0x178] sm:$0xff]
    %v4812 = vld [vmem:[#allocation15 + $0x180] sm:$0xff]
    %v4813 = vld [vmem:[#allocation15 + $0x188] sm:$0xff]
    %v4814 = vld [vmem:[#allocation15 + $0x190] sm:$0xff]
    %v4815 = vld [vmem:[#allocation15 + $0x198] sm:$0xff]
    %v4816 = vld [vmem:[#allocation15 + $0x1a0] sm:$0xff]
    %v4817 = vld [vmem:[#allocation15 + $0x1a8] sm:$0xff]
    %v4818 = vld [vmem:[#allocation15 + $0x1b0] sm:$0xff]
    %v4819 = vld [vmem:[#allocation15 + $0x1b8] sm:$0xff]
    %v4820 = vld [vmem:[#allocation15 + $0x1c0] sm:$0xff]
    %v4821 = vld [vmem:[#allocation15 + $0x1c8] sm:$0xff]
    %v4822 = vld [vmem:[#allocation15 + $0x1d0] sm:$0xff]
    %v4823 = vld [vmem:[#allocation15 + $0x1d8] sm:$0xff]
    %v4824 = vld [vmem:[#allocation15 + $0x1e0] sm:$0xff]
    %v4825 = vld [vmem:[#allocation15 + $0x1e8] sm:$0xff]
    %v4826 = vld [vmem:[#allocation15 + $0x1f0] sm:$0xff]
    %v4827 = vld [vmem:[#allocation15 + $0x1f8] sm:$0xff]
    %v4828 = vld [vmem:[#allocation15 + $0x200] sm:$0xff]
    %v4829 = vld [vmem:[#allocation15 + $0x208] sm:$0xff]
    %v4830 = vld [vmem:[#allocation15 + $0x210] sm:$0xff]
    %v4831 = vld [vmem:[#allocation15 + $0x218] sm:$0xff]
    %v4832 = vld [vmem:[#allocation15 + $0x220] sm:$0xff]
    %v4833 = vld [vmem:[#allocation15 + $0x228] sm:$0xff]
    %v4834 = vld [vmem:[#allocation15 + $0x230] sm:$0xff]
    %v4835 = vld [vmem:[#allocation15 + $0x238] sm:$0xff]
    %v4836 = vld [vmem:[#allocation15 + $0x240] sm:$0xff]
    %v4837 = vld [vmem:[#allocation15 + $0x248] sm:$0xff]
    %v4838 = vld [vmem:[#allocation15 + $0x250] sm:$0xff]
    %v4839 = vld [vmem:[#allocation15 + $0x258] sm:$0xff]
    %v4840 = vld [vmem:[#allocation15 + $0x260] sm:$0xff]
    %v4841 = vld [vmem:[#allocation15 + $0x268] sm:$0xff]
    %v4842 = vld [vmem:[#allocation15 + $0x270] sm:$0xff]
    %v4843 = vld [vmem:[#allocation15 + $0x278] sm:$0xff]
    %v4844 = vld [vmem:[#allocation15 + $0x280] sm:$0xff]
    %v4845 = vld [vmem:[#allocation15 + $0x288] sm:$0xff]
    %v4846 = vld [vmem:[#allocation15 + $0x290] sm:$0xff]
    %v4847 = vld [vmem:[#allocation15 + $0x298] sm:$0xff]
    %v4848 = vld [vmem:[#allocation15 + $0x2a0] sm:$0xff]
    %v4849 = vld [vmem:[#allocation15 + $0x2a8] sm:$0xff]
    %v4850 = vld [vmem:[#allocation15 + $0x2b0] sm:$0xff]
    %v4851 = vld [vmem:[#allocation15 + $0x2b8] sm:$0xff]
    %v4852 = vld [vmem:[#allocation15 + $0x2c0] sm:$0xff]
    %v4853 = vld [vmem:[#allocation15 + $0x2c8] sm:$0xff]
    %v4854 = vld [vmem:[#allocation15 + $0x2d0] sm:$0xff]
    %v4855 = vld [vmem:[#allocation15 + $0x2d8] sm:$0xff]
    %v4856 = vld [vmem:[#allocation15 + $0x2e0] sm:$0xff]
    %v4857 = vld [vmem:[#allocation15 + $0x2e8] sm:$0xff]
    %v4858 = vld [vmem:[#allocation15 + $0x2f0] sm:$0xff]
    %v4859 = vld [vmem:[#allocation15 + $0x2f8] sm:$0xff]
    %v4860 = vld [vmem:[%s9] sm:$0x3f]
    %v4957 = vunpack.c.l.b16 %v4764
    %v4958 = vunpack.c.h.b16 %v4764
    %v4959 = vunpack.c.l.b16 %v4765
    %v4960 = vunpack.c.h.b16 %v4765
    %v4961 = vunpack.c.l.b16 %v4766
    %v4962 = vunpack.c.h.b16 %v4766
    %v4963 = vunpack.c.l.b16 %v4767
    %v4964 = vunpack.c.h.b16 %v4767
    %v4965 = vunpack.c.l.b16 %v4768
    %v4966 = vunpack.c.h.b16 %v4768
    %v4967 = vunpack.c.l.b16 %v4769
    %v4968 = vunpack.c.h.b16 %v4769
    %v4969 = vunpack.c.l.b16 %v4770
    %v4970 = vunpack.c.h.b16 %v4770
    %v4971 = vunpack.c.l.b16 %v4771
    %v4972 = vunpack.c.h.b16 %v4771
    %v4973 = vunpack.c.l.b16 %v4772
    %v4974 = vunpack.c.h.b16 %v4772
    %v4975 = vunpack.c.l.b16 %v4773
    %v4976 = vunpack.c.h.b16 %v4773
    %v4977 = vunpack.c.l.b16 %v4774
    %v4978 = vunpack.c.h.b16 %v4774
    %v4979 = vunpack.c.l.b16 %v4775
    %v4980 = vunpack.c.h.b16 %v4775
    %v4981 = vunpack.c.l.b16 %v4776
    %v4982 = vunpack.c.h.b16 %v4776
    %v4983 = vunpack.c.l.b16 %v4777
    %v4984 = vunpack.c.h.b16 %v4777
    %v4985 = vunpack.c.l.b16 %v4778
    %v4986 = vunpack.c.h.b16 %v4778
    %v4987 = vunpack.c.l.b16 %v4779
    %v4988 = vunpack.c.h.b16 %v4779
    %v4989 = vunpack.c.l.b16 %v4780
    %v4990 = vunpack.c.h.b16 %v4780
    %v4991 = vunpack.c.l.b16 %v4781
    %v4992 = vunpack.c.h.b16 %v4781
    %v4993 = vunpack.c.l.b16 %v4782
    %v4994 = vunpack.c.h.b16 %v4782
    %v4995 = vunpack.c.l.b16 %v4783
    %v4996 = vunpack.c.h.b16 %v4783
    %v4997 = vunpack.c.l.b16 %v4784
    %v4998 = vunpack.c.h.b16 %v4784
    %v4999 = vunpack.c.l.b16 %v4785
    %v5000 = vunpack.c.h.b16 %v4785
    %v5001 = vunpack.c.l.b16 %v4786
    %v5002 = vunpack.c.h.b16 %v4786
    %v5003 = vunpack.c.l.b16 %v4787
    %v5004 = vunpack.c.h.b16 %v4787
    %v5005 = vunpack.c.l.b16 %v4788
    %v5006 = vunpack.c.h.b16 %v4788
    %v5007 = vunpack.c.l.b16 %v4789
    %v5008 = vunpack.c.h.b16 %v4789
    %v5009 = vunpack.c.l.b16 %v4790
    %v5010 = vunpack.c.h.b16 %v4790
    %v5011 = vunpack.c.l.b16 %v4791
    %v5012 = vunpack.c.h.b16 %v4791
    %v5013 = vunpack.c.l.b16 %v4792
    %v5014 = vunpack.c.h.b16 %v4792
    %v5015 = vunpack.c.l.b16 %v4793
    %v5016 = vunpack.c.h.b16 %v4793
    %v5017 = vunpack.c.l.b16 %v4794
    %v5018 = vunpack.c.h.b16 %v4794
    %v5019 = vunpack.c.l.b16 %v4795
    %v5020 = vunpack.c.h.b16 %v4795
    %v5021 = vunpack.c.l.b16 %v4796
    %v5022 = vunpack.c.h.b16 %v4796
    %v5023 = vunpack.c.l.b16 %v4797
    %v5024 = vunpack.c.h.b16 %v4797
    %v5025 = vunpack.c.l.b16 %v4798
    %v5026 = vunpack.c.h.b16 %v4798
    %v5027 = vunpack.c.l.b16 %v4799
    %v5028 = vunpack.c.h.b16 %v4799
    %v5029 = vunpack.c.l.b16 %v4800
    %v5030 = vunpack.c.h.b16 %v4800
    %v5031 = vunpack.c.l.b16 %v4801
    %v5032 = vunpack.c.h.b16 %v4801
    %v5033 = vunpack.c.l.b16 %v4802
    %v5034 = vunpack.c.h.b16 %v4802
    %v5035 = vunpack.c.l.b16 %v4803
    %v5036 = vunpack.c.h.b16 %v4803
    %v5037 = vunpack.c.l.b16 %v4804
    %v5038 = vunpack.c.h.b16 %v4804
    %v5039 = vunpack.c.l.b16 %v4805
    %v5040 = vunpack.c.h.b16 %v4805
    %v5041 = vunpack.c.l.b16 %v4806
    %v5042 = vunpack.c.h.b16 %v4806
    %v5043 = vunpack.c.l.b16 %v4807
    %v5044 = vunpack.c.h.b16 %v4807
    %v5045 = vunpack.c.l.b16 %v4808
    %v5046 = vunpack.c.h.b16 %v4808
    %v5047 = vunpack.c.l.b16 %v4809
    %v5048 = vunpack.c.h.b16 %v4809
    %v5049 = vunpack.c.l.b16 %v4810
    %v5050 = vunpack.c.h.b16 %v4810
    %v5051 = vunpack.c.l.b16 %v4811
    %v5052 = vunpack.c.h.b16 %v4811
    %v5053 = vunpack.c.l.b16 %v4812
    %v5054 = vunpack.c.h.b16 %v4812
    %v5055 = vunpack.c.l.b16 %v4813
    %v5056 = vunpack.c.h.b16 %v4813
    %v5057 = vunpack.c.l.b16 %v4814
    %v5058 = vunpack.c.h.b16 %v4814
    %v5059 = vunpack.c.l.b16 %v4815
    %v5060 = vunpack.c.h.b16 %v4815
    %v5061 = vunpack.c.l.b16 %v4816
    %v5062 = vunpack.c.h.b16 %v4816
    %v5063 = vunpack.c.l.b16 %v4817
    %v5064 = vunpack.c.h.b16 %v4817
    %v5065 = vunpack.c.l.b16 %v4818
    %v5066 = vunpack.c.h.b16 %v4818
    %v5067 = vunpack.c.l.b16 %v4819
    %v5068 = vunpack.c.h.b16 %v4819
    %v5069 = vunpack.c.l.b16 %v4820
    %v5070 = vunpack.c.h.b16 %v4820
    %v5071 = vunpack.c.l.b16 %v4821
    %v5072 = vunpack.c.h.b16 %v4821
    %v5073 = vunpack.c.l.b16 %v4822
    %v5074 = vunpack.c.h.b16 %v4822
    %v5075 = vunpack.c.l.b16 %v4823
    %v5076 = vunpack.c.h.b16 %v4823
    %v5077 = vunpack.c.l.b16 %v4824
    %v5078 = vunpack.c.h.b16 %v4824
    %v5079 = vunpack.c.l.b16 %v4825
    %v5080 = vunpack.c.h.b16 %v4825
    %v5081 = vunpack.c.l.b16 %v4826
    %v5082 = vunpack.c.h.b16 %v4826
    %v5083 = vunpack.c.l.b16 %v4827
    %v5084 = vunpack.c.h.b16 %v4827
    %v5085 = vunpack.c.l.b16 %v4828
    %v5086 = vunpack.c.h.b16 %v4828
    %v5087 = vunpack.c.l.b16 %v4829
    %v5088 = vunpack.c.h.b16 %v4829
    %v5089 = vunpack.c.l.b16 %v4830
    %v5090 = vunpack.c.h.b16 %v4830
    %v5091 = vunpack.c.l.b16 %v4831
    %v5092 = vunpack.c.h.b16 %v4831
    %v5093 = vunpack.c.l.b16 %v4832
    %v5094 = vunpack.c.h.b16 %v4832
    %v5095 = vunpack.c.l.b16 %v4833
    %v5096 = vunpack.c.h.b16 %v4833
    %v5097 = vunpack.c.l.b16 %v4834
    %v5098 = vunpack.c.h.b16 %v4834
    %v5099 = vunpack.c.l.b16 %v4835
    %v5100 = vunpack.c.h.b16 %v4835
    %v5101 = vunpack.c.l.b16 %v4836
    %v5102 = vunpack.c.h.b16 %v4836
    %v5103 = vunpack.c.l.b16 %v4837
    %v5104 = vunpack.c.h.b16 %v4837
    %v5105 = vunpack.c.l.b16 %v4838
    %v5106 = vunpack.c.h.b16 %v4838
    %v5107 = vunpack.c.l.b16 %v4839
    %v5108 = vunpack.c.h.b16 %v4839
    %v5109 = vunpack.c.l.b16 %v4840
    %v5110 = vunpack.c.h.b16 %v4840
    %v5111 = vunpack.c.l.b16 %v4841
    %v5112 = vunpack.c.h.b16 %v4841
    %v5113 = vunpack.c.l.b16 %v4842
    %v5114 = vunpack.c.h.b16 %v4842
    %v5115 = vunpack.c.l.b16 %v4843
    %v5116 = vunpack.c.h.b16 %v4843
    %v5117 = vunpack.c.l.b16 %v4844
    %v5118 = vunpack.c.h.b16 %v4844
    %v5119 = vunpack.c.l.b16 %v4845
    %v5120 = vunpack.c.h.b16 %v4845
    %v5121 = vunpack.c.l.b16 %v4846
    %v5122 = vunpack.c.h.b16 %v4846
    %v5123 = vunpack.c.l.b16 %v4847
    %v5124 = vunpack.c.h.b16 %v4847
    %v5125 = vunpack.c.l.b16 %v4848
    %v5126 = vunpack.c.h.b16 %v4848
    %v5127 = vunpack.c.l.b16 %v4849
    %v5128 = vunpack.c.h.b16 %v4849
    %v5129 = vunpack.c.l.b16 %v4850
    %v5130 = vunpack.c.h.b16 %v4850
    %v5131 = vunpack.c.l.b16 %v4851
    %v5132 = vunpack.c.h.b16 %v4851
    %v5133 = vunpack.c.l.b16 %v4852
    %v5134 = vunpack.c.h.b16 %v4852
    %v5135 = vunpack.c.l.b16 %v4853
    %v5136 = vunpack.c.h.b16 %v4853
    %v5137 = vunpack.c.l.b16 %v4854
    %v5138 = vunpack.c.h.b16 %v4854
    %v5139 = vunpack.c.l.b16 %v4855
    %v5140 = vunpack.c.h.b16 %v4855
    %v5141 = vunpack.c.l.b16 %v4856
    %v5142 = vunpack.c.h.b16 %v4856
    %v5143 = vunpack.c.l.b16 %v4857
    %v5144 = vunpack.c.h.b16 %v4857
    %v5145 = vunpack.c.l.b16 %v4858
    %v5146 = vunpack.c.h.b16 %v4858
    %v5147 = vunpack.c.l.b16 %v4859
    %v5148 = vunpack.c.h.b16 %v4859
    %v5149 = vpack.c.b16 %v4963, %v4957
    %v5150 = vpack.c.b16 %v4964, %v4958
    %v5151 = vpack.c.b16 %v4965, %v4959
    %v5152 = vpack.c.b16 %v4966, %v4960
    %v5153 = vpack.c.b16 %v4967, %v4961
    %v5154 = vpack.c.b16 %v4968, %v4962
    %v5155 = vpack.c.b16 %v4975, %v4969
    %v5156 = vpack.c.b16 %v4976, %v4970
    %v5157 = vpack.c.b16 %v4977, %v4971
    %v5158 = vpack.c.b16 %v4978, %v4972
    %v5159 = vpack.c.b16 %v4979, %v4973
    %v5160 = vpack.c.b16 %v4980, %v4974
    %v5161 = vpack.c.b16 %v4987, %v4981
    %v5162 = vpack.c.b16 %v4988, %v4982
    %v5163 = vpack.c.b16 %v4989, %v4983
    %v5164 = vpack.c.b16 %v4990, %v4984
    %v5165 = vpack.c.b16 %v4991, %v4985
    %v5166 = vpack.c.b16 %v4992, %v4986
    %v5167 = vpack.c.b16 %v4999, %v4993
    %v5168 = vpack.c.b16 %v5000, %v4994
    %v5169 = vpack.c.b16 %v5001, %v4995
    %v5170 = vpack.c.b16 %v5002, %v4996
    %v5171 = vpack.c.b16 %v5003, %v4997
    %v5172 = vpack.c.b16 %v5004, %v4998
    %v5173 = vpack.c.b16 %v5011, %v5005
    %v5174 = vpack.c.b16 %v5012, %v5006
    %v5175 = vpack.c.b16 %v5013, %v5007
    %v5176 = vpack.c.b16 %v5014, %v5008
    %v5177 = vpack.c.b16 %v5015, %v5009
    %v5178 = vpack.c.b16 %v5016, %v5010
    %v5179 = vpack.c.b16 %v5023, %v5017
    %v5180 = vpack.c.b16 %v5024, %v5018
    %v5181 = vpack.c.b16 %v5025, %v5019
    %v5182 = vpack.c.b16 %v5026, %v5020
    %v5183 = vpack.c.b16 %v5027, %v5021
    %v5184 = vpack.c.b16 %v5028, %v5022
    %v5185 = vpack.c.b16 %v5035, %v5029
    %v5186 = vpack.c.b16 %v5036, %v5030
    %v5187 = vpack.c.b16 %v5037, %v5031
    %v5188 = vpack.c.b16 %v5038, %v5032
    %v5189 = vpack.c.b16 %v5039, %v5033
    %v5190 = vpack.c.b16 %v5040, %v5034
    %v5191 = vpack.c.b16 %v5047, %v5041
    %v5192 = vpack.c.b16 %v5048, %v5042
    %v5193 = vpack.c.b16 %v5049, %v5043
    %v5194 = vpack.c.b16 %v5050, %v5044
    %v5195 = vpack.c.b16 %v5051, %v5045
    %v5196 = vpack.c.b16 %v5052, %v5046
    %v5197 = vpack.c.b16 %v5059, %v5053
    %v5198 = vpack.c.b16 %v5060, %v5054
    %v5199 = vpack.c.b16 %v5061, %v5055
    %v5200 = vpack.c.b16 %v5062, %v5056
    %v5201 = vpack.c.b16 %v5063, %v5057
    %v5202 = vpack.c.b16 %v5064, %v5058
    %v5203 = vpack.c.b16 %v5071, %v5065
    %v5204 = vpack.c.b16 %v5072, %v5066
    %v5205 = vpack.c.b16 %v5073, %v5067
    %v5206 = vpack.c.b16 %v5074, %v5068
    %v5207 = vpack.c.b16 %v5075, %v5069
    %v5208 = vpack.c.b16 %v5076, %v5070
    %v5209 = vpack.c.b16 %v5083, %v5077
    %v5210 = vpack.c.b16 %v5084, %v5078
    %v5211 = vpack.c.b16 %v5085, %v5079
    %v5212 = vpack.c.b16 %v5086, %v5080
    %v5213 = vpack.c.b16 %v5087, %v5081
    %v5214 = vpack.c.b16 %v5088, %v5082
    %v5215 = vpack.c.b16 %v5095, %v5089
    %v5216 = vpack.c.b16 %v5096, %v5090
    %v5217 = vpack.c.b16 %v5097, %v5091
    %v5218 = vpack.c.b16 %v5098, %v5092
    %v5219 = vpack.c.b16 %v5099, %v5093
    %v5220 = vpack.c.b16 %v5100, %v5094
    %v5221 = vpack.c.b16 %v5107, %v5101
    %v5222 = vpack.c.b16 %v5108, %v5102
    %v5223 = vpack.c.b16 %v5109, %v5103
    %v5224 = vpack.c.b16 %v5110, %v5104
    %v5225 = vpack.c.b16 %v5111, %v5105
    %v5226 = vpack.c.b16 %v5112, %v5106
    %v5227 = vpack.c.b16 %v5119, %v5113
    %v5228 = vpack.c.b16 %v5120, %v5114
    %v5229 = vpack.c.b16 %v5121, %v5115
    %v5230 = vpack.c.b16 %v5122, %v5116
    %v5231 = vpack.c.b16 %v5123, %v5117
    %v5232 = vpack.c.b16 %v5124, %v5118
    %v5233 = vpack.c.b16 %v5131, %v5125
    %v5234 = vpack.c.b16 %v5132, %v5126
    %v5235 = vpack.c.b16 %v5133, %v5127
    %v5236 = vpack.c.b16 %v5134, %v5128
    %v5237 = vpack.c.b16 %v5135, %v5129
    %v5238 = vpack.c.b16 %v5136, %v5130
    %v5239 = vpack.c.b16 %v5143, %v5137
    %v5240 = vpack.c.b16 %v5144, %v5138
    %v5241 = vpack.c.b16 %v5145, %v5139
    %v5242 = vpack.c.b16 %v5146, %v5140
    %v5243 = vpack.c.b16 %v5147, %v5141
    %v5244 = vpack.c.b16 %v5148, %v5142
    %v5342 = vlaneseq
    %v5343 = vshrl.u32 %v5342, 7
    %v5344 = vsub.s32 0, %v5343
    %v5345 = vrot.slane %v4860, %v5344
    %v5346 = vlaneseq
    %v5347 = vshrl.u32 %v5346, 7
    %v5348 = vsub.s32 1, %v5347
    %v5349 = vrot.slane %v4860, %v5348
    %v5350 = vlaneseq
    %v5351 = vshrl.u32 %v5350, 7
    %v5352 = vsub.s32 2, %v5351
    %v5353 = vrot.slane %v4860, %v5352
    %v5354 = vlaneseq
    %v5355 = vshrl.u32 %v5354, 7
    %v5356 = vsub.s32 3, %v5355
    %v5357 = vrot.slane %v4860, %v5356
    %v5358 = vlaneseq
    %v5359 = vshrl.u32 %v5358, 7
    %v5360 = vsub.s32 4, %v5359
    %v5361 = vrot.slane %v4860, %v5360
    %v5362 = vlaneseq
    %v5363 = vshrl.u32 %v5362, 7
    %v5364 = vsub.s32 5, %v5363
    %v5365 = vrot.slane %v4860, %v5364
    %5372 = vmatprep.subr.bf16.mxu0 %v5150
    %5373 = vmatpush1.bf16.msra.mxu0 %v5149
    %5374 = vmatprep.subr.bf16.mxu0 %v5156
    %5375 = vmatpush1.bf16.msra.mxu0 %v5155
    %5376 = vmatprep.subr.bf16.mxu0 %v5162
    %5377 = vmatpush1.bf16.msra.mxu0 %v5161
    %5378 = vmatprep.subr.bf16.mxu0 %v5168
    %5379 = vmatpush1.bf16.msra.mxu0 %v5167
    %5380 = vmatprep.subr.bf16.mxu0 %v5174
    %5381 = vmatpush1.bf16.msra.mxu0 %v5173
    %5382 = vmatprep.subr.bf16.mxu0 %v5180
    %5383 = vmatpush1.bf16.msra.mxu0 %v5179
    %5384 = vmatprep.subr.bf16.mxu0 %v5186
    %5385 = vmatpush1.bf16.msra.mxu0 %v5185
    %5386 = vmatprep.subr.bf16.mxu0 %v5192
    %5387 = vmatpush1.bf16.msra.mxu0 %v5191
    %5388 = vmatprep.subr.bf16.mxu0 %v5198
    %5389 = vmatpush1.bf16.msra.mxu0 %v5197
    %5390 = vmatprep.subr.bf16.mxu0 %v5204
    %5391 = vmatpush1.bf16.msra.mxu0 %v5203
    %5392 = vmatprep.subr.bf16.mxu0 %v5210
    %5393 = vmatpush1.bf16.msra.mxu0 %v5209
    %5394 = vmatprep.subr.bf16.mxu0 %v5216
    %5395 = vmatpush1.bf16.msra.mxu0 %v5215
    %5396 = vmatprep.subr.bf16.mxu0 %v5222
    %5397 = vmatpush1.bf16.msra.mxu0 %v5221
    %5398 = vmatprep.subr.bf16.mxu0 %v5228
    %5399 = vmatpush1.bf16.msra.mxu0 %v5227
    %5400 = vmatprep.subr.bf16.mxu0 %v5234
    %5401 = vmatpush1.bf16.msra.mxu0 %v5233
    %5402 = vmatprep.subr.bf16.mxu0 %v5240
    %5403 = vmatpush1.bf16.msra.mxu0 %v5239
    %5404 = vmatprep.mubr.bf16.mxu0 0
    %5405 = vmatmul.mubr.bf16.gmra.mrb[0].mxu0 0
    %v5406 = vpop.f32.mrb[0].mxu0
    %v5407 = vadd.f32 %v5345, %v5406
    %v5408 = vpop.f32.mrb[0].mxu0
    %v5409 = vadd.f32 %v5349, %v5408
    %v5410 = vpop.f32.mrb[0].mxu0
    %v5411 = vpop.f32.mrb[0].mxu0
    %5412 = vdwg.mxu0
    %5413 = vmatprep.subr.bf16.mxu0 %v5152
    %5414 = vmatpush1.bf16.msra.mxu0 %v5151
    %5415 = vmatprep.subr.bf16.mxu0 %v5158
    %5416 = vmatpush1.bf16.msra.mxu0 %v5157
    %5417 = vmatprep.subr.bf16.mxu0 %v5164
    %5418 = vmatpush1.bf16.msra.mxu0 %v5163
    %5419 = vmatprep.subr.bf16.mxu0 %v5170
    %5420 = vmatpush1.bf16.msra.mxu0 %v5169
    %5421 = vmatprep.subr.bf16.mxu0 %v5176
    %5422 = vmatpush1.bf16.msra.mxu0 %v5175
    %5423 = vmatprep.subr.bf16.mxu0 %v5182
    %5424 = vmatpush1.bf16.msra.mxu0 %v5181
    %5425 = vmatprep.subr.bf16.mxu0 %v5188
    %5426 = vmatpush1.bf16.msra.mxu0 %v5187
    %5427 = vmatprep.subr.bf16.mxu0 %v5194
    %5428 = vmatpush1.bf16.msra.mxu0 %v5193
    %5429 = vmatprep.subr.bf16.mxu0 %v5200
    %5430 = vmatpush1.bf16.msra.mxu0 %v5199
    %5431 = vmatprep.subr.bf16.mxu0 %v5206
    %5432 = vmatpush1.bf16.msra.mxu0 %v5205
    %5433 = vmatprep.subr.bf16.mxu0 %v5212
    %5434 = vmatpush1.bf16.msra.mxu0 %v5211
    %5435 = vmatprep.subr.bf16.mxu0 %v5218
    %5436 = vmatpush1.bf16.msra.mxu0 %v5217
    %5437 = vmatprep.subr.bf16.mxu0 %v5224
    %5438 = vmatpush1.bf16.msra.mxu0 %v5223
    %5439 = vmatprep.subr.bf16.mxu0 %v5230
    %5440 = vmatpush1.bf16.msra.mxu0 %v5229
    %5441 = vmatprep.subr.bf16.mxu0 %v5236
    %5442 = vmatpush1.bf16.msra.mxu0 %v5235
    %5443 = vmatprep.subr.bf16.mxu0 %v5242
    %5444 = vmatpush1.bf16.msra.mxu0 %v5241
    %5445 = vmatprep.mubr.bf16.mxu0 0
    %5446 = vmatmul.mubr.bf16.gmra.mrb[0].mxu0 0
    %v5447 = vpop.f32.mrb[0].mxu0
    %v5448 = vadd.f32 %v5353, %v5447
    %v5449 = vpop.f32.mrb[0].mxu0
    %v5450 = vadd.f32 %v5357, %v5449
    %v5451 = vpop.f32.mrb[0].mxu0
    %v5452 = vpop.f32.mrb[0].mxu0
    %5453 = vdwg.mxu0
    %5454 = vmatprep.subr.bf16.mxu0 %v5154
    %5455 = vmatpush1.bf16.msra.mxu0 %v5153
    %5456 = vmatprep.subr.bf16.mxu0 %v5160
    %5457 = vmatpush1.bf16.msra.mxu0 %v5159
    %5458 = vmatprep.subr.bf16.mxu0 %v5166
    %5459 = vmatpush1.bf16.msra.mxu0 %v5165
    %5460 = vmatprep.subr.bf16.mxu0 %v5172
    %5461 = vmatpush1.bf16.msra.mxu0 %v5171
    %5462 = vmatprep.subr.bf16.mxu0 %v5178
    %5463 = vmatpush1.bf16.msra.mxu0 %v5177
    %5464 = vmatprep.subr.bf16.mxu0 %v5184
    %5465 = vmatpush1.bf16.msra.mxu0 %v5183
    %5466 = vmatprep.subr.bf16.mxu0 %v5190
    %5467 = vmatpush1.bf16.msra.mxu0 %v5189
    %5468 = vmatprep.subr.bf16.mxu0 %v5196
    %5469 = vmatpush1.bf16.msra.mxu0 %v5195
    %5470 = vmatprep.subr.bf16.mxu0 %v5202
    %5471 = vmatpush1.bf16.msra.mxu0 %v5201
    %5472 = vmatprep.subr.bf16.mxu0 %v5208
    %5473 = vmatpush1.bf16.msra.mxu0 %v5207
    %5474 = vmatprep.subr.bf16.mxu0 %v5214
    %5475 = vmatpush1.bf16.msra.mxu0 %v5213
    %5476 = vmatprep.subr.bf16.mxu0 %v5220
    %5477 = vmatpush1.bf16.msra.mxu0 %v5219
    %5478 = vmatprep.subr.bf16.mxu0 %v5226
    %5479 = vmatpush1.bf16.msra.mxu0 %v5225
    %5480 = vmatprep.subr.bf16.mxu0 %v5232
    %5481 = vmatpush1.bf16.msra.mxu0 %v5231
    %5482 = vmatprep.subr.bf16.mxu0 %v5238
    %5483 = vmatpush1.bf16.msra.mxu0 %v5237
    %5484 = vmatprep.subr.bf16.mxu0 %v5244
    %5485 = vmatpush1.bf16.msra.mxu0 %v5243
    %5486 = vmatprep.mubr.bf16.mxu0 0
    %5487 = vmatmul.mubr.bf16.gmra.mrb[0].mxu0 0
    %v5488 = vpop.f32.mrb[0].mxu0
    %v5489 = vadd.f32 %v5361, %v5488
    %v5490 = vpop.f32.mrb[0].mxu0
    %v5491 = vadd.f32 %v5365, %v5490
    %v5492 = vpop.f32.mrb[0].mxu0
    %v5493 = vpop.f32.mrb[0].mxu0
    %5494 = vdwg.mxu0
    %v5499 = vcombine.low %v5407, %v5409
    %v5500 = vcombine.low %v5448, %v5450
    %v5502 = vunpack.c.l.s4 1966171168
    %v5503 = vunpack.c.0.s8 %v5502
    %v5504 = vlaneseq
    %v5505 = vshrl.u32 %v5504, 7
    %v5506 = vsub.s32 %v5503, %v5505
    %v5507 = vrot.slane %v5499, %v5506
    %v5509 = vunpack.c.l.s4 1966171168
    %v5510 = vunpack.c.0.s8 %v5509
    %v5511 = vlaneseq
    %v5512 = vshrl.u32 %v5511, 7
    %v5513 = vsub.s32 %v5510, %v5512
    %v5514 = vrot.slane %v5500, %v5513
    %v5515 = vcombine.low %v5507, %v5514
    %v5517 = vunpack.c.l.s4 1966171168
    %v5518 = vunpack.c.0.s8 %v5517
    %v5519 = vlaneseq
    %v5520 = vshrl.u32 %v5519, 7
    %v5521 = vsub.s32 %v5518, %v5520
    %v5522 = vrot.slane %v5515, %v5521
    %v5524 = vadd.f32 %v4763, %v5522
    %v5525 = vmul.f32 %v5524, 0.5
    %v5526 = vtanh.pop %v5525
    %v5527 = vadd.f32 %v5526, 1.0
    %v5528 = vmul.f32 %v5527, 0.5
    %v5531 = vcombine.low %v5489, %v5491
    %v5533 = vunpack.c.l.s4 1966171168
    %v5534 = vunpack.c.0.s8 %v5533
    %v5535 = vlaneseq
    %v5536 = vshrl.u32 %v5535, 7
    %v5537 = vsub.s32 %v5534, %v5536
    %v5538 = vrot.slane %v5531, %v5537
    %v5540 = vunpack.c.l.s4 1966171168
    %v5541 = vunpack.c.0.s8 %v5540
    %v5542 = vlaneseq
    %v5543 = vshrl.u32 %v5542, 7
    %v5544 = vsub.s32 %v5541, %v5543
    %v5545 = vrot.slane %v5538, %v5544
    %v5547 = vmul.f32 %v5528, %v5545
    %v5549 = vrot.slane %v4763, 4
    %v5551 = vadd.f32 %v5549, %v5547
    %v5552 = vtanh.pop %v5551
    %v5554 = vrot.slane %v5528, 2
    %v5556 = vsub.f32 1.0, %v5554
    %v5557 = vmul.f32 %v5556, %v5552
    %v5558 = vmul.f32 %v5554, 0.0
    %v5559 = vadd.f32 %v5557, %v5558
    %s5560 = scalar_lea.vmem [#allocation4], 1
    %v5561 = vld [vmem:[%s5560] ss:$4 sm:$0x3f]
    %v5563 = vlaneseq
    %v5564 = vshrl.u32 %v5563, 7
    %v5565 = vsub.s32 0, %v5564
    %v5566 = vrot.slane %v5559, %v5565
    %v5567 = vlaneseq
    %v5568 = vshrl.u32 %v5567, 7
    %v5569 = vsub.s32 1, %v5568
    %v5570 = vrot.slane %v5559, %v5569
    %v5573 = vpack.c.bf16 %v5566, %v5566
    %v5574 = vpack.c.bf16 %v5570, %v5570
    %5575 = vmatprep.subr.bf16.mxu0 %v5150
    %5576 = vmatpush1.bf16.msra.mxu0 %v5149
    %5577 = vmatprep.subr.bf16.mxu0 %v5156
    %5578 = vmatpush1.bf16.msra.mxu0 %v5155
    %5579 = vmatprep.subr.bf16.mxu0 %v5162
    %5580 = vmatpush1.bf16.msra.mxu0 %v5161
    %5581 = vmatprep.subr.bf16.mxu0 %v5168
    %5582 = vmatpush1.bf16.msra.mxu0 %v5167
    %5583 = vmatprep.subr.bf16.mxu0 %v5174
    %5584 = vmatpush1.bf16.msra.mxu0 %v5173
    %5585 = vmatprep.subr.bf16.mxu0 %v5180
    %5586 = vmatpush1.bf16.msra.mxu0 %v5179
    %5587 = vmatprep.subr.bf16.mxu0 %v5186
    %5588 = vmatpush1.bf16.msra.mxu0 %v5185
    %5589 = vmatprep.subr.bf16.mxu0 %v5192
    %5590 = vmatpush1.bf16.msra.mxu0 %v5191
    %5591 = vmatprep.subr.bf16.mxu0 %v5198
    %5592 = vmatpush1.bf16.msra.mxu0 %v5197
    %5593 = vmatprep.subr.bf16.mxu0 %v5204
    %5594 = vmatpush1.bf16.msra.mxu0 %v5203
    %5595 = vmatprep.subr.bf16.mxu0 %v5210
    %5596 = vmatpush1.bf16.msra.mxu0 %v5209
    %5597 = vmatprep.subr.bf16.mxu0 %v5216
    %5598 = vmatpush1.bf16.msra.mxu0 %v5215
    %5599 = vmatprep.subr.bf16.mxu0 %v5222
    %5600 = vmatpush1.bf16.msra.mxu0 %v5221
    %5601 = vmatprep.subr.bf16.mxu0 %v5228
    %5602 = vmatpush1.bf16.msra.mxu0 %v5227
    %5603 = vmatprep.subr.bf16.mxu0 %v5234
    %5604 = vmatpush1.bf16.msra.mxu0 %v5233
    %5605 = vmatprep.subr.bf16.mxu0 %v5240
    %5606 = vmatpush1.bf16.msra.mxu0 %v5239
    %5607 = vmatprep.mubr.bf16.mxu0 %v5574
    %5608 = vmatmul.mubr.bf16.gmra.mrb[0].mxu0 %v5573
    %v5609 = vpop.f32.mrb[0].mxu0
    %v5610 = vadd.f32 %v5345, %v5609
    %v5611 = vpop.f32.mrb[0].mxu0
    %v5612 = vadd.f32 %v5349, %v5611
    %v5613 = vpop.f32.mrb[0].mxu0
    %v5614 = vpop.f32.mrb[0].mxu0
    %5615 = vdwg.mxu0
    %5616 = vmatprep.subr.bf16.mxu0 %v5152
    %5617 = vmatpush1.bf16.msra.mxu0 %v5151
    %5618 = vmatprep.subr.bf16.mxu0 %v5158
    %5619 = vmatpush1.bf16.msra.mxu0 %v5157
    %5620 = vmatprep.subr.bf16.mxu0 %v5164
    %5621 = vmatpush1.bf16.msra.mxu0 %v5163
    %5622 = vmatprep.subr.bf16.mxu0 %v5170
    %5623 = vmatpush1.bf16.msra.mxu0 %v5169
    %5624 = vmatprep.subr.bf16.mxu0 %v5176
    %5625 = vmatpush1.bf16.msra.mxu0 %v5175
    %5626 = vmatprep.subr.bf16.mxu0 %v5182
    %5627 = vmatpush1.bf16.msra.mxu0 %v5181
    %5628 = vmatprep.subr.bf16.mxu0 %v5188
    %5629 = vmatpush1.bf16.msra.mxu0 %v5187
    %5630 = vmatprep.subr.bf16.mxu0 %v5194
    %5631 = vmatpush1.bf16.msra.mxu0 %v5193
    %5632 = vmatprep.subr.bf16.mxu0 %v5200
    %5633 = vmatpush1.bf16.msra.mxu0 %v5199
    %5634 = vmatprep.subr.bf16.mxu0 %v5206
    %5635 = vmatpush1.bf16.msra.mxu0 %v5205
    %5636 = vmatprep.subr.bf16.mxu0 %v5212
    %5637 = vmatpush1.bf16.msra.mxu0 %v5211
    %5638 = vmatprep.subr.bf16.mxu0 %v5218
    %5639 = vmatpush1.bf16.msra.mxu0 %v5217
    %5640 = vmatprep.subr.bf16.mxu0 %v5224
    %5641 = vmatpush1.bf16.msra.mxu0 %v5223
    %5642 = vmatprep.subr.bf16.mxu0 %v5230
    %5643 = vmatpush1.bf16.msra.mxu0 %v5229
    %5644 = vmatprep.subr.bf16.mxu0 %v5236
    %5645 = vmatpush1.bf16.msra.mxu0 %v5235
    %5646 = vmatprep.subr.bf16.mxu0 %v5242
    %5647 = vmatpush1.bf16.msra.mxu0 %v5241
    %5648 = vmatprep.mubr.bf16.mxu0 %v5574
    %5649 = vmatmul.mubr.bf16.gmra.mrb[0].mxu0 %v5573
    %v5650 = vpop.f32.mrb[0].mxu0
    %v5651 = vadd.f32 %v5353, %v5650
    %v5652 = vpop.f32.mrb[0].mxu0
    %v5653 = vadd.f32 %v5357, %v5652
    %v5654 = vpop.f32.mrb[0].mxu0
    %v5655 = vpop.f32.mrb[0].mxu0
    %5656 = vdwg.mxu0
    %5657 = vmatprep.subr.bf16.mxu0 %v5154
    %5658 = vmatpush1.bf16.msra.mxu0 %v5153
    %5659 = vmatprep.subr.bf16.mxu0 %v5160
    %5660 = vmatpush1.bf16.msra.mxu0 %v5159
    %5661 = vmatprep.subr.bf16.mxu0 %v5166
    %5662 = vmatpush1.bf16.msra.mxu0 %v5165
    %5663 = vmatprep.subr.bf16.mxu0 %v5172
    %5664 = vmatpush1.bf16.msra.mxu0 %v5171
    %5665 = vmatprep.subr.bf16.mxu0 %v5178
    %5666 = vmatpush1.bf16.msra.mxu0 %v5177
    %5667 = vmatprep.subr.bf16.mxu0 %v5184
    %5668 = vmatpush1.bf16.msra.mxu0 %v5183
    %5669 = vmatprep.subr.bf16.mxu0 %v5190
    %5670 = vmatpush1.bf16.msra.mxu0 %v5189
    %5671 = vmatprep.subr.bf16.mxu0 %v5196
    %5672 = vmatpush1.bf16.msra.mxu0 %v5195
    %5673 = vmatprep.subr.bf16.mxu0 %v5202
    %5674 = vmatpush1.bf16.msra.mxu0 %v5201
    %5675 = vmatprep.subr.bf16.mxu0 %v5208
    %5676 = vmatpush1.bf16.msra.mxu0 %v5207
    %5677 = vmatprep.subr.bf16.mxu0 %v5214
    %5678 = vmatpush1.bf16.msra.mxu0 %v5213
    %5679 = vmatprep.subr.bf16.mxu0 %v5220
    %5680 = vmatpush1.bf16.msra.mxu0 %v5219
    %5681 = vmatprep.subr.bf16.mxu0 %v5226
    %5682 = vmatpush1.bf16.msra.mxu0 %v5225
    %5683 = vmatprep.subr.bf16.mxu0 %v5232
    %5684 = vmatpush1.bf16.msra.mxu0 %v5231
    %5685 = vmatprep.subr.bf16.mxu0 %v5238
    %5686 = vmatpush1.bf16.msra.mxu0 %v5237
    %5687 = vmatprep.subr.bf16.mxu0 %v5244
    %5688 = vmatpush1.bf16.msra.mxu0 %v5243
    %5689 = vmatprep.mubr.bf16.mxu0 %v5574
    %5690 = vmatmul.mubr.bf16.gmra.mrb[0].mxu0 %v5573
    %v5691 = vpop.f32.mrb[0].mxu0
    %v5692 = vadd.f32 %v5361, %v5691
    %v5693 = vpop.f32.mrb[0].mxu0
    %v5694 = vadd.f32 %v5365, %v5693
    %v5695 = vpop.f32.mrb[0].mxu0
    %v5696 = vpop.f32.mrb[0].mxu0
    %5697 = vdwg.mxu0
    %v5702 = vcombine.low %v5610, %v5612
    %v5703 = vcombine.low %v5651, %v5653
    %v5705 = vunpack.c.l.s4 1966171168
    %v5706 = vunpack.c.0.s8 %v5705
    %v5707 = vlaneseq
    %v5708 = vshrl.u32 %v5707, 7
    %v5709 = vsub.s32 %v5706, %v5708
    %v5710 = vrot.slane %v5702, %v5709
    %v5712 = vunpack.c.l.s4 1966171168
    %v5713 = vunpack.c.0.s8 %v5712
    %v5714 = vlaneseq
    %v5715 = vshrl.u32 %v5714, 7
    %v5716 = vsub.s32 %v5713, %v5715
    %v5717 = vrot.slane %v5703, %v5716
    %v5718 = vcombine.low %v5710, %v5717
    %v5720 = vunpack.c.l.s4 1966171168
    %v5721 = vunpack.c.0.s8 %v5720
    %v5722 = vlaneseq
    %v5723 = vshrl.u32 %v5722, 7
    %v5724 = vsub.s32 %v5721, %v5723
    %v5725 = vrot.slane %v5718, %v5724
    %v5727 = vadd.f32 %v5561, %v5725
    %v5728 = vmul.f32 %v5727, 0.5
    %v5729 = vtanh.pop %v5728
    %v5730 = vadd.f32 %v5729, 1.0
    %v5731 = vmul.f32 %v5730, 0.5
    %v5734 = vcombine.low %v5692, %v5694
    %v5736 = vunpack.c.l.s4 1966171168
    %v5737 = vunpack.c.0.s8 %v5736
    %v5738 = vlaneseq
    %v5739 = vshrl.u32 %v5738, 7
    %v5740 = vsub.s32 %v5737, %v5739
    %v5741 = vrot.slane %v5734, %v5740
    %v5743 = vunpack.c.l.s4 1966171168
    %v5744 = vunpack.c.0.s8 %v5743
    %v5745 = vlaneseq
    %v5746 = vshrl.u32 %v5745, 7
    %v5747 = vsub.s32 %v5744, %v5746
    %v5748 = vrot.slane %v5741, %v5747
    %v5750 = vmul.f32 %v5731, %v5748
    %v5752 = vrot.slane %v5561, 4
    %v5754 = vadd.f32 %v5752, %v5750
    %v5755 = vtanh.pop %v5754
    %v5757 = vrot.slane %v5731, 2
    %v5759 = vsub.f32 1.0, %v5757
    %v5760 = vmul.f32 %v5759, %v5755
    %v5761 = vmul.f32 %v5757, %v5559
    %v5762 = vadd.f32 %v5760, %v5761
    %s5763 = scalar_lea.vmem [#allocation4], 2
    %v5764 = vld [vmem:[%s5763] ss:$4 sm:$0x3f]
    %v5766 = vlaneseq
    %v5767 = vshrl.u32 %v5766, 7
    %v5768 = vsub.s32 0, %v5767
    %v5769 = vrot.slane %v5762, %v5768
    %v5770 = vlaneseq
    %v5771 = vshrl.u32 %v5770, 7
    %v5772 = vsub.s32 1, %v5771
    %v5773 = vrot.slane %v5762, %v5772
    %v5776 = vpack.c.bf16 %v5769, %v5769
    %v5777 = vpack.c.bf16 %v5773, %v5773
    %5778 = vmatprep.subr.bf16.mxu0 %v5150
    %5779 = vmatpush1.bf16.msra.mxu0 %v5149
    %5780 = vmatprep.subr.bf16.mxu0 %v5156
    %5781 = vmatpush1.bf16.msra.mxu0 %v5155
    %5782 = vmatprep.subr.bf16.mxu0 %v5162
    %5783 = vmatpush1.bf16.msra.mxu0 %v5161
    %5784 = vmatprep.subr.bf16.mxu0 %v5168
    %5785 = vmatpush1.bf16.msra.mxu0 %v5167
    %5786 = vmatprep.subr.bf16.mxu0 %v5174
    %5787 = vmatpush1.bf16.msra.mxu0 %v5173
    %5788 = vmatprep.subr.bf16.mxu0 %v5180
    %5789 = vmatpush1.bf16.msra.mxu0 %v5179
    %5790 = vmatprep.subr.bf16.mxu0 %v5186
    %5791 = vmatpush1.bf16.msra.mxu0 %v5185
    %5792 = vmatprep.subr.bf16.mxu0 %v5192
    %5793 = vmatpush1.bf16.msra.mxu0 %v5191
    %5794 = vmatprep.subr.bf16.mxu0 %v5198
    %5795 = vmatpush1.bf16.msra.mxu0 %v5197
    %5796 = vmatprep.subr.bf16.mxu0 %v5204
    %5797 = vmatpush1.bf16.msra.mxu0 %v5203
    %5798 = vmatprep.subr.bf16.mxu0 %v5210
    %5799 = vmatpush1.bf16.msra.mxu0 %v5209
    %5800 = vmatprep.subr.bf16.mxu0 %v5216
    %5801 = vmatpush1.bf16.msra.mxu0 %v5215
    %5802 = vmatprep.subr.bf16.mxu0 %v5222
    %5803 = vmatpush1.bf16.msra.mxu0 %v5221
    %5804 = vmatprep.subr.bf16.mxu0 %v5228
    %5805 = vmatpush1.bf16.msra.mxu0 %v5227
    %5806 = vmatprep.subr.bf16.mxu0 %v5234
    %5807 = vmatpush1.bf16.msra.mxu0 %v5233
    %5808 = vmatprep.subr.bf16.mxu0 %v5240
    %5809 = vmatpush1.bf16.msra.mxu0 %v5239
    %5810 = vmatprep.mubr.bf16.mxu0 %v5777
    %5811 = vmatmul.mubr.bf16.gmra.mrb[0].mxu0 %v5776
    %v5812 = vpop.f32.mrb[0].mxu0
    %v5813 = vadd.f32 %v5345, %v5812
    %v5814 = vpop.f32.mrb[0].mxu0
    %v5815 = vadd.f32 %v5349, %v5814
    %v5816 = vpop.f32.mrb[0].mxu0
    %v5817 = vpop.f32.mrb[0].mxu0
    %5818 = vdwg.mxu0
    %5819 = vmatprep.subr.bf16.mxu0 %v5152
    %5820 = vmatpush1.bf16.msra.mxu0 %v5151
    %5821 = vmatprep.subr.bf16.mxu0 %v5158
    %5822 = vmatpush1.bf16.msra.mxu0 %v5157
    %5823 = vmatprep.subr.bf16.mxu0 %v5164
    %5824 = vmatpush1.bf16.msra.mxu0 %v5163
    %5825 = vmatprep.subr.bf16.mxu0 %v5170
    %5826 = vmatpush1.bf16.msra.mxu0 %v5169
    %5827 = vmatprep.subr.bf16.mxu0 %v5176
    %5828 = vmatpush1.bf16.msra.mxu0 %v5175
    %5829 = vmatprep.subr.bf16.mxu0 %v5182
    %5830 = vmatpush1.bf16.msra.mxu0 %v5181
    %5831 = vmatprep.subr.bf16.mxu0 %v5188
    %5832 = vmatpush1.bf16.msra.mxu0 %v5187
    %5833 = vmatprep.subr.bf16.mxu0 %v5194
    %5834 = vmatpush1.bf16.msra.mxu0 %v5193
    %5835 = vmatprep.subr.bf16.mxu0 %v5200
    %5836 = vmatpush1.bf16.msra.mxu0 %v5199
    %5837 = vmatprep.subr.bf16.mxu0 %v5206
    %5838 = vmatpush1.bf16.msra.mxu0 %v5205
    %5839 = vmatprep.subr.bf16.mxu0 %v5212
    %5840 = vmatpush1.bf16.msra.mxu0 %v5211
    %5841 = vmatprep.subr.bf16.mxu0 %v5218
    %5842 = vmatpush1.bf16.msra.mxu0 %v5217
    %5843 = vmatprep.subr.bf16.mxu0 %v5224
    %5844 = vmatpush1.bf16.msra.mxu0 %v5223
    %5845 = vmatprep.subr.bf16.mxu0 %v5230
    %5846 = vmatpush1.bf16.msra.mxu0 %v5229
    %5847 = vmatprep.subr.bf16.mxu0 %v5236
    %5848 = vmatpush1.bf16.msra.mxu0 %v5235
    %5849 = vmatprep.subr.bf16.mxu0 %v5242
    %5850 = vmatpush1.bf16.msra.mxu0 %v5241
    %5851 = vmatprep.mubr.bf16.mxu0 %v5777
    %5852 = vmatmul.mubr.bf16.gmra.mrb[0].mxu0 %v5776
    %v5853 = vpop.f32.mrb[0].mxu0
    %v5854 = vadd.f32 %v5353, %v5853
    %v5855 = vpop.f32.mrb[0].mxu0
    %v5856 = vadd.f32 %v5357, %v5855
    %v5857 = vpop.f32.mrb[0].mxu0
    %v5858 = vpop.f32.mrb[0].mxu0
    %5859 = vdwg.mxu0
    %5860 = vmatprep.subr.bf16.mxu0 %v5154
    %5861 = vmatpush1.bf16.msra.mxu0 %v5153
    %5862 = vmatprep.subr.bf16.mxu0 %v5160
    %5863 = vmatpush1.bf16.msra.mxu0 %v5159
    %5864 = vmatprep.subr.bf16.mxu0 %v5166
    %5865 = vmatpush1.bf16.msra.mxu0 %v5165
    %5866 = vmatprep.subr.bf16.mxu0 %v5172
    %5867 = vmatpush1.bf16.msra.mxu0 %v5171
    %5868 = vmatprep.subr.bf16.mxu0 %v5178
    %5869 = vmatpush1.bf16.msra.mxu0 %v5177
    %5870 = vmatprep.subr.bf16.mxu0 %v5184
    %5871 = vmatpush1.bf16.msra.mxu0 %v5183
    %5872 = vmatprep.subr.bf16.mxu0 %v5190
    %5873 = vmatpush1.bf16.msra.mxu0 %v5189
    %5874 = vmatprep.subr.bf16.mxu0 %v5196
    %5875 = vmatpush1.bf16.msra.mxu0 %v5195
    %5876 = vmatprep.subr.bf16.mxu0 %v5202
    %5877 = vmatpush1.bf16.msra.mxu0 %v5201
    %5878 = vmatprep.subr.bf16.mxu0 %v5208
    %5879 = vmatpush1.bf16.msra.mxu0 %v5207
    %5880 = vmatprep.subr.bf16.mxu0 %v5214
    %5881 = vmatpush1.bf16.msra.mxu0 %v5213
    %5882 = vmatprep.subr.bf16.mxu0 %v5220
    %5883 = vmatpush1.bf16.msra.mxu0 %v5219
    %5884 = vmatprep.subr.bf16.mxu0 %v5226
    %5885 = vmatpush1.bf16.msra.mxu0 %v5225
    %5886 = vmatprep.subr.bf16.mxu0 %v5232
    %5887 = vmatpush1.bf16.msra.mxu0 %v5231
    %5888 = vmatprep.subr.bf16.mxu0 %v5238
    %5889 = vmatpush1.bf16.msra.mxu0 %v5237
    %5890 = vmatprep.subr.bf16.mxu0 %v5244
    %5891 = vmatpush1.bf16.msra.mxu0 %v5243
    %5892 = vmatprep.mubr.bf16.mxu0 %v5777
    %5893 = vmatmul.mubr.bf16.gmra.mrb[0].mxu0 %v5776
    %v5894 = vpop.f32.mrb[0].mxu0
    %v5895 = vadd.f32 %v5361, %v5894
    %v5896 = vpop.f32.mrb[0].mxu0
    %v5897 = vadd.f32 %v5365, %v5896
    %v5898 = vpop.f32.mrb[0].mxu0
    %v5899 = vpop.f32.mrb[0].mxu0
    %5900 = vdwg.mxu0
    %v5905 = vcombine.low %v5813, %v5815
    %v5906 = vcombine.low %v5854, %v5856
    %v5908 = vunpack.c.l.s4 1966171168
    %v5909 = vunpack.c.0.s8 %v5908
    %v5910 = vlaneseq
    %v5911 = vshrl.u32 %v5910, 7
    %v5912 = vsub.s32 %v5909, %v5911
    %v5913 = vrot.slane %v5905, %v5912
    %v5915 = vunpack.c.l.s4 1966171168
    %v5916 = vunpack.c.0.s8 %v5915
    %v5917 = vlaneseq
    %v5918 = vshrl.u32 %v5917, 7
    %v5919 = vsub.s32 %v5916, %v5918
    %v5920 = vrot.slane %v5906, %v5919
    %v5921 = vcombine.low %v5913, %v5920
    %v5923 = vunpack.c.l.s4 1966171168
    %v5924 = vunpack.c.0.s8 %v5923
    %v5925 = vlaneseq
    %v5926 = vshrl.u32 %v5925, 7
    %v5927 = vsub.s32 %v5924, %v5926
    %v5928 = vrot.slane %v5921, %v5927
    %v5930 = vadd.f32 %v5764, %v5928
    %v5931 = vmul.f32 %v5930, 0.5
    %v5932 = vtanh.pop %v5931
    %v5933 = vadd.f32 %v5932, 1.0
    %v5934 = vmul.f32 %v5933, 0.5
    %v5937 = vcombine.low %v5895, %v5897
    %v5939 = vunpack.c.l.s4 1966171168
    %v5940 = vunpack.c.0.s8 %v5939
    %v5941 = vlaneseq
    %v5942 = vshrl.u32 %v5941, 7
    %v5943 = vsub.s32 %v5940, %v5942
    %v5944 = vrot.slane %v5937, %v5943
    %v5946 = vunpack.c.l.s4 1966171168
    %v5947 = vunpack.c.0.s8 %v5946
    %v5948 = vlaneseq
    %v5949 = vshrl.u32 %v5948, 7
    %v5950 = vsub.s32 %v5947, %v5949
    %v5951 = vrot.slane %v5944, %v5950
    %v5953 = vmul.f32 %v5934, %v5951
    %v5955 = vrot.slane %v5764, 4
    %v5957 = vadd.f32 %v5955, %v5953
    %v5958 = vtanh.pop %v5957
    %v5960 = vrot.slane %v5934, 2
    %v5962 = vsub.f32 1.0, %v5960
    %v5963 = vmul.f32 %v5962, %v5958
    %v5964 = vmul.f32 %v5960, %v5762
    %v5965 = vadd.f32 %v5963, %v5964
    %v5966 = vld [vmem:[%s10] sm:$0xff]
    %v5967 = vld [vmem:[%s10 + $0x8] sm:$0xff]
    %v5968 = vld [vmem:[%s10 + $0x10] sm:$0xff]
    %v5969 = vld [vmem:[%s10 + $0x18] sm:$0xff]
    %v5970 = vld [vmem:[%s10 + $0x20] sm:$0xff]
    %v5971 = vld [vmem:[%s10 + $0x28] sm:$0xff]
    %v5972 = vld [vmem:[%s10 + $0x30] sm:$0xff]
    %v5973 = vld [vmem:[%s10 + $0x38] sm:$0xff]
    %v5974 = vld [vmem:[%s10 + $0x40] sm:$0xff]
    %v5975 = vld [vmem:[%s10 + $0x48] sm:$0xff]
    %v5976 = vld [vmem:[%s10 + $0x50] sm:$0xff]
    %v5977 = vld [vmem:[%s10 + $0x58] sm:$0xff]
    %v5978 = vld [vmem:[%s10 + $0x60] sm:$0xff]
    %v5979 = vld [vmem:[%s10 + $0x68] sm:$0xff]
    %v5980 = vld [vmem:[%s10 + $0x70] sm:$0xff]
    %v5981 = vld [vmem:[%s10 + $0x78] sm:$0xff]
    %v5982 = vld [vmem:[%s10 + $0x80] sm:$0xff]
    %v5983 = vld [vmem:[%s10 + $0x88] sm:$0xff]
    %v5984 = vld [vmem:[%s10 + $0x90] sm:$0xff]
    %v5985 = vld [vmem:[%s10 + $0x98] sm:$0xff]
    %v5986 = vld [vmem:[%s10 + $0xa0] sm:$0xff]
    %v5987 = vld [vmem:[%s10 + $0xa8] sm:$0xff]
    %v5988 = vld [vmem:[%s10 + $0xb0] sm:$0xff]
    %v5989 = vld [vmem:[%s10 + $0xb8] sm:$0xff]
    %v5990 = vld [vmem:[%s10 + $0xc0] sm:$0xff]
    %v5991 = vld [vmem:[%s10 + $0xc8] sm:$0xff]
    %v5992 = vld [vmem:[%s10 + $0xd0] sm:$0xff]
    %v5993 = vld [vmem:[%s10 + $0xd8] sm:$0xff]
    %v5994 = vld [vmem:[%s10 + $0xe0] sm:$0xff]
    %v5995 = vld [vmem:[%s10 + $0xe8] sm:$0xff]
    %v5996 = vld [vmem:[%s10 + $0xf0] sm:$0xff]
    %v5997 = vld [vmem:[%s10 + $0xf8] sm:$0xff]
    %v5998 = vld [vmem:[%s11] sm:$0x1]
    %v6000 = vlaneseq
    %v6001 = vshrl.u32 %v6000, 7
    %v6002 = vsub.s32 0, %v6001
    %v6003 = vrot.slane %v5965, %v6002
    %v6004 = vlaneseq
    %v6005 = vshrl.u32 %v6004, 7
    %v6006 = vsub.s32 1, %v6005
    %v6007 = vrot.slane %v5965, %v6006
    %6010 = vmatprep.subr.mxu0 0.0
    %6011 = vmatpush1.msra.mxu0 %v5966
    %6012 = vmatprep.subr.mxu0 0.0
    %6013 = vmatpush1.msra.mxu0 %v5967
    %6014 = vmatprep.subr.mxu0 0.0
    %6015 = vmatpush1.msra.mxu0 %v5968
    %6016 = vmatprep.subr.mxu0 0.0
    %6017 = vmatpush1.msra.mxu0 %v5969
    %6018 = vmatprep.subr.mxu0 0.0
    %6019 = vmatpush1.msra.mxu0 %v5970
    %6020 = vmatprep.subr.mxu0 0.0
    %6021 = vmatpush1.msra.mxu0 %v5971
    %6022 = vmatprep.subr.mxu0 0.0
    %6023 = vmatpush1.msra.mxu0 %v5972
    %6024 = vmatprep.subr.mxu0 0.0
    %6025 = vmatpush1.msra.mxu0 %v5973
    %6026 = vmatprep.subr.mxu0 0.0
    %6027 = vmatpush1.msra.mxu0 %v5974
    %6028 = vmatprep.subr.mxu0 0.0
    %6029 = vmatpush1.msra.mxu0 %v5975
    %6030 = vmatprep.subr.mxu0 0.0
    %6031 = vmatpush1.msra.mxu0 %v5976
    %6032 = vmatprep.subr.mxu0 0.0
    %6033 = vmatpush1.msra.mxu0 %v5977
    %6034 = vmatprep.subr.mxu0 0.0
    %6035 = vmatpush1.msra.mxu0 %v5978
    %6036 = vmatprep.subr.mxu0 0.0
    %6037 = vmatpush1.msra.mxu0 %v5979
    %6038 = vmatprep.subr.mxu0 0.0
    %6039 = vmatpush1.msra.mxu0 %v5980
    %6040 = vmatprep.subr.mxu0 0.0
    %6041 = vmatpush1.msra.mxu0 %v5981
    %6042 = vmatprep.subr.mxu0 0.0
    %6043 = vmatpush1.msra.mxu0 %v5982
    %6044 = vmatprep.subr.mxu0 0.0
    %6045 = vmatpush1.msra.mxu0 %v5983
    %6046 = vmatprep.subr.mxu0 0.0
    %6047 = vmatpush1.msra.mxu0 %v5984
    %6048 = vmatprep.subr.mxu0 0.0
    %6049 = vmatpush1.msra.mxu0 %v5985
    %6050 = vmatprep.subr.mxu0 0.0
    %6051 = vmatpush1.msra.mxu0 %v5986
    %6052 = vmatprep.subr.mxu0 0.0
    %6053 = vmatpush1.msra.mxu0 %v5987
    %6054 = vmatprep.subr.mxu0 0.0
    %6055 = vmatpush1.msra.mxu0 %v5988
    %6056 = vmatprep.subr.mxu0 0.0
    %6057 = vmatpush1.msra.mxu0 %v5989
    %6058 = vmatprep.subr.mxu0 0.0
    %6059 = vmatpush1.msra.mxu0 %v5990
    %6060 = vmatprep.subr.mxu0 0.0
    %6061 = vmatpush1.msra.mxu0 %v5991
    %6062 = vmatprep.subr.mxu0 0.0
    %6063 = vmatpush1.msra.mxu0 %v5992
    %6064 = vmatprep.subr.mxu0 0.0
    %6065 = vmatpush1.msra.mxu0 %v5993
    %6066 = vmatprep.subr.mxu0 0.0
    %6067 = vmatpush1.msra.mxu0 %v5994
    %6068 = vmatprep.subr.mxu0 0.0
    %6069 = vmatpush1.msra.mxu0 %v5995
    %6070 = vmatprep.subr.mxu0 0.0
    %6071 = vmatpush1.msra.mxu0 %v5996
    %6072 = vmatprep.subr.mxu0 0.0
    %6073 = vmatpush1.msra.mxu0 %v5997
    %6074 = vmatprep.mubr.f32.mxu0 %v6007
    %6075 = vmatmul.mubr.f32.gmra.mrb[0].mxu0 %v6003
    %v6076 = vpop.f32.mrb[0].mxu0
    %v6077 = vadd.f32 %v5998, %v6076
    %v6078 = vpop.f32.mrb[0].mxu0
    %6079 = vdwg.mxu0
    %vm6080 = vcmask 8192
    %v6081 = vsel %vm6080, %v6077, -inf
    %6082 = vmax.xlane.f32.xlu0 %v6081
    %v6083 = vpop.xlane.xlu0 %6082
    %v6084 = vsub.f32 %v6077, %v6083
    %v6085 = vmul.f32 %v6084, 1.442695
    %v6086 = vpow.pop %v6085
    %v6087 = vsel %vm6080, %v6086, 0.0
    %6088 = vadd.xlane.f32.xlu0 %v6087
    %v6089 = vpop.xlane.xlu0 %6088
    %v6090 = vrcp.pop %v6089
    %v6091 = vmul.f32 %v6086, %v6090
    %6092 = vst.msk [vmem:[#allocation17] sm:$0x1] %vm6080, %v6091
    // Predicated region
    $region122: #{tpu_custom_call.1} parent=1 // pred_check
      _
    $region123: #{tpu_custom_call.1} parent=1 // pred_check_branch
      %6094 = sbr.rel (0) target = $region125
    $region124: #{tpu_custom_call.1} parent=1 // pred_region
      %s6096 = ssub.s32 16, 16
      %6097 = vsyncadd [#allocation7], %s6096
      %s6099 = sshll.u32 [#allocation17], 4
      %s6100 = int_to_ptr.vmem [resolvable:$true] %s6099
      %6102 = dma.vmem_to_hbm [thread:$0]  %s6100, 16, %s12, [#allocation7]
    $region125: #{tpu_custom_call.1} parent=1 // pred_fallthru
      _
    // Predicated region
    $region126: #{tpu_custom_call.1} parent=1 // pred_check
      _
    $region127: #{tpu_custom_call.1} parent=1 // pred_check_branch
      %6104 = sbr.rel (0) target = $region129
    $region128: #{tpu_custom_call.1} parent=1 // pred_region
      %6105 = dma.done [#allocation7], 16
    $region129: #{tpu_custom_call.1} parent=1 // pred_fallthru
      _
    %6106 = vsyncpa [#allocation6], 1
    %6107 = vsyncpa [#allocation13], 1
    %6108 = vsyncpa [#allocation16], 1
    %6109 = vsyncpa [#allocation7], 1
    %6110 = vsyncpa [#allocation8], 1
    %6111 = vsyncpa [#allocation10], 1

</llo_original>
